<compile_context>
chip_gen: v7x
topology: tpu7x:2x2x1
jax: 0.10.0
libtpu: 0.0.40
codegen_flags: <defaults>
</compile_context>

<pallas_src>
import jax
import jax.numpy as jnp
from jax import lax
from jax.experimental import pallas as pl
from jax.experimental.pallas import tpu as pltpu

_EPS = 1e-5


# ---------------------------------------------------------------------------
# Kernel bodies: each grid step processes nb images laid out as (nb*H, W*C).
# ---------------------------------------------------------------------------

def _bn_relu_conv3(h_ref, a_ref, b_ref, bt_ref, bm_ref, bb_ref):
    """Folded BatchNorm (scale/shift) -> ReLU -> 3x3 SAME conv as three
    accumulating MXU matmuls (top / mid / bottom kernel rows)."""
    nb, H, wc = h_ref.shape
    rows_total = nb * H
    h = h_ref[...].reshape(rows_total, wc).astype(jnp.float32)
    h = jnp.maximum(h * a_ref[...] + b_ref[...], 0.0)            # folded BN + ReLU (f32)

    # Row shifts on the sublane axis via XLU roll; mask zeroes both the H
    # boundary and the boundaries between images stacked inside the block.
    rows = lax.broadcasted_iota(jnp.int32, (rows_total, 1), 0)
    prev = jnp.where(rows % H == 0, 0.0,
                     pltpu.roll(h, shift=1, axis=0))             # row y-1
    nxt = jnp.where(rows % H == (H - 1), 0.0,
                    pltpu.roll(h, shift=rows_total - 1, axis=0))  # row y+1

    # bf16 operands, f32 accumulation on the MXU.
    acc = jnp.dot(h.astype(jnp.bfloat16), bm_ref[...],
                  preferred_element_type=jnp.float32)
    acc = acc + jnp.dot(prev.astype(jnp.bfloat16), bt_ref[...],
                        preferred_element_type=jnp.float32)
    acc = acc + jnp.dot(nxt.astype(jnp.bfloat16), bb_ref[...],
                        preferred_element_type=jnp.float32)
    return acc                                                    # (nb*H, W*Cout) f32


def _block_a_kernel(x_ref, a1_ref, b1_ref, bt_ref, bm_ref, bb_ref,
                    y_ref, s1_ref, s2_ref):
    # in_norm -> ReLU -> in_conv (no bias); also emit BN2 partial sums.
    out = _bn_relu_conv3(x_ref, a1_ref, b1_ref, bt_ref, bm_ref, bb_ref)
    nb, H, _ = x_ref.shape
    y_ref[...] = out.reshape(nb, H, out.shape[-1]).astype(y_ref.dtype)
    s1_ref[0] = jnp.sum(out, axis=0, keepdims=True)           # (1, W*Cout) f32
    s2_ref[0] = jnp.sum(out * out, axis=0, keepdims=True)     # (1, W*Cout) f32


def _block_b_kernel(y1_ref, x_ref, a2_ref, b2_ref, bt_ref, bm_ref, bb_ref,
                    bias2_ref, o_ref):
    # out_norm -> ReLU -> out_conv (+bias) -> + skip
    out = _bn_relu_conv3(y1_ref, a2_ref, b2_ref, bt_ref, bm_ref, bb_ref)
    nb, H, wco = o_ref.shape
    out = (out + bias2_ref[...]).reshape(nb, H, wco)
    o_ref[...] = out + x_ref[...].astype(jnp.float32)


# ---------------------------------------------------------------------------
# Parameter / layout glue (plain JAX, runs under the same jit).
# ---------------------------------------------------------------------------

def _weight_norm(v, g):
    # PyTorch nn.utils.weight_norm default dim=0: w[o] = g[o] * v[o] / ||v[o]||_2
    norm = jnp.sqrt(jnp.sum(v * v, axis=(1, 2, 3), keepdims=True))
    return (g[:, None, None, None] / norm) * v


def _banded_conv_mats(w_oihw, W, dtype):
    """(Cout, Cin, 3, 3) -> three (W*Cin, W*Cout) banded matrices (top/mid/bot)
    such that prev@Bt + h@Bm + nxt@Bb == SAME 3x3 conv output row y.  The dx
    shift and W-boundary zero padding are encoded by the band structure."""
    Cout, Cin = w_oihw.shape[0], w_oihw.shape[1]
    w = jnp.transpose(w_oihw, (2, 3, 1, 0))                  # (dy, dx, Cin, Cout)
    xi = jnp.arange(W)[:, None]                              # input column
    xo = jnp.arange(W)[None, :]                              # output column
    dx = xi - xo + 1                                         # tap index, (W, W)
    valid = (dx >= 0) & (dx <= 2)
    wg = w[:, jnp.clip(dx, 0, 2), :, :]                      # (3, Wi, Wo, Cin, Cout)
    wg = jnp.where(valid[None, :, :, None, None], wg, 0.0)
    b = jnp.transpose(wg, (0, 1, 3, 2, 4))                   # (3, Wi, Cin, Wo, Cout)
    b = b.reshape(3, W * Cin, W * Cout).astype(dtype)
    return b[0], b[1], b[2]


def _fold_bn_from_input(x_nhwc, gamma, beta, W):
    """Training-mode BatchNorm2d stats (biased var, two-pass) folded into
    lane-dense per-(w, c) scale/shift rows of shape (1, W*C)."""
    m = jnp.mean(x_nhwc, axis=(0, 1, 2))
    v = jnp.mean(jnp.square(x_nhwc - m), axis=(0, 1, 2))
    a = gamma * lax.rsqrt(v + _EPS)
    b = beta - m * a
    return jnp.tile(a, W)[None, :], jnp.tile(b, W)[None, :]


def _pick_images_per_block(N, H, max_rows=256, min_rows=128):
    """Pick nb | N so the matmul M dimension nb*H fills the MXU; prefer keeping
    >= 2 grid steps (v7x megacore) when a smaller block still fills it."""
    divs = [d for d in range(1, N + 1) if N % d == 0]
    cands = [d for d in divs if d * H <= max_rows] or [1]
    nb = max(cands)
    filling = [d for d in cands if N // d >= 2 and d * H >= min_rows]
    if N // nb < 2 and filling:
        nb = max(filling)
    return nb


def _vmem_limit_bytes(nb, H, WC, WCo):
    """Explicit scoped-VMEM budget derived from the actual blocks (clamped to
    v7x's 64 MiB physical VMEM)."""
    f32, bf16 = 4, 2
    rows = nb * H
    blocks = (
        2 * rows * WC * f32            # x block (double-buffered, f32)
        + 2 * rows * WCo * bf16        # y1 block (double-buffered, bf16)
        + 2 * rows * WCo * f32         # final output block
        + 3 * WC * WCo * bf16          # B_top/B_mid/B_bot (single-buffered)
        + 10 * max(WC, WCo) * f32      # scale/shift/bias rows + stat outputs
    )
    live = 6 * rows * max(WC, WCo) * f32   # in-kernel temporaries headroom
    est = 2 * (blocks + live)
    return int(min(64 << 20, max(16 << 20, est)))


@jax.jit
def residual_block(x_nchw, params):
    (gamma1, beta1, v1, g1, gamma2, beta2, v2, g2, bias2) = params
    N, C, H, W = x_nchw.shape
    Cout = v1.shape[0]
    assert Cout == C, "residual add requires out_channels == in_channels"
    WC, WCo = W * C, W * Cout

    w1 = _weight_norm(v1, g1)                                  # (Cout, Cin, 3, 3)
    w2 = _weight_norm(v2, g2)                                  # (Cout, Cout, 3, 3)
    bt1, bm1, bb1 = _banded_conv_mats(w1, W, jnp.bfloat16)     # (W*C,   W*Cout) each
    bt2, bm2, bb2 = _banded_conv_mats(w2, W, jnp.bfloat16)     # (W*Cout, W*Cout) each

    x_nhwc = jnp.transpose(x_nchw, (0, 2, 3, 1)).astype(jnp.float32)
    x2d = x_nhwc.reshape(N, H, WC)                             # lane-dense activations

    a1, b1 = _fold_bn_from_input(x_nhwc, gamma1, beta1, W)

    nb = _pick_images_per_block(N, H)
    G = N // nb
    grid = (G,)

    def act_spec(wc):
        return pl.BlockSpec((nb, H, wc), lambda g: (g, 0, 0))

    def vec_spec(wc):
        return pl.BlockSpec((1, wc), lambda g: (0, 0))

    def mat_spec(k, n):
        # Constant index_map -> single-buffer the resident weight matrix.
        return pl.BlockSpec((k, n), lambda g: (0, 0), pipeline_mode=pl.Buffered(1))

    def stat_spec(wc):
        return pl.BlockSpec((1, 1, wc), lambda g: (g, 0, 0))

    cparams = pltpu.CompilerParams(
        dimension_semantics=("parallel",),
        vmem_limit_bytes=_vmem_limit_bytes(nb, H, WC, WCo),
    )

    # ---- pass 1: in_norm -> ReLU -> in_conv (+ BN2 partial sums) ----------
    y1, s1, s2 = pl.pallas_call(
        _block_a_kernel,
        grid=grid,
        out_shape=(
            jax.ShapeDtypeStruct((N, H, WCo), jnp.bfloat16),   # y1 intermediate in bf16
            jax.ShapeDtypeStruct((G, 1, WCo), jnp.float32),    # per-block sum
            jax.ShapeDtypeStruct((G, 1, WCo), jnp.float32),    # per-block sum of squares
        ),
        in_specs=[act_spec(WC), vec_spec(WC), vec_spec(WC),
                  mat_spec(WC, WCo), mat_spec(WC, WCo), mat_spec(WC, WCo)],
        out_specs=(act_spec(WCo), stat_spec(WCo), stat_spec(WCo)),
        compiler_params=cparams,
    )(x2d, a1, b1, bt1, bm1, bb1)

    # Finish BN2 batch statistics from the kernel-emitted partials (tiny XLA
    # reduce; avoids re-reading the full y1 from HBM).  f32 accumulation,
    # clamped against E[x^2]-m^2 cancellation.
    cnt = float(N * H * W)
    sum_c = jnp.sum(s1.reshape(G, W, Cout), axis=(0, 1))
    sq_c = jnp.sum(s2.reshape(G, W, Cout), axis=(0, 1))
    m2 = sum_c / cnt
    var2 = jnp.maximum(sq_c / cnt - m2 * m2, 0.0)
    a2c = gamma2 * lax.rsqrt(var2 + _EPS)
    b2c = beta2 - m2 * a2c
    a2 = jnp.tile(a2c, W)[None, :]
    b2 = jnp.tile(b2c, W)[None, :]
    bias2_row = jnp.tile(bias2, W)[None, :].astype(jnp.float32)

    # ---- pass 2: out_norm -> ReLU -> out_conv (+bias) -> + skip -----------
    out = pl.pallas_call(
        _block_b_kernel,
        grid=grid,
        out_shape=jax.ShapeDtypeStruct((N, H, WCo), jnp.float32),
        in_specs=[act_spec(WCo), act_spec(WC),
                  vec_spec(WCo), vec_spec(WCo),
                  mat_spec(WCo, WCo), mat_spec(WCo, WCo), mat_spec(WCo, WCo),
                  vec_spec(WCo)],
        out_specs=act_spec(WCo),
        compiler_params=cparams,
    )(y1, x2d, a2, b2, bt2, bm2, bb2, bias2_row)

    return jnp.transpose(out.reshape(N, H, W, Cout), (0, 3, 1, 2))   # -> NCHW


# ---------------------------------------------------------------------------
# Pure-JAX reference (no Pallas, f32 HIGHEST precision) for correctness check.
# ---------------------------------------------------------------------------

def reference(x_nchw, params):
    (gamma1, beta1, v1, g1, gamma2, beta2, v2, g2, bias2) = params
    w1 = _weight_norm(v1, g1)
    w2 = _weight_norm(v2, g2)
    x = jnp.transpose(x_nchw, (0, 2, 3, 1)).astype(jnp.float32)

    def bn(h, gamma, beta):
        m = jnp.mean(h, axis=(0, 1, 2), keepdims=True)
        v = jnp.mean((h - m) ** 2, axis=(0, 1, 2), keepdims=True)
        return (h - m) / jnp.sqrt(v + _EPS) * gamma + beta

    def conv(h, w_oihw):
        w = jnp.transpose(w_oihw, (2, 3, 1, 0))  # HWIO
        return lax.conv_general_dilated(
            h, w, (1, 1), 'SAME',
            dimension_numbers=('NHWC', 'HWIO', 'NHWC'),
            precision=lax.Precision.HIGHEST)

    h = jax.nn.relu(bn(x, gamma1, beta1))
    h = conv(h, w1)
    h = jax.nn.relu(bn(h, gamma2, beta2))
    h = conv(h, w2) + bias2
    return jnp.transpose(h + x, (0, 3, 1, 2))


if __name__ == "__main__":
    N, C, H, W = 2, 4, 16, 16
    Cout = C  # ResidualBlock skip-add implies out_channels == in_channels

    key = jax.random.PRNGKey(0)
    ks = jax.random.split(key, 10)
    x = jax.random.normal(ks[0], (N, C, H, W), jnp.float32)
    params = (
        jax.random.uniform(ks[1], (C,), jnp.float32, 0.5, 1.5),           # BN1 gamma
        jax.random.normal(ks[2], (C,), jnp.float32) * 0.1,                # BN1 beta
        jax.random.normal(ks[3], (Cout, C, 3, 3), jnp.float32) * 0.2,     # conv1 v
        jax.random.uniform(ks[4], (Cout,), jnp.float32, 0.5, 1.5),        # conv1 g
        jax.random.uniform(ks[5], (Cout,), jnp.float32, 0.5, 1.5),        # BN2 gamma
        jax.random.normal(ks[6], (Cout,), jnp.float32) * 0.1,             # BN2 beta
        jax.random.normal(ks[7], (Cout, Cout, 3, 3), jnp.float32) * 0.2,  # conv2 v
        jax.random.uniform(ks[8], (Cout,), jnp.float32, 0.5, 1.5),        # conv2 g
        jax.random.normal(ks[9], (Cout,), jnp.float32) * 0.1,             # conv2 bias
    )

    out = jax.block_until_ready(residual_block(x, params))
    ref = reference(x, params)

    assert out.shape == (N, C, H, W)
    max_err = float(jnp.max(jnp.abs(out - ref)))
    # bf16 MXU operands + bf16 y1 intermediate vs. an f32 HIGHEST reference:
    # tolerance loosened accordingly (see perf-review correctness note).
    if not bool(jnp.allclose(out, ref, atol=5e-2, rtol=5e-2)):
        raise SystemExit(f"mismatch vs reference: max abs err {max_err}")
    print("KERNEL_OK")
</pallas_src>

<mosaic_0001>
module attributes {stable_mosaic.version = 11 : i64} {
  func.func @_block_a_kernel(%arg0: i32, %arg1: memref<2x16x64xf32, #tpu.memory_space<vmem>>, %arg2: memref<1x64xf32, #tpu.memory_space<vmem>>, %arg3: memref<1x64xf32, #tpu.memory_space<vmem>>, %arg4: memref<64x64xbf16, #tpu.memory_space<vmem>>, %arg5: memref<64x64xbf16, #tpu.memory_space<vmem>>, %arg6: memref<64x64xbf16, #tpu.memory_space<vmem>>, %arg7: memref<2x16x64xbf16, #tpu.memory_space<vmem>>, %arg8: memref<1x1x64xf32, #tpu.memory_space<vmem>>, %arg9: memref<1x1x64xf32, #tpu.memory_space<vmem>>) attributes {dimension_semantics = [#tpu.dimension_semantics<parallel>], iteration_bounds = array<i64: 1>, scalar_prefetch = 0 : i64, scratch_operands = 0 : i64, tpu.core_type = #tpu.core_type<tc>, window_params = [{transform_indices = @transform_0, window_bounds = array<i64: 2, 16, 64>}, {pipeline_mode = #tpu.pipeline_mode<synchronous>, transform_indices = @transform_1, window_bounds = array<i64: 1, 64>}, {pipeline_mode = #tpu.pipeline_mode<synchronous>, transform_indices = @transform_2, window_bounds = array<i64: 1, 64>}, {pipeline_mode = #tpu.pipeline_mode<synchronous>, transform_indices = @transform_3, window_bounds = array<i64: 64, 64>}, {pipeline_mode = #tpu.pipeline_mode<synchronous>, transform_indices = @transform_4, window_bounds = array<i64: 64, 64>}, {pipeline_mode = #tpu.pipeline_mode<synchronous>, transform_indices = @transform_5, window_bounds = array<i64: 64, 64>}, {transform_indices = @transform_6, window_bounds = array<i64: 2, 16, 64>}, {transform_indices = @transform_7, window_bounds = array<i64: 1, 1, 64>}, {transform_indices = @transform_8, window_bounds = array<i64: 1, 1, 64>}]} {
    %c0 = arith.constant 0 : index
    %c0_0 = arith.constant 0 : index
    %c0_1 = arith.constant 0 : index
    %0 = vector.load %arg1[%c0, %c0_0, %c0_1] : memref<2x16x64xf32, #tpu.memory_space<vmem>>, vector<2x16x64xf32>
    %1 = vector.shape_cast %0 : vector<2x16x64xf32> to vector<32x64xf32>
    %c0_2 = arith.constant 0 : index
    %c0_3 = arith.constant 0 : index
    %2 = vector.load %arg2[%c0_2, %c0_3] : memref<1x64xf32, #tpu.memory_space<vmem>>, vector<1x64xf32>
    %3 = vector.broadcast %2 : vector<1x64xf32> to vector<32x64xf32>
    %4 = arith.mulf %1, %3 : vector<32x64xf32>
    %c0_4 = arith.constant 0 : index
    %c0_5 = arith.constant 0 : index
    %5 = vector.load %arg3[%c0_4, %c0_5] : memref<1x64xf32, #tpu.memory_space<vmem>>, vector<1x64xf32>
    %6 = vector.broadcast %5 : vector<1x64xf32> to vector<32x64xf32>
    %7 = arith.addf %4, %6 : vector<32x64xf32>
    %cst = arith.constant 0.000000e+00 : f32
    %8 = vector.broadcast %cst : f32 to vector<32x64xf32>
    %9 = arith.maximumf %7, %8 : vector<32x64xf32>
    %10 = tpu.iota {dimensions = array<i32: 0>} : vector<32x1xi32>
    %c16_i32 = arith.constant 16 : i32
    %c0_i32 = arith.constant 0 : i32
    %11 = arith.cmpi eq, %c16_i32, %c0_i32 : i32
    %c1_i32 = arith.constant 1 : i32
    %12 = arith.select %11, %c1_i32, %c16_i32 : i32
    %13 = vector.broadcast %12 : i32 to vector<32x1xi32>
    %14 = arith.remsi %10, %13 : vector<32x1xi32>
    %c0_i32_6 = arith.constant 0 : i32
    %15 = vector.broadcast %c0_i32_6 : i32 to vector<32x1xi32>
    %16 = arith.cmpi ne, %14, %15 : vector<32x1xi32>
    %c0_i32_7 = arith.constant 0 : i32
    %17 = vector.broadcast %c0_i32_7 : i32 to vector<32x1xi32>
    %18 = arith.cmpi slt, %14, %17 : vector<32x1xi32>
    %c0_i32_8 = arith.constant 0 : i32
    %19 = arith.cmpi slt, %12, %c0_i32_8 : i32
    %20 = vector.broadcast %19 : i1 to vector<32x1xi1>
    %21 = vector.broadcast %20 : vector<32x1xi1> to vector<32x1xi1>
    %22 = arith.xori %18, %21 : vector<32x1xi1>
    %23 = arith.andi %22, %16 : vector<32x1xi1>
    %24 = vector.broadcast %12 : i32 to vector<32x1xi32>
    %25 = arith.addi %14, %24 : vector<32x1xi32>
    %26 = arith.select %23, %25, %14 : vector<32x1xi1>, vector<32x1xi32>
    %c0_i32_9 = arith.constant 0 : i32
    %27 = vector.broadcast %c0_i32_9 : i32 to vector<32x1xi32>
    %28 = arith.cmpi eq, %26, %27 : vector<32x1xi32>
    %c1_i32_10 = arith.constant 1 : i32
    %29 = tpu.dynamic_rotate %9 by %c1_i32_10 dim 0 : vector<32x64xf32>, i32 -> vector<32x64xf32>
    %cst_11 = arith.constant 0.000000e+00 : f32
    %30 = vector.shape_cast %28 : vector<32x1xi1> to vector<32x1xi1>
    %31 = vector.broadcast %30 : vector<32x1xi1> to vector<32x64xi1>
    %32 = vector.broadcast %cst_11 : f32 to vector<32x64xf32>
    %33 = arith.select %31, %32, %29 : vector<32x64xi1>, vector<32x64xf32>
    %c16_i32_12 = arith.constant 16 : i32
    %c0_i32_13 = arith.constant 0 : i32
    %34 = arith.cmpi eq, %c16_i32_12, %c0_i32_13 : i32
    %c1_i32_14 = arith.constant 1 : i32
    %35 = arith.select %34, %c1_i32_14, %c16_i32_12 : i32
    %36 = vector.broadcast %35 : i32 to vector<32x1xi32>
    %37 = arith.remsi %10, %36 : vector<32x1xi32>
    %c0_i32_15 = arith.constant 0 : i32
    %38 = vector.broadcast %c0_i32_15 : i32 to vector<32x1xi32>
    %39 = arith.cmpi ne, %37, %38 : vector<32x1xi32>
    %c0_i32_16 = arith.constant 0 : i32
    %40 = vector.broadcast %c0_i32_16 : i32 to vector<32x1xi32>
    %41 = arith.cmpi slt, %37, %40 : vector<32x1xi32>
    %c0_i32_17 = arith.constant 0 : i32
    %42 = arith.cmpi slt, %35, %c0_i32_17 : i32
    %43 = vector.broadcast %42 : i1 to vector<32x1xi1>
    %44 = vector.broadcast %43 : vector<32x1xi1> to vector<32x1xi1>
    %45 = arith.xori %41, %44 : vector<32x1xi1>
    %46 = arith.andi %45, %39 : vector<32x1xi1>
    %47 = vector.broadcast %35 : i32 to vector<32x1xi32>
    %48 = arith.addi %37, %47 : vector<32x1xi32>
    %49 = arith.select %46, %48, %37 : vector<32x1xi1>, vector<32x1xi32>
    %c15_i32 = arith.constant 15 : i32
    %50 = vector.broadcast %c15_i32 : i32 to vector<32x1xi32>
    %51 = arith.cmpi eq, %49, %50 : vector<32x1xi32>
    %c31_i32 = arith.constant 31 : i32
    %52 = tpu.dynamic_rotate %9 by %c31_i32 dim 0 : vector<32x64xf32>, i32 -> vector<32x64xf32>
    %cst_18 = arith.constant 0.000000e+00 : f32
    %53 = vector.shape_cast %51 : vector<32x1xi1> to vector<32x1xi1>
    %54 = vector.broadcast %53 : vector<32x1xi1> to vector<32x64xi1>
    %55 = vector.broadcast %cst_18 : f32 to vector<32x64xf32>
    %56 = arith.select %54, %55, %52 : vector<32x64xi1>, vector<32x64xf32>
    %57 = arith.truncf %9 : vector<32x64xf32> to vector<32x64xbf16>
    %c0_19 = arith.constant 0 : index
    %c0_20 = arith.constant 0 : index
    %58 = vector.load %arg5[%c0_19, %c0_20] : memref<64x64xbf16, #tpu.memory_space<vmem>>, vector<64x64xbf16>
    %cst_21 = arith.constant dense<0.000000e+00> : vector<32x64xf32>
    %59 = tpu.matmul %57, %58, %cst_21 {dimension_numbers = #tpu.dot_dimension_numbers<[1], [0], [0], [1], [0, 0, 1, 1], [], []>} : vector<32x64xbf16>, vector<64x64xbf16>, vector<32x64xf32> -> vector<32x64xf32>
    %60 = arith.truncf %33 : vector<32x64xf32> to vector<32x64xbf16>
    %c0_22 = arith.constant 0 : index
    %c0_23 = arith.constant 0 : index
    %61 = vector.load %arg4[%c0_22, %c0_23] : memref<64x64xbf16, #tpu.memory_space<vmem>>, vector<64x64xbf16>
    %cst_24 = arith.constant dense<0.000000e+00> : vector<32x64xf32>
    %62 = tpu.matmul %60, %61, %cst_24 {dimension_numbers = #tpu.dot_dimension_numbers<[1], [0], [0], [1], [0, 0, 1, 1], [], []>} : vector<32x64xbf16>, vector<64x64xbf16>, vector<32x64xf32> -> vector<32x64xf32>
    %63 = arith.addf %59, %62 : vector<32x64xf32>
    %64 = arith.truncf %56 : vector<32x64xf32> to vector<32x64xbf16>
    %c0_25 = arith.constant 0 : index
    %c0_26 = arith.constant 0 : index
    %65 = vector.load %arg6[%c0_25, %c0_26] : memref<64x64xbf16, #tpu.memory_space<vmem>>, vector<64x64xbf16>
    %cst_27 = arith.constant dense<0.000000e+00> : vector<32x64xf32>
    %66 = tpu.matmul %64, %65, %cst_27 {dimension_numbers = #tpu.dot_dimension_numbers<[1], [0], [0], [1], [0, 0, 1, 1], [], []>} : vector<32x64xbf16>, vector<64x64xbf16>, vector<32x64xf32> -> vector<32x64xf32>
    %67 = arith.addf %63, %66 : vector<32x64xf32>
    %68 = vector.shape_cast %67 : vector<32x64xf32> to vector<2x16x64xf32>
    %69 = arith.truncf %68 : vector<2x16x64xf32> to vector<2x16x64xbf16>
    %c0_28 = arith.constant 0 : index
    %c0_29 = arith.constant 0 : index
    %c0_30 = arith.constant 0 : index
    %70 = vector.load %arg7[%c0_28, %c0_29, %c0_30] : memref<2x16x64xbf16, #tpu.memory_space<vmem>>, vector<2x16x64xbf16>
    tpu.vector_store %arg7[%c0_28, %c0_29, %c0_30], %69 {strides = array<i32>} : memref<2x16x64xbf16, #tpu.memory_space<vmem>>, vector<2x16x64xbf16>,
    %cst_31 = arith.constant dense<0.000000e+00> : vector<64xf32>
    %71 = vector.multi_reduction <add>, %67, %cst_31 [0] : vector<32x64xf32> to vector<64xf32>
    %72 = vector.shape_cast %71 : vector<64xf32> to vector<1x64xf32>
    %c0_32 = arith.constant 0 : index
    %c0_33 = arith.constant 0 : index
    %c0_34 = arith.constant 0 : index
    %73 = vector.load %arg8[%c0_32, %c0_33, %c0_34] : memref<1x1x64xf32, #tpu.memory_space<vmem>>, vector<1x1x64xf32>
    %74 = vector.shape_cast %73 : vector<1x1x64xf32> to vector<1x64xf32>
    %75 = vector.shape_cast %72 : vector<1x64xf32> to vector<1x1x64xf32>
    tpu.vector_store %arg8[%c0_32, %c0_33, %c0_34], %75 {strides = array<i32>} : memref<1x1x64xf32, #tpu.memory_space<vmem>>, vector<1x1x64xf32>,
    %76 = arith.mulf %67, %67 : vector<32x64xf32>
    %cst_35 = arith.constant dense<0.000000e+00> : vector<64xf32>
    %77 = vector.multi_reduction <add>, %76, %cst_35 [0] : vector<32x64xf32> to vector<64xf32>
    %78 = vector.shape_cast %77 : vector<64xf32> to vector<1x64xf32>
    %c0_36 = arith.constant 0 : index
    %c0_37 = arith.constant 0 : index
    %c0_38 = arith.constant 0 : index
    %79 = vector.load %arg9[%c0_36, %c0_37, %c0_38] : memref<1x1x64xf32, #tpu.memory_space<vmem>>, vector<1x1x64xf32>
    %80 = vector.shape_cast %79 : vector<1x1x64xf32> to vector<1x64xf32>
    %81 = vector.shape_cast %78 : vector<1x64xf32> to vector<1x1x64xf32>
    tpu.vector_store %arg9[%c0_36, %c0_37, %c0_38], %81 {strides = array<i32>} : memref<1x1x64xf32, #tpu.memory_space<vmem>>, vector<1x1x64xf32>,
    return
  }
  func.func @transform_0(%arg0: i32) -> (i32, i32, i32) {
    %c0_i32 = arith.constant 0 : i32
    %c0_i32_0 = arith.constant 0 : i32
    %c0_i32_1 = arith.constant 0 : i32
    return %arg0, %c0_i32, %c0_i32_0 : i32, i32, i32
  }
  func.func @transform_1(%arg0: i32) -> (i32, i32) {
    %c0_i32 = arith.constant 0 : i32
    %c0_i32_0 = arith.constant 0 : i32
    %c0_i32_1 = arith.constant 0 : i32
    return %c0_i32, %c0_i32_0 : i32, i32
  }
  func.func @transform_2(%arg0: i32) -> (i32, i32) {
    %c0_i32 = arith.constant 0 : i32
    %c0_i32_0 = arith.constant 0 : i32
    %c0_i32_1 = arith.constant 0 : i32
    return %c0_i32, %c0_i32_0 : i32, i32
  }
  func.func @transform_3(%arg0: i32) -> (i32, i32) {
    %c0_i32 = arith.constant 0 : i32
    %c0_i32_0 = arith.constant 0 : i32
    %c0_i32_1 = arith.constant 0 : i32
    return %c0_i32, %c0_i32_0 : i32, i32
  }
  func.func @transform_4(%arg0: i32) -> (i32, i32) {
    %c0_i32 = arith.constant 0 : i32
    %c0_i32_0 = arith.constant 0 : i32
    %c0_i32_1 = arith.constant 0 : i32
    return %c0_i32, %c0_i32_0 : i32, i32
  }
  func.func @transform_5(%arg0: i32) -> (i32, i32) {
    %c0_i32 = arith.constant 0 : i32
    %c0_i32_0 = arith.constant 0 : i32
    %c0_i32_1 = arith.constant 0 : i32
    return %c0_i32, %c0_i32_0 : i32, i32
  }
  func.func @transform_6(%arg0: i32) -> (i32, i32, i32) {
    %c0_i32 = arith.constant 0 : i32
    %c0_i32_0 = arith.constant 0 : i32
    %c0_i32_1 = arith.constant 0 : i32
    return %arg0, %c0_i32, %c0_i32_0 : i32, i32, i32
  }
  func.func @transform_7(%arg0: i32) -> (i32, i32, i32) {
    %c0_i32 = arith.constant 0 : i32
    %c0_i32_0 = arith.constant 0 : i32
    %c0_i32_1 = arith.constant 0 : i32
    return %arg0, %c0_i32, %c0_i32_0 : i32, i32, i32
  }
  func.func @transform_8(%arg0: i32) -> (i32, i32, i32) {
    %c0_i32 = arith.constant 0 : i32
    %c0_i32_0 = arith.constant 0 : i32
    %c0_i32_1 = arith.constant 0 : i32
    return %arg0, %c0_i32, %c0_i32_0 : i32, i32, i32
  }
}

module attributes {stable_mosaic.version = 11 : i64} {
  func.func @_block_b_kernel(%arg0: i32, %arg1: memref<2x16x64xbf16, #tpu.memory_space<vmem>>, %arg2: memref<2x16x64xf32, #tpu.memory_space<vmem>>, %arg3: memref<1x64xf32, #tpu.memory_space<vmem>>, %arg4: memref<1x64xf32, #tpu.memory_space<vmem>>, %arg5: memref<64x64xbf16, #tpu.memory_space<vmem>>, %arg6: memref<64x64xbf16, #tpu.memory_space<vmem>>, %arg7: memref<64x64xbf16, #tpu.memory_space<vmem>>, %arg8: memref<1x64xf32, #tpu.memory_space<vmem>>, %arg9: memref<2x16x64xf32, #tpu.memory_space<vmem>>) attributes {dimension_semantics = [#tpu.dimension_semantics<parallel>], iteration_bounds = array<i64: 1>, scalar_prefetch = 0 : i64, scratch_operands = 0 : i64, tpu.core_type = #tpu.core_type<tc>, window_params = [{transform_indices = @transform_0, window_bounds = array<i64: 2, 16, 64>}, {transform_indices = @transform_1, window_bounds = array<i64: 2, 16, 64>}, {pipeline_mode = #tpu.pipeline_mode<synchronous>, transform_indices = @transform_2, window_bounds = array<i64: 1, 64>}, {pipeline_mode = #tpu.pipeline_mode<synchronous>, transform_indices = @transform_3, window_bounds = array<i64: 1, 64>}, {pipeline_mode = #tpu.pipeline_mode<synchronous>, transform_indices = @transform_4, window_bounds = array<i64: 64, 64>}, {pipeline_mode = #tpu.pipeline_mode<synchronous>, transform_indices = @transform_5, window_bounds = array<i64: 64, 64>}, {pipeline_mode = #tpu.pipeline_mode<synchronous>, transform_indices = @transform_6, window_bounds = array<i64: 64, 64>}, {pipeline_mode = #tpu.pipeline_mode<synchronous>, transform_indices = @transform_7, window_bounds = array<i64: 1, 64>}, {transform_indices = @transform_8, window_bounds = array<i64: 2, 16, 64>}]} {
    %c0 = arith.constant 0 : index
    %c0_0 = arith.constant 0 : index
    %c0_1 = arith.constant 0 : index
    %0 = vector.load %arg1[%c0, %c0_0, %c0_1] : memref<2x16x64xbf16, #tpu.memory_space<vmem>>, vector<2x16x64xbf16>
    %1 = vector.shape_cast %0 : vector<2x16x64xbf16> to vector<32x64xbf16>
    %2 = arith.extf %1 : vector<32x64xbf16> to vector<32x64xf32>
    %c0_2 = arith.constant 0 : index
    %c0_3 = arith.constant 0 : index
    %3 = vector.load %arg3[%c0_2, %c0_3] : memref<1x64xf32, #tpu.memory_space<vmem>>, vector<1x64xf32>
    %4 = vector.broadcast %3 : vector<1x64xf32> to vector<32x64xf32>
    %5 = arith.mulf %2, %4 : vector<32x64xf32>
    %c0_4 = arith.constant 0 : index
    %c0_5 = arith.constant 0 : index
    %6 = vector.load %arg4[%c0_4, %c0_5] : memref<1x64xf32, #tpu.memory_space<vmem>>, vector<1x64xf32>
    %7 = vector.broadcast %6 : vector<1x64xf32> to vector<32x64xf32>
    %8 = arith.addf %5, %7 : vector<32x64xf32>
    %cst = arith.constant 0.000000e+00 : f32
    %9 = vector.broadcast %cst : f32 to vector<32x64xf32>
    %10 = arith.maximumf %8, %9 : vector<32x64xf32>
    %11 = tpu.iota {dimensions = array<i32: 0>} : vector<32x1xi32>
    %c16_i32 = arith.constant 16 : i32
    %c0_i32 = arith.constant 0 : i32
    %12 = arith.cmpi eq, %c16_i32, %c0_i32 : i32
    %c1_i32 = arith.constant 1 : i32
    %13 = arith.select %12, %c1_i32, %c16_i32 : i32
    %14 = vector.broadcast %13 : i32 to vector<32x1xi32>
    %15 = arith.remsi %11, %14 : vector<32x1xi32>
    %c0_i32_6 = arith.constant 0 : i32
    %16 = vector.broadcast %c0_i32_6 : i32 to vector<32x1xi32>
    %17 = arith.cmpi ne, %15, %16 : vector<32x1xi32>
    %c0_i32_7 = arith.constant 0 : i32
    %18 = vector.broadcast %c0_i32_7 : i32 to vector<32x1xi32>
    %19 = arith.cmpi slt, %15, %18 : vector<32x1xi32>
    %c0_i32_8 = arith.constant 0 : i32
    %20 = arith.cmpi slt, %13, %c0_i32_8 : i32
    %21 = vector.broadcast %20 : i1 to vector<32x1xi1>
    %22 = vector.broadcast %21 : vector<32x1xi1> to vector<32x1xi1>
    %23 = arith.xori %19, %22 : vector<32x1xi1>
    %24 = arith.andi %23, %17 : vector<32x1xi1>
    %25 = vector.broadcast %13 : i32 to vector<32x1xi32>
    %26 = arith.addi %15, %25 : vector<32x1xi32>
    %27 = arith.select %24, %26, %15 : vector<32x1xi1>, vector<32x1xi32>
    %c0_i32_9 = arith.constant 0 : i32
    %28 = vector.broadcast %c0_i32_9 : i32 to vector<32x1xi32>
    %29 = arith.cmpi eq, %27, %28 : vector<32x1xi32>
    %c1_i32_10 = arith.constant 1 : i32
    %30 = tpu.dynamic_rotate %10 by %c1_i32_10 dim 0 : vector<32x64xf32>, i32 -> vector<32x64xf32>
    %cst_11 = arith.constant 0.000000e+00 : f32
    %31 = vector.shape_cast %29 : vector<32x1xi1> to vector<32x1xi1>
    %32 = vector.broadcast %31 : vector<32x1xi1> to vector<32x64xi1>
    %33 = vector.broadcast %cst_11 : f32 to vector<32x64xf32>
    %34 = arith.select %32, %33, %30 : vector<32x64xi1>, vector<32x64xf32>
    %c16_i32_12 = arith.constant 16 : i32
    %c0_i32_13 = arith.constant 0 : i32
    %35 = arith.cmpi eq, %c16_i32_12, %c0_i32_13 : i32
    %c1_i32_14 = arith.constant 1 : i32
    %36 = arith.select %35, %c1_i32_14, %c16_i32_12 : i32
    %37 = vector.broadcast %36 : i32 to vector<32x1xi32>
    %38 = arith.remsi %11, %37 : vector<32x1xi32>
    %c0_i32_15 = arith.constant 0 : i32
    %39 = vector.broadcast %c0_i32_15 : i32 to vector<32x1xi32>
    %40 = arith.cmpi ne, %38, %39 : vector<32x1xi32>
    %c0_i32_16 = arith.constant 0 : i32
    %41 = vector.broadcast %c0_i32_16 : i32 to vector<32x1xi32>
    %42 = arith.cmpi slt, %38, %41 : vector<32x1xi32>
    %c0_i32_17 = arith.constant 0 : i32
    %43 = arith.cmpi slt, %36, %c0_i32_17 : i32
    %44 = vector.broadcast %43 : i1 to vector<32x1xi1>
    %45 = vector.broadcast %44 : vector<32x1xi1> to vector<32x1xi1>
    %46 = arith.xori %42, %45 : vector<32x1xi1>
    %47 = arith.andi %46, %40 : vector<32x1xi1>
    %48 = vector.broadcast %36 : i32 to vector<32x1xi32>
    %49 = arith.addi %38, %48 : vector<32x1xi32>
    %50 = arith.select %47, %49, %38 : vector<32x1xi1>, vector<32x1xi32>
    %c15_i32 = arith.constant 15 : i32
    %51 = vector.broadcast %c15_i32 : i32 to vector<32x1xi32>
    %52 = arith.cmpi eq, %50, %51 : vector<32x1xi32>
    %c31_i32 = arith.constant 31 : i32
    %53 = tpu.dynamic_rotate %10 by %c31_i32 dim 0 : vector<32x64xf32>, i32 -> vector<32x64xf32>
    %cst_18 = arith.constant 0.000000e+00 : f32
    %54 = vector.shape_cast %52 : vector<32x1xi1> to vector<32x1xi1>
    %55 = vector.broadcast %54 : vector<32x1xi1> to vector<32x64xi1>
    %56 = vector.broadcast %cst_18 : f32 to vector<32x64xf32>
    %57 = arith.select %55, %56, %53 : vector<32x64xi1>, vector<32x64xf32>
    %58 = arith.truncf %10 : vector<32x64xf32> to vector<32x64xbf16>
    %c0_19 = arith.constant 0 : index
    %c0_20 = arith.constant 0 : index
    %59 = vector.load %arg6[%c0_19, %c0_20] : memref<64x64xbf16, #tpu.memory_space<vmem>>, vector<64x64xbf16>
    %cst_21 = arith.constant dense<0.000000e+00> : vector<32x64xf32>
    %60 = tpu.matmul %58, %59, %cst_21 {dimension_numbers = #tpu.dot_dimension_numbers<[1], [0], [0], [1], [0, 0, 1, 1], [], []>} : vector<32x64xbf16>, vector<64x64xbf16>, vector<32x64xf32> -> vector<32x64xf32>
    %61 = arith.truncf %34 : vector<32x64xf32> to vector<32x64xbf16>
    %c0_22 = arith.constant 0 : index
    %c0_23 = arith.constant 0 : index
    %62 = vector.load %arg5[%c0_22, %c0_23] : memref<64x64xbf16, #tpu.memory_space<vmem>>, vector<64x64xbf16>
    %cst_24 = arith.constant dense<0.000000e+00> : vector<32x64xf32>
    %63 = tpu.matmul %61, %62, %cst_24 {dimension_numbers = #tpu.dot_dimension_numbers<[1], [0], [0], [1], [0, 0, 1, 1], [], []>} : vector<32x64xbf16>, vector<64x64xbf16>, vector<32x64xf32> -> vector<32x64xf32>
    %64 = arith.addf %60, %63 : vector<32x64xf32>
    %65 = arith.truncf %57 : vector<32x64xf32> to vector<32x64xbf16>
    %c0_25 = arith.constant 0 : index
    %c0_26 = arith.constant 0 : index
    %66 = vector.load %arg7[%c0_25, %c0_26] : memref<64x64xbf16, #tpu.memory_space<vmem>>, vector<64x64xbf16>
    %cst_27 = arith.constant dense<0.000000e+00> : vector<32x64xf32>
    %67 = tpu.matmul %65, %66, %cst_27 {dimension_numbers = #tpu.dot_dimension_numbers<[1], [0], [0], [1], [0, 0, 1, 1], [], []>} : vector<32x64xbf16>, vector<64x64xbf16>, vector<32x64xf32> -> vector<32x64xf32>
    %68 = arith.addf %64, %67 : vector<32x64xf32>
    %c0_28 = arith.constant 0 : index
    %c0_29 = arith.constant 0 : index
    %69 = vector.load %arg8[%c0_28, %c0_29] : memref<1x64xf32, #tpu.memory_space<vmem>>, vector<1x64xf32>
    %70 = vector.broadcast %69 : vector<1x64xf32> to vector<32x64xf32>
    %71 = arith.addf %68, %70 : vector<32x64xf32>
    %72 = vector.shape_cast %71 : vector<32x64xf32> to vector<2x16x64xf32>
    %c0_30 = arith.constant 0 : index
    %c0_31 = arith.constant 0 : index
    %c0_32 = arith.constant 0 : index
    %73 = vector.load %arg2[%c0_30, %c0_31, %c0_32] : memref<2x16x64xf32, #tpu.memory_space<vmem>>, vector<2x16x64xf32>
    %74 = arith.addf %72, %73 : vector<2x16x64xf32>
    %c0_33 = arith.constant 0 : index
    %c0_34 = arith.constant 0 : index
    %c0_35 = arith.constant 0 : index
    %75 = vector.load %arg9[%c0_33, %c0_34, %c0_35] : memref<2x16x64xf32, #tpu.memory_space<vmem>>, vector<2x16x64xf32>
    tpu.vector_store %arg9[%c0_33, %c0_34, %c0_35], %74 {strides = array<i32>} : memref<2x16x64xf32, #tpu.memory_space<vmem>>, vector<2x16x64xf32>,
    return
  }
  func.func @transform_0(%arg0: i32) -> (i32, i32, i32) {
    %c0_i32 = arith.constant 0 : i32
    %c0_i32_0 = arith.constant 0 : i32
    %c0_i32_1 = arith.constant 0 : i32
    return %arg0, %c0_i32, %c0_i32_0 : i32, i32, i32
  }
  func.func @transform_1(%arg0: i32) -> (i32, i32, i32) {
    %c0_i32 = arith.constant 0 : i32
    %c0_i32_0 = arith.constant 0 : i32
    %c0_i32_1 = arith.constant 0 : i32
    return %arg0, %c0_i32, %c0_i32_0 : i32, i32, i32
  }
  func.func @transform_2(%arg0: i32) -> (i32, i32) {
    %c0_i32 = arith.constant 0 : i32
    %c0_i32_0 = arith.constant 0 : i32
    %c0_i32_1 = arith.constant 0 : i32
    return %c0_i32, %c0_i32_0 : i32, i32
  }
  func.func @transform_3(%arg0: i32) -> (i32, i32) {
    %c0_i32 = arith.constant 0 : i32
    %c0_i32_0 = arith.constant 0 : i32
    %c0_i32_1 = arith.constant 0 : i32
    return %c0_i32, %c0_i32_0 : i32, i32
  }
  func.func @transform_4(%arg0: i32) -> (i32, i32) {
    %c0_i32 = arith.constant 0 : i32
    %c0_i32_0 = arith.constant 0 : i32
    %c0_i32_1 = arith.constant 0 : i32
    return %c0_i32, %c0_i32_0 : i32, i32
  }
  func.func @transform_5(%arg0: i32) -> (i32, i32) {
    %c0_i32 = arith.constant 0 : i32
    %c0_i32_0 = arith.constant 0 : i32
    %c0_i32_1 = arith.constant 0 : i32
    return %c0_i32, %c0_i32_0 : i32, i32
  }
  func.func @transform_6(%arg0: i32) -> (i32, i32) {
    %c0_i32 = arith.constant 0 : i32
    %c0_i32_0 = arith.constant 0 : i32
    %c0_i32_1 = arith.constant 0 : i32
    return %c0_i32, %c0_i32_0 : i32, i32
  }
  func.func @transform_7(%arg0: i32) -> (i32, i32) {
    %c0_i32 = arith.constant 0 : i32
    %c0_i32_0 = arith.constant 0 : i32
    %c0_i32_1 = arith.constant 0 : i32
    return %c0_i32, %c0_i32_0 : i32, i32
  }
  func.func @transform_8(%arg0: i32) -> (i32, i32, i32) {
    %c0_i32 = arith.constant 0 : i32
    %c0_i32_0 = arith.constant 0 : i32
    %c0_i32_1 = arith.constant 0 : i32
    return %arg0, %c0_i32, %c0_i32_0 : i32, i32, i32
  }
}

</mosaic_0001>

<llo_original>
// kernel: squeeze.6
$region0: #{squeeze.6}
  %s0 = inlined_call_operand.vmem [shape: bf16[1,16,4,16,4], index: 0, kind: input, shape index: {}]
  %s1 = inlined_call_operand.vmem [shape: bf16[64,64], index: 1, kind: output, shape index: {}]
  $region1: #{squeeze.6} parent=0
    #allocation0 [shape = 'u8[32768]{0}', space=vmem, size = 0x8000, scoped, tag = 'scoped mem for output reshape']
    #allocation1 [shape = 'u8[524288]{0}', space=vmem, size = 0x80000, scoped, tag = 'scoped mem for input reshape']
    %s3 = smul.u32 4, 2
    %s4 = sshllo.u32 0, %s3
    %s5 = smul.addr 4, 127
    %s6 = scalar_lea.vmem %s0, %s5
    %s7 = sshrl.u32 %s4, 1
    %s8 = sor.u32 %s4, %s7
    %s9 = sand.u32 %s8, 85
    %s10 = sshrl.u32 %s9, 1
    %s11 = sor.u32 %s9, %s10
    %s12 = sand.u32 51, %s11
    %s13 = sshrl.u32 %s12, 2
    %s14 = sor.u32 %s12, %s13
    %s15 = sand.u32 15, %s14
    %v16 = vld [vmem:[%s6] sm:%s15]
    %v17 = vunpack.c.l.bf16 %v16
    %v18 = vunpack.c.h.bf16 %v16
    %s19 = scalar_lea.vmem [#allocation1], 1016
    %20 = vst [vmem:[%s19] sm:%s4] %v17
    %s21 = smul.addr 4, 126
    %s22 = scalar_lea.vmem %s0, %s21
    %s23 = sshrl.u32 %s4, 1
    %s24 = sor.u32 %s4, %s23
    %s25 = sand.u32 %s24, 85
    %s26 = sshrl.u32 %s25, 1
    %s27 = sor.u32 %s25, %s26
    %s28 = sand.u32 51, %s27
    %s29 = sshrl.u32 %s28, 2
    %s30 = sor.u32 %s28, %s29
    %s31 = sand.u32 15, %s30
    %v32 = vld [vmem:[%s22] sm:%s31]
    %v33 = vunpack.c.l.bf16 %v32
    %v34 = vunpack.c.h.bf16 %v32
    %s35 = scalar_lea.vmem [#allocation1], 1008
    %36 = vst [vmem:[%s35] sm:%s4] %v33
    %s37 = smul.addr 4, 125
    %s38 = scalar_lea.vmem %s0, %s37
    %s39 = sshrl.u32 %s4, 1
    %s40 = sor.u32 %s4, %s39
    %s41 = sand.u32 %s40, 85
    %s42 = sshrl.u32 %s41, 1
    %s43 = sor.u32 %s41, %s42
    %s44 = sand.u32 51, %s43
    %s45 = sshrl.u32 %s44, 2
    %s46 = sor.u32 %s44, %s45
    %s47 = sand.u32 15, %s46
    %v48 = vld [vmem:[%s38] sm:%s47]
    %v49 = vunpack.c.l.bf16 %v48
    %v50 = vunpack.c.h.bf16 %v48
    %s51 = scalar_lea.vmem [#allocation1], 1000
    %52 = vst [vmem:[%s51] sm:%s4] %v49
    %s53 = smul.addr 4, 124
    %s54 = scalar_lea.vmem %s0, %s53
    %s55 = sshrl.u32 %s4, 1
    %s56 = sor.u32 %s4, %s55
    %s57 = sand.u32 %s56, 85
    %s58 = sshrl.u32 %s57, 1
    %s59 = sor.u32 %s57, %s58
    %s60 = sand.u32 51, %s59
    %s61 = sshrl.u32 %s60, 2
    %s62 = sor.u32 %s60, %s61
    %s63 = sand.u32 15, %s62
    %v64 = vld [vmem:[%s54] sm:%s63]
    %v65 = vunpack.c.l.bf16 %v64
    %v66 = vunpack.c.h.bf16 %v64
    %s67 = scalar_lea.vmem [#allocation1], 992
    %68 = vst [vmem:[%s67] sm:%s4] %v65
    %s69 = smul.addr 4, 123
    %s70 = scalar_lea.vmem %s0, %s69
    %s71 = sshrl.u32 %s4, 1
    %s72 = sor.u32 %s4, %s71
    %s73 = sand.u32 %s72, 85
    %s74 = sshrl.u32 %s73, 1
    %s75 = sor.u32 %s73, %s74
    %s76 = sand.u32 51, %s75
    %s77 = sshrl.u32 %s76, 2
    %s78 = sor.u32 %s76, %s77
    %s79 = sand.u32 15, %s78
    %v80 = vld [vmem:[%s70] sm:%s79]
    %v81 = vunpack.c.l.bf16 %v80
    %v82 = vunpack.c.h.bf16 %v80
    %s83 = scalar_lea.vmem [#allocation1], 984
    %84 = vst [vmem:[%s83] sm:%s4] %v81
    %s85 = smul.addr 4, 122
    %s86 = scalar_lea.vmem %s0, %s85
    %s87 = sshrl.u32 %s4, 1
    %s88 = sor.u32 %s4, %s87
    %s89 = sand.u32 %s88, 85
    %s90 = sshrl.u32 %s89, 1
    %s91 = sor.u32 %s89, %s90
    %s92 = sand.u32 51, %s91
    %s93 = sshrl.u32 %s92, 2
    %s94 = sor.u32 %s92, %s93
    %s95 = sand.u32 15, %s94
    %v96 = vld [vmem:[%s86] sm:%s95]
    %v97 = vunpack.c.l.bf16 %v96
    %v98 = vunpack.c.h.bf16 %v96
    %s99 = scalar_lea.vmem [#allocation1], 976
    %100 = vst [vmem:[%s99] sm:%s4] %v97
    %s101 = smul.addr 4, 121
    %s102 = scalar_lea.vmem %s0, %s101
    %s103 = sshrl.u32 %s4, 1
    %s104 = sor.u32 %s4, %s103
    %s105 = sand.u32 %s104, 85
    %s106 = sshrl.u32 %s105, 1
    %s107 = sor.u32 %s105, %s106
    %s108 = sand.u32 51, %s107
    %s109 = sshrl.u32 %s108, 2
    %s110 = sor.u32 %s108, %s109
    %s111 = sand.u32 15, %s110
    %v112 = vld [vmem:[%s102] sm:%s111]
    %v113 = vunpack.c.l.bf16 %v112
    %v114 = vunpack.c.h.bf16 %v112
    %s115 = scalar_lea.vmem [#allocation1], 968
    %116 = vst [vmem:[%s115] sm:%s4] %v113
    %s117 = smul.addr 4, 120
    %s118 = scalar_lea.vmem %s0, %s117
    %s119 = sshrl.u32 %s4, 1
    %s120 = sor.u32 %s4, %s119
    %s121 = sand.u32 %s120, 85
    %s122 = sshrl.u32 %s121, 1
    %s123 = sor.u32 %s121, %s122
    %s124 = sand.u32 51, %s123
    %s125 = sshrl.u32 %s124, 2
    %s126 = sor.u32 %s124, %s125
    %s127 = sand.u32 15, %s126
    %v128 = vld [vmem:[%s118] sm:%s127]
    %v129 = vunpack.c.l.bf16 %v128
    %v130 = vunpack.c.h.bf16 %v128
    %s131 = scalar_lea.vmem [#allocation1], 960
    %132 = vst [vmem:[%s131] sm:%s4] %v129
    %s133 = smul.addr 4, 119
    %s134 = scalar_lea.vmem %s0, %s133
    %s135 = sshrl.u32 %s4, 1
    %s136 = sor.u32 %s4, %s135
    %s137 = sand.u32 %s136, 85
    %s138 = sshrl.u32 %s137, 1
    %s139 = sor.u32 %s137, %s138
    %s140 = sand.u32 51, %s139
    %s141 = sshrl.u32 %s140, 2
    %s142 = sor.u32 %s140, %s141
    %s143 = sand.u32 15, %s142
    %v144 = vld [vmem:[%s134] sm:%s143]
    %v145 = vunpack.c.l.bf16 %v144
    %v146 = vunpack.c.h.bf16 %v144
    %s147 = scalar_lea.vmem [#allocation1], 952
    %148 = vst [vmem:[%s147] sm:%s4] %v145
    %s149 = smul.addr 4, 118
    %s150 = scalar_lea.vmem %s0, %s149
    %s151 = sshrl.u32 %s4, 1
    %s152 = sor.u32 %s4, %s151
    %s153 = sand.u32 %s152, 85
    %s154 = sshrl.u32 %s153, 1
    %s155 = sor.u32 %s153, %s154
    %s156 = sand.u32 51, %s155
    %s157 = sshrl.u32 %s156, 2
    %s158 = sor.u32 %s156, %s157
    %s159 = sand.u32 15, %s158
    %v160 = vld [vmem:[%s150] sm:%s159]
    %v161 = vunpack.c.l.bf16 %v160
    %v162 = vunpack.c.h.bf16 %v160
    %s163 = scalar_lea.vmem [#allocation1], 944
    %164 = vst [vmem:[%s163] sm:%s4] %v161
    %s165 = smul.addr 4, 117
    %s166 = scalar_lea.vmem %s0, %s165
    %s167 = sshrl.u32 %s4, 1
    %s168 = sor.u32 %s4, %s167
    %s169 = sand.u32 %s168, 85
    %s170 = sshrl.u32 %s169, 1
    %s171 = sor.u32 %s169, %s170
    %s172 = sand.u32 51, %s171
    %s173 = sshrl.u32 %s172, 2
    %s174 = sor.u32 %s172, %s173
    %s175 = sand.u32 15, %s174
    %v176 = vld [vmem:[%s166] sm:%s175]
    %v177 = vunpack.c.l.bf16 %v176
    %v178 = vunpack.c.h.bf16 %v176
    %s179 = scalar_lea.vmem [#allocation1], 936
    %180 = vst [vmem:[%s179] sm:%s4] %v177
    %s181 = smul.addr 4, 116
    %s182 = scalar_lea.vmem %s0, %s181
    %s183 = sshrl.u32 %s4, 1
    %s184 = sor.u32 %s4, %s183
    %s185 = sand.u32 %s184, 85
    %s186 = sshrl.u32 %s185, 1
    %s187 = sor.u32 %s185, %s186
    %s188 = sand.u32 51, %s187
    %s189 = sshrl.u32 %s188, 2
    %s190 = sor.u32 %s188, %s189
    %s191 = sand.u32 15, %s190
    %v192 = vld [vmem:[%s182] sm:%s191]
    %v193 = vunpack.c.l.bf16 %v192
    %v194 = vunpack.c.h.bf16 %v192
    %s195 = scalar_lea.vmem [#allocation1], 928
    %196 = vst [vmem:[%s195] sm:%s4] %v193
    %s197 = smul.addr 4, 115
    %s198 = scalar_lea.vmem %s0, %s197
    %s199 = sshrl.u32 %s4, 1
    %s200 = sor.u32 %s4, %s199
    %s201 = sand.u32 %s200, 85
    %s202 = sshrl.u32 %s201, 1
    %s203 = sor.u32 %s201, %s202
    %s204 = sand.u32 51, %s203
    %s205 = sshrl.u32 %s204, 2
    %s206 = sor.u32 %s204, %s205
    %s207 = sand.u32 15, %s206
    %v208 = vld [vmem:[%s198] sm:%s207]
    %v209 = vunpack.c.l.bf16 %v208
    %v210 = vunpack.c.h.bf16 %v208
    %s211 = scalar_lea.vmem [#allocation1], 920
    %212 = vst [vmem:[%s211] sm:%s4] %v209
    %s213 = smul.addr 4, 114
    %s214 = scalar_lea.vmem %s0, %s213
    %s215 = sshrl.u32 %s4, 1
    %s216 = sor.u32 %s4, %s215
    %s217 = sand.u32 %s216, 85
    %s218 = sshrl.u32 %s217, 1
    %s219 = sor.u32 %s217, %s218
    %s220 = sand.u32 51, %s219
    %s221 = sshrl.u32 %s220, 2
    %s222 = sor.u32 %s220, %s221
    %s223 = sand.u32 15, %s222
    %v224 = vld [vmem:[%s214] sm:%s223]
    %v225 = vunpack.c.l.bf16 %v224
    %v226 = vunpack.c.h.bf16 %v224
    %s227 = scalar_lea.vmem [#allocation1], 912
    %228 = vst [vmem:[%s227] sm:%s4] %v225
    %s229 = smul.addr 4, 113
    %s230 = scalar_lea.vmem %s0, %s229
    %s231 = sshrl.u32 %s4, 1
    %s232 = sor.u32 %s4, %s231
    %s233 = sand.u32 %s232, 85
    %s234 = sshrl.u32 %s233, 1
    %s235 = sor.u32 %s233, %s234
    %s236 = sand.u32 51, %s235
    %s237 = sshrl.u32 %s236, 2
    %s238 = sor.u32 %s236, %s237
    %s239 = sand.u32 15, %s238
    %v240 = vld [vmem:[%s230] sm:%s239]
    %v241 = vunpack.c.l.bf16 %v240
    %v242 = vunpack.c.h.bf16 %v240
    %s243 = scalar_lea.vmem [#allocation1], 904
    %244 = vst [vmem:[%s243] sm:%s4] %v241
    %s245 = smul.addr 4, 112
    %s246 = scalar_lea.vmem %s0, %s245
    %s247 = sshrl.u32 %s4, 1
    %s248 = sor.u32 %s4, %s247
    %s249 = sand.u32 %s248, 85
    %s250 = sshrl.u32 %s249, 1
    %s251 = sor.u32 %s249, %s250
    %s252 = sand.u32 51, %s251
    %s253 = sshrl.u32 %s252, 2
    %s254 = sor.u32 %s252, %s253
    %s255 = sand.u32 15, %s254
    %v256 = vld [vmem:[%s246] sm:%s255]
    %v257 = vunpack.c.l.bf16 %v256
    %v258 = vunpack.c.h.bf16 %v256
    %s259 = scalar_lea.vmem [#allocation1], 896
    %260 = vst [vmem:[%s259] sm:%s4] %v257
    %s261 = smul.addr 4, 111
    %s262 = scalar_lea.vmem %s0, %s261
    %s263 = sshrl.u32 %s4, 1
    %s264 = sor.u32 %s4, %s263
    %s265 = sand.u32 %s264, 85
    %s266 = sshrl.u32 %s265, 1
    %s267 = sor.u32 %s265, %s266
    %s268 = sand.u32 51, %s267
    %s269 = sshrl.u32 %s268, 2
    %s270 = sor.u32 %s268, %s269
    %s271 = sand.u32 15, %s270
    %v272 = vld [vmem:[%s262] sm:%s271]
    %v273 = vunpack.c.l.bf16 %v272
    %v274 = vunpack.c.h.bf16 %v272
    %s275 = scalar_lea.vmem [#allocation1], 888
    %276 = vst [vmem:[%s275] sm:%s4] %v273
    %s277 = smul.addr 4, 110
    %s278 = scalar_lea.vmem %s0, %s277
    %s279 = sshrl.u32 %s4, 1
    %s280 = sor.u32 %s4, %s279
    %s281 = sand.u32 %s280, 85
    %s282 = sshrl.u32 %s281, 1
    %s283 = sor.u32 %s281, %s282
    %s284 = sand.u32 51, %s283
    %s285 = sshrl.u32 %s284, 2
    %s286 = sor.u32 %s284, %s285
    %s287 = sand.u32 15, %s286
    %v288 = vld [vmem:[%s278] sm:%s287]
    %v289 = vunpack.c.l.bf16 %v288
    %v290 = vunpack.c.h.bf16 %v288
    %s291 = scalar_lea.vmem [#allocation1], 880
    %292 = vst [vmem:[%s291] sm:%s4] %v289
    %s293 = smul.addr 4, 109
    %s294 = scalar_lea.vmem %s0, %s293
    %s295 = sshrl.u32 %s4, 1
    %s296 = sor.u32 %s4, %s295
    %s297 = sand.u32 %s296, 85
    %s298 = sshrl.u32 %s297, 1
    %s299 = sor.u32 %s297, %s298
    %s300 = sand.u32 51, %s299
    %s301 = sshrl.u32 %s300, 2
    %s302 = sor.u32 %s300, %s301
    %s303 = sand.u32 15, %s302
    %v304 = vld [vmem:[%s294] sm:%s303]
    %v305 = vunpack.c.l.bf16 %v304
    %v306 = vunpack.c.h.bf16 %v304
    %s307 = scalar_lea.vmem [#allocation1], 872
    %308 = vst [vmem:[%s307] sm:%s4] %v305
    %s309 = smul.addr 4, 108
    %s310 = scalar_lea.vmem %s0, %s309
    %s311 = sshrl.u32 %s4, 1
    %s312 = sor.u32 %s4, %s311
    %s313 = sand.u32 %s312, 85
    %s314 = sshrl.u32 %s313, 1
    %s315 = sor.u32 %s313, %s314
    %s316 = sand.u32 51, %s315
    %s317 = sshrl.u32 %s316, 2
    %s318 = sor.u32 %s316, %s317
    %s319 = sand.u32 15, %s318
    %v320 = vld [vmem:[%s310] sm:%s319]
    %v321 = vunpack.c.l.bf16 %v320
    %v322 = vunpack.c.h.bf16 %v320
    %s323 = scalar_lea.vmem [#allocation1], 864
    %324 = vst [vmem:[%s323] sm:%s4] %v321
    %s325 = smul.addr 4, 107
    %s326 = scalar_lea.vmem %s0, %s325
    %s327 = sshrl.u32 %s4, 1
    %s328 = sor.u32 %s4, %s327
    %s329 = sand.u32 %s328, 85
    %s330 = sshrl.u32 %s329, 1
    %s331 = sor.u32 %s329, %s330
    %s332 = sand.u32 51, %s331
    %s333 = sshrl.u32 %s332, 2
    %s334 = sor.u32 %s332, %s333
    %s335 = sand.u32 15, %s334
    %v336 = vld [vmem:[%s326] sm:%s335]
    %v337 = vunpack.c.l.bf16 %v336
    %v338 = vunpack.c.h.bf16 %v336
    %s339 = scalar_lea.vmem [#allocation1], 856
    %340 = vst [vmem:[%s339] sm:%s4] %v337
    %s341 = smul.addr 4, 106
    %s342 = scalar_lea.vmem %s0, %s341
    %s343 = sshrl.u32 %s4, 1
    %s344 = sor.u32 %s4, %s343
    %s345 = sand.u32 %s344, 85
    %s346 = sshrl.u32 %s345, 1
    %s347 = sor.u32 %s345, %s346
    %s348 = sand.u32 51, %s347
    %s349 = sshrl.u32 %s348, 2
    %s350 = sor.u32 %s348, %s349
    %s351 = sand.u32 15, %s350
    %v352 = vld [vmem:[%s342] sm:%s351]
    %v353 = vunpack.c.l.bf16 %v352
    %v354 = vunpack.c.h.bf16 %v352
    %s355 = scalar_lea.vmem [#allocation1], 848
    %356 = vst [vmem:[%s355] sm:%s4] %v353
    %s357 = smul.addr 4, 105
    %s358 = scalar_lea.vmem %s0, %s357
    %s359 = sshrl.u32 %s4, 1
    %s360 = sor.u32 %s4, %s359
    %s361 = sand.u32 %s360, 85
    %s362 = sshrl.u32 %s361, 1
    %s363 = sor.u32 %s361, %s362
    %s364 = sand.u32 51, %s363
    %s365 = sshrl.u32 %s364, 2
    %s366 = sor.u32 %s364, %s365
    %s367 = sand.u32 15, %s366
    %v368 = vld [vmem:[%s358] sm:%s367]
    %v369 = vunpack.c.l.bf16 %v368
    %v370 = vunpack.c.h.bf16 %v368
    %s371 = scalar_lea.vmem [#allocation1], 840
    %372 = vst [vmem:[%s371] sm:%s4] %v369
    %s373 = smul.addr 4, 104
    %s374 = scalar_lea.vmem %s0, %s373
    %s375 = sshrl.u32 %s4, 1
    %s376 = sor.u32 %s4, %s375
    %s377 = sand.u32 %s376, 85
    %s378 = sshrl.u32 %s377, 1
    %s379 = sor.u32 %s377, %s378
    %s380 = sand.u32 51, %s379
    %s381 = sshrl.u32 %s380, 2
    %s382 = sor.u32 %s380, %s381
    %s383 = sand.u32 15, %s382
    %v384 = vld [vmem:[%s374] sm:%s383]
    %v385 = vunpack.c.l.bf16 %v384
    %v386 = vunpack.c.h.bf16 %v384
    %s387 = scalar_lea.vmem [#allocation1], 832
    %388 = vst [vmem:[%s387] sm:%s4] %v385
    %s389 = smul.addr 4, 103
    %s390 = scalar_lea.vmem %s0, %s389
    %s391 = sshrl.u32 %s4, 1
    %s392 = sor.u32 %s4, %s391
    %s393 = sand.u32 %s392, 85
    %s394 = sshrl.u32 %s393, 1
    %s395 = sor.u32 %s393, %s394
    %s396 = sand.u32 51, %s395
    %s397 = sshrl.u32 %s396, 2
    %s398 = sor.u32 %s396, %s397
    %s399 = sand.u32 15, %s398
    %v400 = vld [vmem:[%s390] sm:%s399]
    %v401 = vunpack.c.l.bf16 %v400
    %v402 = vunpack.c.h.bf16 %v400
    %s403 = scalar_lea.vmem [#allocation1], 824
    %404 = vst [vmem:[%s403] sm:%s4] %v401
    %s405 = smul.addr 4, 102
    %s406 = scalar_lea.vmem %s0, %s405
    %s407 = sshrl.u32 %s4, 1
    %s408 = sor.u32 %s4, %s407
    %s409 = sand.u32 %s408, 85
    %s410 = sshrl.u32 %s409, 1
    %s411 = sor.u32 %s409, %s410
    %s412 = sand.u32 51, %s411
    %s413 = sshrl.u32 %s412, 2
    %s414 = sor.u32 %s412, %s413
    %s415 = sand.u32 15, %s414
    %v416 = vld [vmem:[%s406] sm:%s415]
    %v417 = vunpack.c.l.bf16 %v416
    %v418 = vunpack.c.h.bf16 %v416
    %s419 = scalar_lea.vmem [#allocation1], 816
    %420 = vst [vmem:[%s419] sm:%s4] %v417
    %s421 = smul.addr 4, 101
    %s422 = scalar_lea.vmem %s0, %s421
    %s423 = sshrl.u32 %s4, 1
    %s424 = sor.u32 %s4, %s423
    %s425 = sand.u32 %s424, 85
    %s426 = sshrl.u32 %s425, 1
    %s427 = sor.u32 %s425, %s426
    %s428 = sand.u32 51, %s427
    %s429 = sshrl.u32 %s428, 2
    %s430 = sor.u32 %s428, %s429
    %s431 = sand.u32 15, %s430
    %v432 = vld [vmem:[%s422] sm:%s431]
    %v433 = vunpack.c.l.bf16 %v432
    %v434 = vunpack.c.h.bf16 %v432
    %s435 = scalar_lea.vmem [#allocation1], 808
    %436 = vst [vmem:[%s435] sm:%s4] %v433
    %s437 = smul.addr 4, 100
    %s438 = scalar_lea.vmem %s0, %s437
    %s439 = sshrl.u32 %s4, 1
    %s440 = sor.u32 %s4, %s439
    %s441 = sand.u32 %s440, 85
    %s442 = sshrl.u32 %s441, 1
    %s443 = sor.u32 %s441, %s442
    %s444 = sand.u32 51, %s443
    %s445 = sshrl.u32 %s444, 2
    %s446 = sor.u32 %s444, %s445
    %s447 = sand.u32 15, %s446
    %v448 = vld [vmem:[%s438] sm:%s447]
    %v449 = vunpack.c.l.bf16 %v448
    %v450 = vunpack.c.h.bf16 %v448
    %s451 = scalar_lea.vmem [#allocation1], 800
    %452 = vst [vmem:[%s451] sm:%s4] %v449
    %s453 = smul.addr 4, 99
    %s454 = scalar_lea.vmem %s0, %s453
    %s455 = sshrl.u32 %s4, 1
    %s456 = sor.u32 %s4, %s455
    %s457 = sand.u32 %s456, 85
    %s458 = sshrl.u32 %s457, 1
    %s459 = sor.u32 %s457, %s458
    %s460 = sand.u32 51, %s459
    %s461 = sshrl.u32 %s460, 2
    %s462 = sor.u32 %s460, %s461
    %s463 = sand.u32 15, %s462
    %v464 = vld [vmem:[%s454] sm:%s463]
    %v465 = vunpack.c.l.bf16 %v464
    %v466 = vunpack.c.h.bf16 %v464
    %s467 = scalar_lea.vmem [#allocation1], 792
    %468 = vst [vmem:[%s467] sm:%s4] %v465
    %s469 = smul.addr 4, 98
    %s470 = scalar_lea.vmem %s0, %s469
    %s471 = sshrl.u32 %s4, 1
    %s472 = sor.u32 %s4, %s471
    %s473 = sand.u32 %s472, 85
    %s474 = sshrl.u32 %s473, 1
    %s475 = sor.u32 %s473, %s474
    %s476 = sand.u32 51, %s475
    %s477 = sshrl.u32 %s476, 2
    %s478 = sor.u32 %s476, %s477
    %s479 = sand.u32 15, %s478
    %v480 = vld [vmem:[%s470] sm:%s479]
    %v481 = vunpack.c.l.bf16 %v480
    %v482 = vunpack.c.h.bf16 %v480
    %s483 = scalar_lea.vmem [#allocation1], 784
    %484 = vst [vmem:[%s483] sm:%s4] %v481
    %s485 = smul.addr 4, 97
    %s486 = scalar_lea.vmem %s0, %s485
    %s487 = sshrl.u32 %s4, 1
    %s488 = sor.u32 %s4, %s487
    %s489 = sand.u32 %s488, 85
    %s490 = sshrl.u32 %s489, 1
    %s491 = sor.u32 %s489, %s490
    %s492 = sand.u32 51, %s491
    %s493 = sshrl.u32 %s492, 2
    %s494 = sor.u32 %s492, %s493
    %s495 = sand.u32 15, %s494
    %v496 = vld [vmem:[%s486] sm:%s495]
    %v497 = vunpack.c.l.bf16 %v496
    %v498 = vunpack.c.h.bf16 %v496
    %s499 = scalar_lea.vmem [#allocation1], 776
    %500 = vst [vmem:[%s499] sm:%s4] %v497
    %s501 = smul.addr 4, 96
    %s502 = scalar_lea.vmem %s0, %s501
    %s503 = sshrl.u32 %s4, 1
    %s504 = sor.u32 %s4, %s503
    %s505 = sand.u32 %s504, 85
    %s506 = sshrl.u32 %s505, 1
    %s507 = sor.u32 %s505, %s506
    %s508 = sand.u32 51, %s507
    %s509 = sshrl.u32 %s508, 2
    %s510 = sor.u32 %s508, %s509
    %s511 = sand.u32 15, %s510
    %v512 = vld [vmem:[%s502] sm:%s511]
    %v513 = vunpack.c.l.bf16 %v512
    %v514 = vunpack.c.h.bf16 %v512
    %s515 = scalar_lea.vmem [#allocation1], 768
    %516 = vst [vmem:[%s515] sm:%s4] %v513
    %s517 = smul.addr 4, 95
    %s518 = scalar_lea.vmem %s0, %s517
    %s519 = sshrl.u32 %s4, 1
    %s520 = sor.u32 %s4, %s519
    %s521 = sand.u32 %s520, 85
    %s522 = sshrl.u32 %s521, 1
    %s523 = sor.u32 %s521, %s522
    %s524 = sand.u32 51, %s523
    %s525 = sshrl.u32 %s524, 2
    %s526 = sor.u32 %s524, %s525
    %s527 = sand.u32 15, %s526
    %v528 = vld [vmem:[%s518] sm:%s527]
    %v529 = vunpack.c.l.bf16 %v528
    %v530 = vunpack.c.h.bf16 %v528
    %s531 = scalar_lea.vmem [#allocation1], 760
    %532 = vst [vmem:[%s531] sm:%s4] %v529
    %s533 = smul.addr 4, 94
    %s534 = scalar_lea.vmem %s0, %s533
    %s535 = sshrl.u32 %s4, 1
    %s536 = sor.u32 %s4, %s535
    %s537 = sand.u32 %s536, 85
    %s538 = sshrl.u32 %s537, 1
    %s539 = sor.u32 %s537, %s538
    %s540 = sand.u32 51, %s539
    %s541 = sshrl.u32 %s540, 2
    %s542 = sor.u32 %s540, %s541
    %s543 = sand.u32 15, %s542
    %v544 = vld [vmem:[%s534] sm:%s543]
    %v545 = vunpack.c.l.bf16 %v544
    %v546 = vunpack.c.h.bf16 %v544
    %s547 = scalar_lea.vmem [#allocation1], 752
    %548 = vst [vmem:[%s547] sm:%s4] %v545
    %s549 = smul.addr 4, 93
    %s550 = scalar_lea.vmem %s0, %s549
    %s551 = sshrl.u32 %s4, 1
    %s552 = sor.u32 %s4, %s551
    %s553 = sand.u32 %s552, 85
    %s554 = sshrl.u32 %s553, 1
    %s555 = sor.u32 %s553, %s554
    %s556 = sand.u32 51, %s555
    %s557 = sshrl.u32 %s556, 2
    %s558 = sor.u32 %s556, %s557
    %s559 = sand.u32 15, %s558
    %v560 = vld [vmem:[%s550] sm:%s559]
    %v561 = vunpack.c.l.bf16 %v560
    %v562 = vunpack.c.h.bf16 %v560
    %s563 = scalar_lea.vmem [#allocation1], 744
    %564 = vst [vmem:[%s563] sm:%s4] %v561
    %s565 = smul.addr 4, 92
    %s566 = scalar_lea.vmem %s0, %s565
    %s567 = sshrl.u32 %s4, 1
    %s568 = sor.u32 %s4, %s567
    %s569 = sand.u32 %s568, 85
    %s570 = sshrl.u32 %s569, 1
    %s571 = sor.u32 %s569, %s570
    %s572 = sand.u32 51, %s571
    %s573 = sshrl.u32 %s572, 2
    %s574 = sor.u32 %s572, %s573
    %s575 = sand.u32 15, %s574
    %v576 = vld [vmem:[%s566] sm:%s575]
    %v577 = vunpack.c.l.bf16 %v576
    %v578 = vunpack.c.h.bf16 %v576
    %s579 = scalar_lea.vmem [#allocation1], 736
    %580 = vst [vmem:[%s579] sm:%s4] %v577
    %s581 = smul.addr 4, 91
    %s582 = scalar_lea.vmem %s0, %s581
    %s583 = sshrl.u32 %s4, 1
    %s584 = sor.u32 %s4, %s583
    %s585 = sand.u32 %s584, 85
    %s586 = sshrl.u32 %s585, 1
    %s587 = sor.u32 %s585, %s586
    %s588 = sand.u32 51, %s587
    %s589 = sshrl.u32 %s588, 2
    %s590 = sor.u32 %s588, %s589
    %s591 = sand.u32 15, %s590
    %v592 = vld [vmem:[%s582] sm:%s591]
    %v593 = vunpack.c.l.bf16 %v592
    %v594 = vunpack.c.h.bf16 %v592
    %s595 = scalar_lea.vmem [#allocation1], 728
    %596 = vst [vmem:[%s595] sm:%s4] %v593
    %s597 = smul.addr 4, 90
    %s598 = scalar_lea.vmem %s0, %s597
    %s599 = sshrl.u32 %s4, 1
    %s600 = sor.u32 %s4, %s599
    %s601 = sand.u32 %s600, 85
    %s602 = sshrl.u32 %s601, 1
    %s603 = sor.u32 %s601, %s602
    %s604 = sand.u32 51, %s603
    %s605 = sshrl.u32 %s604, 2
    %s606 = sor.u32 %s604, %s605
    %s607 = sand.u32 15, %s606
    %v608 = vld [vmem:[%s598] sm:%s607]
    %v609 = vunpack.c.l.bf16 %v608
    %v610 = vunpack.c.h.bf16 %v608
    %s611 = scalar_lea.vmem [#allocation1], 720
    %612 = vst [vmem:[%s611] sm:%s4] %v609
    %s613 = smul.addr 4, 89
    %s614 = scalar_lea.vmem %s0, %s613
    %s615 = sshrl.u32 %s4, 1
    %s616 = sor.u32 %s4, %s615
    %s617 = sand.u32 %s616, 85
    %s618 = sshrl.u32 %s617, 1
    %s619 = sor.u32 %s617, %s618
    %s620 = sand.u32 51, %s619
    %s621 = sshrl.u32 %s620, 2
    %s622 = sor.u32 %s620, %s621
    %s623 = sand.u32 15, %s622
    %v624 = vld [vmem:[%s614] sm:%s623]
    %v625 = vunpack.c.l.bf16 %v624
    %v626 = vunpack.c.h.bf16 %v624
    %s627 = scalar_lea.vmem [#allocation1], 712
    %628 = vst [vmem:[%s627] sm:%s4] %v625
    %s629 = smul.addr 4, 88
    %s630 = scalar_lea.vmem %s0, %s629
    %s631 = sshrl.u32 %s4, 1
    %s632 = sor.u32 %s4, %s631
    %s633 = sand.u32 %s632, 85
    %s634 = sshrl.u32 %s633, 1
    %s635 = sor.u32 %s633, %s634
    %s636 = sand.u32 51, %s635
    %s637 = sshrl.u32 %s636, 2
    %s638 = sor.u32 %s636, %s637
    %s639 = sand.u32 15, %s638
    %v640 = vld [vmem:[%s630] sm:%s639]
    %v641 = vunpack.c.l.bf16 %v640
    %v642 = vunpack.c.h.bf16 %v640
    %s643 = scalar_lea.vmem [#allocation1], 704
    %644 = vst [vmem:[%s643] sm:%s4] %v641
    %s645 = smul.addr 4, 87
    %s646 = scalar_lea.vmem %s0, %s645
    %s647 = sshrl.u32 %s4, 1
    %s648 = sor.u32 %s4, %s647
    %s649 = sand.u32 %s648, 85
    %s650 = sshrl.u32 %s649, 1
    %s651 = sor.u32 %s649, %s650
    %s652 = sand.u32 51, %s651
    %s653 = sshrl.u32 %s652, 2
    %s654 = sor.u32 %s652, %s653
    %s655 = sand.u32 15, %s654
    %v656 = vld [vmem:[%s646] sm:%s655]
    %v657 = vunpack.c.l.bf16 %v656
    %v658 = vunpack.c.h.bf16 %v656
    %s659 = scalar_lea.vmem [#allocation1], 696
    %660 = vst [vmem:[%s659] sm:%s4] %v657
    %s661 = smul.addr 4, 86
    %s662 = scalar_lea.vmem %s0, %s661
    %s663 = sshrl.u32 %s4, 1
    %s664 = sor.u32 %s4, %s663
    %s665 = sand.u32 %s664, 85
    %s666 = sshrl.u32 %s665, 1
    %s667 = sor.u32 %s665, %s666
    %s668 = sand.u32 51, %s667
    %s669 = sshrl.u32 %s668, 2
    %s670 = sor.u32 %s668, %s669
    %s671 = sand.u32 15, %s670
    %v672 = vld [vmem:[%s662] sm:%s671]
    %v673 = vunpack.c.l.bf16 %v672
    %v674 = vunpack.c.h.bf16 %v672
    %s675 = scalar_lea.vmem [#allocation1], 688
    %676 = vst [vmem:[%s675] sm:%s4] %v673
    %s677 = smul.addr 4, 85
    %s678 = scalar_lea.vmem %s0, %s677
    %s679 = sshrl.u32 %s4, 1
    %s680 = sor.u32 %s4, %s679
    %s681 = sand.u32 %s680, 85
    %s682 = sshrl.u32 %s681, 1
    %s683 = sor.u32 %s681, %s682
    %s684 = sand.u32 51, %s683
    %s685 = sshrl.u32 %s684, 2
    %s686 = sor.u32 %s684, %s685
    %s687 = sand.u32 15, %s686
    %v688 = vld [vmem:[%s678] sm:%s687]
    %v689 = vunpack.c.l.bf16 %v688
    %v690 = vunpack.c.h.bf16 %v688
    %s691 = scalar_lea.vmem [#allocation1], 680
    %692 = vst [vmem:[%s691] sm:%s4] %v689
    %s693 = smul.addr 4, 84
    %s694 = scalar_lea.vmem %s0, %s693
    %s695 = sshrl.u32 %s4, 1
    %s696 = sor.u32 %s4, %s695
    %s697 = sand.u32 %s696, 85
    %s698 = sshrl.u32 %s697, 1
    %s699 = sor.u32 %s697, %s698
    %s700 = sand.u32 51, %s699
    %s701 = sshrl.u32 %s700, 2
    %s702 = sor.u32 %s700, %s701
    %s703 = sand.u32 15, %s702
    %v704 = vld [vmem:[%s694] sm:%s703]
    %v705 = vunpack.c.l.bf16 %v704
    %v706 = vunpack.c.h.bf16 %v704
    %s707 = scalar_lea.vmem [#allocation1], 672
    %708 = vst [vmem:[%s707] sm:%s4] %v705
    %s709 = smul.addr 4, 83
    %s710 = scalar_lea.vmem %s0, %s709
    %s711 = sshrl.u32 %s4, 1
    %s712 = sor.u32 %s4, %s711
    %s713 = sand.u32 %s712, 85
    %s714 = sshrl.u32 %s713, 1
    %s715 = sor.u32 %s713, %s714
    %s716 = sand.u32 51, %s715
    %s717 = sshrl.u32 %s716, 2
    %s718 = sor.u32 %s716, %s717
    %s719 = sand.u32 15, %s718
    %v720 = vld [vmem:[%s710] sm:%s719]
    %v721 = vunpack.c.l.bf16 %v720
    %v722 = vunpack.c.h.bf16 %v720
    %s723 = scalar_lea.vmem [#allocation1], 664
    %724 = vst [vmem:[%s723] sm:%s4] %v721
    %s725 = smul.addr 4, 82
    %s726 = scalar_lea.vmem %s0, %s725
    %s727 = sshrl.u32 %s4, 1
    %s728 = sor.u32 %s4, %s727
    %s729 = sand.u32 %s728, 85
    %s730 = sshrl.u32 %s729, 1
    %s731 = sor.u32 %s729, %s730
    %s732 = sand.u32 51, %s731
    %s733 = sshrl.u32 %s732, 2
    %s734 = sor.u32 %s732, %s733
    %s735 = sand.u32 15, %s734
    %v736 = vld [vmem:[%s726] sm:%s735]
    %v737 = vunpack.c.l.bf16 %v736
    %v738 = vunpack.c.h.bf16 %v736
    %s739 = scalar_lea.vmem [#allocation1], 656
    %740 = vst [vmem:[%s739] sm:%s4] %v737
    %s741 = smul.addr 4, 81
    %s742 = scalar_lea.vmem %s0, %s741
    %s743 = sshrl.u32 %s4, 1
    %s744 = sor.u32 %s4, %s743
    %s745 = sand.u32 %s744, 85
    %s746 = sshrl.u32 %s745, 1
    %s747 = sor.u32 %s745, %s746
    %s748 = sand.u32 51, %s747
    %s749 = sshrl.u32 %s748, 2
    %s750 = sor.u32 %s748, %s749
    %s751 = sand.u32 15, %s750
    %v752 = vld [vmem:[%s742] sm:%s751]
    %v753 = vunpack.c.l.bf16 %v752
    %v754 = vunpack.c.h.bf16 %v752
    %s755 = scalar_lea.vmem [#allocation1], 648
    %756 = vst [vmem:[%s755] sm:%s4] %v753
    %s757 = smul.addr 4, 80
    %s758 = scalar_lea.vmem %s0, %s757
    %s759 = sshrl.u32 %s4, 1
    %s760 = sor.u32 %s4, %s759
    %s761 = sand.u32 %s760, 85
    %s762 = sshrl.u32 %s761, 1
    %s763 = sor.u32 %s761, %s762
    %s764 = sand.u32 51, %s763
    %s765 = sshrl.u32 %s764, 2
    %s766 = sor.u32 %s764, %s765
    %s767 = sand.u32 15, %s766
    %v768 = vld [vmem:[%s758] sm:%s767]
    %v769 = vunpack.c.l.bf16 %v768
    %v770 = vunpack.c.h.bf16 %v768
    %s771 = scalar_lea.vmem [#allocation1], 640
    %772 = vst [vmem:[%s771] sm:%s4] %v769
    %s773 = smul.addr 4, 79
    %s774 = scalar_lea.vmem %s0, %s773
    %s775 = sshrl.u32 %s4, 1
    %s776 = sor.u32 %s4, %s775
    %s777 = sand.u32 %s776, 85
    %s778 = sshrl.u32 %s777, 1
    %s779 = sor.u32 %s777, %s778
    %s780 = sand.u32 51, %s779
    %s781 = sshrl.u32 %s780, 2
    %s782 = sor.u32 %s780, %s781
    %s783 = sand.u32 15, %s782
    %v784 = vld [vmem:[%s774] sm:%s783]
    %v785 = vunpack.c.l.bf16 %v784
    %v786 = vunpack.c.h.bf16 %v784
    %s787 = scalar_lea.vmem [#allocation1], 632
    %788 = vst [vmem:[%s787] sm:%s4] %v785
    %s789 = smul.addr 4, 78
    %s790 = scalar_lea.vmem %s0, %s789
    %s791 = sshrl.u32 %s4, 1
    %s792 = sor.u32 %s4, %s791
    %s793 = sand.u32 %s792, 85
    %s794 = sshrl.u32 %s793, 1
    %s795 = sor.u32 %s793, %s794
    %s796 = sand.u32 51, %s795
    %s797 = sshrl.u32 %s796, 2
    %s798 = sor.u32 %s796, %s797
    %s799 = sand.u32 15, %s798
    %v800 = vld [vmem:[%s790] sm:%s799]
    %v801 = vunpack.c.l.bf16 %v800
    %v802 = vunpack.c.h.bf16 %v800
    %s803 = scalar_lea.vmem [#allocation1], 624
    %804 = vst [vmem:[%s803] sm:%s4] %v801
    %s805 = smul.addr 4, 77
    %s806 = scalar_lea.vmem %s0, %s805
    %s807 = sshrl.u32 %s4, 1
    %s808 = sor.u32 %s4, %s807
    %s809 = sand.u32 %s808, 85
    %s810 = sshrl.u32 %s809, 1
    %s811 = sor.u32 %s809, %s810
    %s812 = sand.u32 51, %s811
    %s813 = sshrl.u32 %s812, 2
    %s814 = sor.u32 %s812, %s813
    %s815 = sand.u32 15, %s814
    %v816 = vld [vmem:[%s806] sm:%s815]
    %v817 = vunpack.c.l.bf16 %v816
    %v818 = vunpack.c.h.bf16 %v816
    %s819 = scalar_lea.vmem [#allocation1], 616
    %820 = vst [vmem:[%s819] sm:%s4] %v817
    %s821 = smul.addr 4, 76
    %s822 = scalar_lea.vmem %s0, %s821
    %s823 = sshrl.u32 %s4, 1
    %s824 = sor.u32 %s4, %s823
    %s825 = sand.u32 %s824, 85
    %s826 = sshrl.u32 %s825, 1
    %s827 = sor.u32 %s825, %s826
    %s828 = sand.u32 51, %s827
    %s829 = sshrl.u32 %s828, 2
    %s830 = sor.u32 %s828, %s829
    %s831 = sand.u32 15, %s830
    %v832 = vld [vmem:[%s822] sm:%s831]
    %v833 = vunpack.c.l.bf16 %v832
    %v834 = vunpack.c.h.bf16 %v832
    %s835 = scalar_lea.vmem [#allocation1], 608
    %836 = vst [vmem:[%s835] sm:%s4] %v833
    %s837 = smul.addr 4, 75
    %s838 = scalar_lea.vmem %s0, %s837
    %s839 = sshrl.u32 %s4, 1
    %s840 = sor.u32 %s4, %s839
    %s841 = sand.u32 %s840, 85
    %s842 = sshrl.u32 %s841, 1
    %s843 = sor.u32 %s841, %s842
    %s844 = sand.u32 51, %s843
    %s845 = sshrl.u32 %s844, 2
    %s846 = sor.u32 %s844, %s845
    %s847 = sand.u32 15, %s846
    %v848 = vld [vmem:[%s838] sm:%s847]
    %v849 = vunpack.c.l.bf16 %v848
    %v850 = vunpack.c.h.bf16 %v848
    %s851 = scalar_lea.vmem [#allocation1], 600
    %852 = vst [vmem:[%s851] sm:%s4] %v849
    %s853 = smul.addr 4, 74
    %s854 = scalar_lea.vmem %s0, %s853
    %s855 = sshrl.u32 %s4, 1
    %s856 = sor.u32 %s4, %s855
    %s857 = sand.u32 %s856, 85
    %s858 = sshrl.u32 %s857, 1
    %s859 = sor.u32 %s857, %s858
    %s860 = sand.u32 51, %s859
    %s861 = sshrl.u32 %s860, 2
    %s862 = sor.u32 %s860, %s861
    %s863 = sand.u32 15, %s862
    %v864 = vld [vmem:[%s854] sm:%s863]
    %v865 = vunpack.c.l.bf16 %v864
    %v866 = vunpack.c.h.bf16 %v864
    %s867 = scalar_lea.vmem [#allocation1], 592
    %868 = vst [vmem:[%s867] sm:%s4] %v865
    %s869 = smul.addr 4, 73
    %s870 = scalar_lea.vmem %s0, %s869
    %s871 = sshrl.u32 %s4, 1
    %s872 = sor.u32 %s4, %s871
    %s873 = sand.u32 %s872, 85
    %s874 = sshrl.u32 %s873, 1
    %s875 = sor.u32 %s873, %s874
    %s876 = sand.u32 51, %s875
    %s877 = sshrl.u32 %s876, 2
    %s878 = sor.u32 %s876, %s877
    %s879 = sand.u32 15, %s878
    %v880 = vld [vmem:[%s870] sm:%s879]
    %v881 = vunpack.c.l.bf16 %v880
    %v882 = vunpack.c.h.bf16 %v880
    %s883 = scalar_lea.vmem [#allocation1], 584
    %884 = vst [vmem:[%s883] sm:%s4] %v881
    %s885 = smul.addr 4, 72
    %s886 = scalar_lea.vmem %s0, %s885
    %s887 = sshrl.u32 %s4, 1
    %s888 = sor.u32 %s4, %s887
    %s889 = sand.u32 %s888, 85
    %s890 = sshrl.u32 %s889, 1
    %s891 = sor.u32 %s889, %s890
    %s892 = sand.u32 51, %s891
    %s893 = sshrl.u32 %s892, 2
    %s894 = sor.u32 %s892, %s893
    %s895 = sand.u32 15, %s894
    %v896 = vld [vmem:[%s886] sm:%s895]
    %v897 = vunpack.c.l.bf16 %v896
    %v898 = vunpack.c.h.bf16 %v896
    %s899 = scalar_lea.vmem [#allocation1], 576
    %900 = vst [vmem:[%s899] sm:%s4] %v897
    %s901 = smul.addr 4, 71
    %s902 = scalar_lea.vmem %s0, %s901
    %s903 = sshrl.u32 %s4, 1
    %s904 = sor.u32 %s4, %s903
    %s905 = sand.u32 %s904, 85
    %s906 = sshrl.u32 %s905, 1
    %s907 = sor.u32 %s905, %s906
    %s908 = sand.u32 51, %s907
    %s909 = sshrl.u32 %s908, 2
    %s910 = sor.u32 %s908, %s909
    %s911 = sand.u32 15, %s910
    %v912 = vld [vmem:[%s902] sm:%s911]
    %v913 = vunpack.c.l.bf16 %v912
    %v914 = vunpack.c.h.bf16 %v912
    %s915 = scalar_lea.vmem [#allocation1], 568
    %916 = vst [vmem:[%s915] sm:%s4] %v913
    %s917 = smul.addr 4, 70
    %s918 = scalar_lea.vmem %s0, %s917
    %s919 = sshrl.u32 %s4, 1
    %s920 = sor.u32 %s4, %s919
    %s921 = sand.u32 %s920, 85
    %s922 = sshrl.u32 %s921, 1
    %s923 = sor.u32 %s921, %s922
    %s924 = sand.u32 51, %s923
    %s925 = sshrl.u32 %s924, 2
    %s926 = sor.u32 %s924, %s925
    %s927 = sand.u32 15, %s926
    %v928 = vld [vmem:[%s918] sm:%s927]
    %v929 = vunpack.c.l.bf16 %v928
    %v930 = vunpack.c.h.bf16 %v928
    %s931 = scalar_lea.vmem [#allocation1], 560
    %932 = vst [vmem:[%s931] sm:%s4] %v929
    %s933 = smul.addr 4, 69
    %s934 = scalar_lea.vmem %s0, %s933
    %s935 = sshrl.u32 %s4, 1
    %s936 = sor.u32 %s4, %s935
    %s937 = sand.u32 %s936, 85
    %s938 = sshrl.u32 %s937, 1
    %s939 = sor.u32 %s937, %s938
    %s940 = sand.u32 51, %s939
    %s941 = sshrl.u32 %s940, 2
    %s942 = sor.u32 %s940, %s941
    %s943 = sand.u32 15, %s942
    %v944 = vld [vmem:[%s934] sm:%s943]
    %v945 = vunpack.c.l.bf16 %v944
    %v946 = vunpack.c.h.bf16 %v944
    %s947 = scalar_lea.vmem [#allocation1], 552
    %948 = vst [vmem:[%s947] sm:%s4] %v945
    %s949 = smul.addr 4, 68
    %s950 = scalar_lea.vmem %s0, %s949
    %s951 = sshrl.u32 %s4, 1
    %s952 = sor.u32 %s4, %s951
    %s953 = sand.u32 %s952, 85
    %s954 = sshrl.u32 %s953, 1
    %s955 = sor.u32 %s953, %s954
    %s956 = sand.u32 51, %s955
    %s957 = sshrl.u32 %s956, 2
    %s958 = sor.u32 %s956, %s957
    %s959 = sand.u32 15, %s958
    %v960 = vld [vmem:[%s950] sm:%s959]
    %v961 = vunpack.c.l.bf16 %v960
    %v962 = vunpack.c.h.bf16 %v960
    %s963 = scalar_lea.vmem [#allocation1], 544
    %964 = vst [vmem:[%s963] sm:%s4] %v961
    %s965 = smul.addr 4, 67
    %s966 = scalar_lea.vmem %s0, %s965
    %s967 = sshrl.u32 %s4, 1
    %s968 = sor.u32 %s4, %s967
    %s969 = sand.u32 %s968, 85
    %s970 = sshrl.u32 %s969, 1
    %s971 = sor.u32 %s969, %s970
    %s972 = sand.u32 51, %s971
    %s973 = sshrl.u32 %s972, 2
    %s974 = sor.u32 %s972, %s973
    %s975 = sand.u32 15, %s974
    %v976 = vld [vmem:[%s966] sm:%s975]
    %v977 = vunpack.c.l.bf16 %v976
    %v978 = vunpack.c.h.bf16 %v976
    %s979 = scalar_lea.vmem [#allocation1], 536
    %980 = vst [vmem:[%s979] sm:%s4] %v977
    %s981 = smul.addr 4, 66
    %s982 = scalar_lea.vmem %s0, %s981
    %s983 = sshrl.u32 %s4, 1
    %s984 = sor.u32 %s4, %s983
    %s985 = sand.u32 %s984, 85
    %s986 = sshrl.u32 %s985, 1
    %s987 = sor.u32 %s985, %s986
    %s988 = sand.u32 51, %s987
    %s989 = sshrl.u32 %s988, 2
    %s990 = sor.u32 %s988, %s989
    %s991 = sand.u32 15, %s990
    %v992 = vld [vmem:[%s982] sm:%s991]
    %v993 = vunpack.c.l.bf16 %v992
    %v994 = vunpack.c.h.bf16 %v992
    %s995 = scalar_lea.vmem [#allocation1], 528
    %996 = vst [vmem:[%s995] sm:%s4] %v993
    %s997 = smul.addr 4, 65
    %s998 = scalar_lea.vmem %s0, %s997
    %s999 = sshrl.u32 %s4, 1
    %s1000 = sor.u32 %s4, %s999
    %s1001 = sand.u32 %s1000, 85
    %s1002 = sshrl.u32 %s1001, 1
    %s1003 = sor.u32 %s1001, %s1002
    %s1004 = sand.u32 51, %s1003
    %s1005 = sshrl.u32 %s1004, 2
    %s1006 = sor.u32 %s1004, %s1005
    %s1007 = sand.u32 15, %s1006
    %v1008 = vld [vmem:[%s998] sm:%s1007]
    %v1009 = vunpack.c.l.bf16 %v1008
    %v1010 = vunpack.c.h.bf16 %v1008
    %s1011 = scalar_lea.vmem [#allocation1], 520
    %1012 = vst [vmem:[%s1011] sm:%s4] %v1009
    %s1013 = smul.addr 4, 64
    %s1014 = scalar_lea.vmem %s0, %s1013
    %s1015 = sshrl.u32 %s4, 1
    %s1016 = sor.u32 %s4, %s1015
    %s1017 = sand.u32 %s1016, 85
    %s1018 = sshrl.u32 %s1017, 1
    %s1019 = sor.u32 %s1017, %s1018
    %s1020 = sand.u32 51, %s1019
    %s1021 = sshrl.u32 %s1020, 2
    %s1022 = sor.u32 %s1020, %s1021
    %s1023 = sand.u32 15, %s1022
    %v1024 = vld [vmem:[%s1014] sm:%s1023]
    %v1025 = vunpack.c.l.bf16 %v1024
    %v1026 = vunpack.c.h.bf16 %v1024
    %s1027 = scalar_lea.vmem [#allocation1], 512
    %1028 = vst [vmem:[%s1027] sm:%s4] %v1025
    %s1029 = smul.addr 4, 63
    %s1030 = scalar_lea.vmem %s0, %s1029
    %s1031 = sshrl.u32 %s4, 1
    %s1032 = sor.u32 %s4, %s1031
    %s1033 = sand.u32 %s1032, 85
    %s1034 = sshrl.u32 %s1033, 1
    %s1035 = sor.u32 %s1033, %s1034
    %s1036 = sand.u32 51, %s1035
    %s1037 = sshrl.u32 %s1036, 2
    %s1038 = sor.u32 %s1036, %s1037
    %s1039 = sand.u32 15, %s1038
    %v1040 = vld [vmem:[%s1030] sm:%s1039]
    %v1041 = vunpack.c.l.bf16 %v1040
    %v1042 = vunpack.c.h.bf16 %v1040
    %s1043 = scalar_lea.vmem [#allocation1], 504
    %1044 = vst [vmem:[%s1043] sm:%s4] %v1041
    %s1045 = smul.addr 4, 62
    %s1046 = scalar_lea.vmem %s0, %s1045
    %s1047 = sshrl.u32 %s4, 1
    %s1048 = sor.u32 %s4, %s1047
    %s1049 = sand.u32 %s1048, 85
    %s1050 = sshrl.u32 %s1049, 1
    %s1051 = sor.u32 %s1049, %s1050
    %s1052 = sand.u32 51, %s1051
    %s1053 = sshrl.u32 %s1052, 2
    %s1054 = sor.u32 %s1052, %s1053
    %s1055 = sand.u32 15, %s1054
    %v1056 = vld [vmem:[%s1046] sm:%s1055]
    %v1057 = vunpack.c.l.bf16 %v1056
    %v1058 = vunpack.c.h.bf16 %v1056
    %s1059 = scalar_lea.vmem [#allocation1], 496
    %1060 = vst [vmem:[%s1059] sm:%s4] %v1057
    %s1061 = smul.addr 4, 61
    %s1062 = scalar_lea.vmem %s0, %s1061
    %s1063 = sshrl.u32 %s4, 1
    %s1064 = sor.u32 %s4, %s1063
    %s1065 = sand.u32 %s1064, 85
    %s1066 = sshrl.u32 %s1065, 1
    %s1067 = sor.u32 %s1065, %s1066
    %s1068 = sand.u32 51, %s1067
    %s1069 = sshrl.u32 %s1068, 2
    %s1070 = sor.u32 %s1068, %s1069
    %s1071 = sand.u32 15, %s1070
    %v1072 = vld [vmem:[%s1062] sm:%s1071]
    %v1073 = vunpack.c.l.bf16 %v1072
    %v1074 = vunpack.c.h.bf16 %v1072
    %s1075 = scalar_lea.vmem [#allocation1], 488
    %1076 = vst [vmem:[%s1075] sm:%s4] %v1073
    %s1077 = smul.addr 4, 60
    %s1078 = scalar_lea.vmem %s0, %s1077
    %s1079 = sshrl.u32 %s4, 1
    %s1080 = sor.u32 %s4, %s1079
    %s1081 = sand.u32 %s1080, 85
    %s1082 = sshrl.u32 %s1081, 1
    %s1083 = sor.u32 %s1081, %s1082
    %s1084 = sand.u32 51, %s1083
    %s1085 = sshrl.u32 %s1084, 2
    %s1086 = sor.u32 %s1084, %s1085
    %s1087 = sand.u32 15, %s1086
    %v1088 = vld [vmem:[%s1078] sm:%s1087]
    %v1089 = vunpack.c.l.bf16 %v1088
    %v1090 = vunpack.c.h.bf16 %v1088
    %s1091 = scalar_lea.vmem [#allocation1], 480
    %1092 = vst [vmem:[%s1091] sm:%s4] %v1089
    %s1093 = smul.addr 4, 59
    %s1094 = scalar_lea.vmem %s0, %s1093
    %s1095 = sshrl.u32 %s4, 1
    %s1096 = sor.u32 %s4, %s1095
    %s1097 = sand.u32 %s1096, 85
    %s1098 = sshrl.u32 %s1097, 1
    %s1099 = sor.u32 %s1097, %s1098
    %s1100 = sand.u32 51, %s1099
    %s1101 = sshrl.u32 %s1100, 2
    %s1102 = sor.u32 %s1100, %s1101
    %s1103 = sand.u32 15, %s1102
    %v1104 = vld [vmem:[%s1094] sm:%s1103]
    %v1105 = vunpack.c.l.bf16 %v1104
    %v1106 = vunpack.c.h.bf16 %v1104
    %s1107 = scalar_lea.vmem [#allocation1], 472
    %1108 = vst [vmem:[%s1107] sm:%s4] %v1105
    %s1109 = smul.addr 4, 58
    %s1110 = scalar_lea.vmem %s0, %s1109
    %s1111 = sshrl.u32 %s4, 1
    %s1112 = sor.u32 %s4, %s1111
    %s1113 = sand.u32 %s1112, 85
    %s1114 = sshrl.u32 %s1113, 1
    %s1115 = sor.u32 %s1113, %s1114
    %s1116 = sand.u32 51, %s1115
    %s1117 = sshrl.u32 %s1116, 2
    %s1118 = sor.u32 %s1116, %s1117
    %s1119 = sand.u32 15, %s1118
    %v1120 = vld [vmem:[%s1110] sm:%s1119]
    %v1121 = vunpack.c.l.bf16 %v1120
    %v1122 = vunpack.c.h.bf16 %v1120
    %s1123 = scalar_lea.vmem [#allocation1], 464
    %1124 = vst [vmem:[%s1123] sm:%s4] %v1121
    %s1125 = smul.addr 4, 57
    %s1126 = scalar_lea.vmem %s0, %s1125
    %s1127 = sshrl.u32 %s4, 1
    %s1128 = sor.u32 %s4, %s1127
    %s1129 = sand.u32 %s1128, 85
    %s1130 = sshrl.u32 %s1129, 1
    %s1131 = sor.u32 %s1129, %s1130
    %s1132 = sand.u32 51, %s1131
    %s1133 = sshrl.u32 %s1132, 2
    %s1134 = sor.u32 %s1132, %s1133
    %s1135 = sand.u32 15, %s1134
    %v1136 = vld [vmem:[%s1126] sm:%s1135]
    %v1137 = vunpack.c.l.bf16 %v1136
    %v1138 = vunpack.c.h.bf16 %v1136
    %s1139 = scalar_lea.vmem [#allocation1], 456
    %1140 = vst [vmem:[%s1139] sm:%s4] %v1137
    %s1141 = smul.addr 4, 56
    %s1142 = scalar_lea.vmem %s0, %s1141
    %s1143 = sshrl.u32 %s4, 1
    %s1144 = sor.u32 %s4, %s1143
    %s1145 = sand.u32 %s1144, 85
    %s1146 = sshrl.u32 %s1145, 1
    %s1147 = sor.u32 %s1145, %s1146
    %s1148 = sand.u32 51, %s1147
    %s1149 = sshrl.u32 %s1148, 2
    %s1150 = sor.u32 %s1148, %s1149
    %s1151 = sand.u32 15, %s1150
    %v1152 = vld [vmem:[%s1142] sm:%s1151]
    %v1153 = vunpack.c.l.bf16 %v1152
    %v1154 = vunpack.c.h.bf16 %v1152
    %s1155 = scalar_lea.vmem [#allocation1], 448
    %1156 = vst [vmem:[%s1155] sm:%s4] %v1153
    %s1157 = smul.addr 4, 55
    %s1158 = scalar_lea.vmem %s0, %s1157
    %s1159 = sshrl.u32 %s4, 1
    %s1160 = sor.u32 %s4, %s1159
    %s1161 = sand.u32 %s1160, 85
    %s1162 = sshrl.u32 %s1161, 1
    %s1163 = sor.u32 %s1161, %s1162
    %s1164 = sand.u32 51, %s1163
    %s1165 = sshrl.u32 %s1164, 2
    %s1166 = sor.u32 %s1164, %s1165
    %s1167 = sand.u32 15, %s1166
    %v1168 = vld [vmem:[%s1158] sm:%s1167]
    %v1169 = vunpack.c.l.bf16 %v1168
    %v1170 = vunpack.c.h.bf16 %v1168
    %s1171 = scalar_lea.vmem [#allocation1], 440
    %1172 = vst [vmem:[%s1171] sm:%s4] %v1169
    %s1173 = smul.addr 4, 54
    %s1174 = scalar_lea.vmem %s0, %s1173
    %s1175 = sshrl.u32 %s4, 1
    %s1176 = sor.u32 %s4, %s1175
    %s1177 = sand.u32 %s1176, 85
    %s1178 = sshrl.u32 %s1177, 1
    %s1179 = sor.u32 %s1177, %s1178
    %s1180 = sand.u32 51, %s1179
    %s1181 = sshrl.u32 %s1180, 2
    %s1182 = sor.u32 %s1180, %s1181
    %s1183 = sand.u32 15, %s1182
    %v1184 = vld [vmem:[%s1174] sm:%s1183]
    %v1185 = vunpack.c.l.bf16 %v1184
    %v1186 = vunpack.c.h.bf16 %v1184
    %s1187 = scalar_lea.vmem [#allocation1], 432
    %1188 = vst [vmem:[%s1187] sm:%s4] %v1185
    %s1189 = smul.addr 4, 53
    %s1190 = scalar_lea.vmem %s0, %s1189
    %s1191 = sshrl.u32 %s4, 1
    %s1192 = sor.u32 %s4, %s1191
    %s1193 = sand.u32 %s1192, 85
    %s1194 = sshrl.u32 %s1193, 1
    %s1195 = sor.u32 %s1193, %s1194
    %s1196 = sand.u32 51, %s1195
    %s1197 = sshrl.u32 %s1196, 2
    %s1198 = sor.u32 %s1196, %s1197
    %s1199 = sand.u32 15, %s1198
    %v1200 = vld [vmem:[%s1190] sm:%s1199]
    %v1201 = vunpack.c.l.bf16 %v1200
    %v1202 = vunpack.c.h.bf16 %v1200
    %s1203 = scalar_lea.vmem [#allocation1], 424
    %1204 = vst [vmem:[%s1203] sm:%s4] %v1201
    %s1205 = smul.addr 4, 52
    %s1206 = scalar_lea.vmem %s0, %s1205
    %s1207 = sshrl.u32 %s4, 1
    %s1208 = sor.u32 %s4, %s1207
    %s1209 = sand.u32 %s1208, 85
    %s1210 = sshrl.u32 %s1209, 1
    %s1211 = sor.u32 %s1209, %s1210
    %s1212 = sand.u32 51, %s1211
    %s1213 = sshrl.u32 %s1212, 2
    %s1214 = sor.u32 %s1212, %s1213
    %s1215 = sand.u32 15, %s1214
    %v1216 = vld [vmem:[%s1206] sm:%s1215]
    %v1217 = vunpack.c.l.bf16 %v1216
    %v1218 = vunpack.c.h.bf16 %v1216
    %s1219 = scalar_lea.vmem [#allocation1], 416
    %1220 = vst [vmem:[%s1219] sm:%s4] %v1217
    %s1221 = smul.addr 4, 51
    %s1222 = scalar_lea.vmem %s0, %s1221
    %s1223 = sshrl.u32 %s4, 1
    %s1224 = sor.u32 %s4, %s1223
    %s1225 = sand.u32 %s1224, 85
    %s1226 = sshrl.u32 %s1225, 1
    %s1227 = sor.u32 %s1225, %s1226
    %s1228 = sand.u32 51, %s1227
    %s1229 = sshrl.u32 %s1228, 2
    %s1230 = sor.u32 %s1228, %s1229
    %s1231 = sand.u32 15, %s1230
    %v1232 = vld [vmem:[%s1222] sm:%s1231]
    %v1233 = vunpack.c.l.bf16 %v1232
    %v1234 = vunpack.c.h.bf16 %v1232
    %s1235 = scalar_lea.vmem [#allocation1], 408
    %1236 = vst [vmem:[%s1235] sm:%s4] %v1233
    %s1237 = smul.addr 4, 50
    %s1238 = scalar_lea.vmem %s0, %s1237
    %s1239 = sshrl.u32 %s4, 1
    %s1240 = sor.u32 %s4, %s1239
    %s1241 = sand.u32 %s1240, 85
    %s1242 = sshrl.u32 %s1241, 1
    %s1243 = sor.u32 %s1241, %s1242
    %s1244 = sand.u32 51, %s1243
    %s1245 = sshrl.u32 %s1244, 2
    %s1246 = sor.u32 %s1244, %s1245
    %s1247 = sand.u32 15, %s1246
    %v1248 = vld [vmem:[%s1238] sm:%s1247]
    %v1249 = vunpack.c.l.bf16 %v1248
    %v1250 = vunpack.c.h.bf16 %v1248
    %s1251 = scalar_lea.vmem [#allocation1], 400
    %1252 = vst [vmem:[%s1251] sm:%s4] %v1249
    %s1253 = smul.addr 4, 49
    %s1254 = scalar_lea.vmem %s0, %s1253
    %s1255 = sshrl.u32 %s4, 1
    %s1256 = sor.u32 %s4, %s1255
    %s1257 = sand.u32 %s1256, 85
    %s1258 = sshrl.u32 %s1257, 1
    %s1259 = sor.u32 %s1257, %s1258
    %s1260 = sand.u32 51, %s1259
    %s1261 = sshrl.u32 %s1260, 2
    %s1262 = sor.u32 %s1260, %s1261
    %s1263 = sand.u32 15, %s1262
    %v1264 = vld [vmem:[%s1254] sm:%s1263]
    %v1265 = vunpack.c.l.bf16 %v1264
    %v1266 = vunpack.c.h.bf16 %v1264
    %s1267 = scalar_lea.vmem [#allocation1], 392
    %1268 = vst [vmem:[%s1267] sm:%s4] %v1265
    %s1269 = smul.addr 4, 48
    %s1270 = scalar_lea.vmem %s0, %s1269
    %s1271 = sshrl.u32 %s4, 1
    %s1272 = sor.u32 %s4, %s1271
    %s1273 = sand.u32 %s1272, 85
    %s1274 = sshrl.u32 %s1273, 1
    %s1275 = sor.u32 %s1273, %s1274
    %s1276 = sand.u32 51, %s1275
    %s1277 = sshrl.u32 %s1276, 2
    %s1278 = sor.u32 %s1276, %s1277
    %s1279 = sand.u32 15, %s1278
    %v1280 = vld [vmem:[%s1270] sm:%s1279]
    %v1281 = vunpack.c.l.bf16 %v1280
    %v1282 = vunpack.c.h.bf16 %v1280
    %s1283 = scalar_lea.vmem [#allocation1], 384
    %1284 = vst [vmem:[%s1283] sm:%s4] %v1281
    %s1285 = smul.addr 4, 47
    %s1286 = scalar_lea.vmem %s0, %s1285
    %s1287 = sshrl.u32 %s4, 1
    %s1288 = sor.u32 %s4, %s1287
    %s1289 = sand.u32 %s1288, 85
    %s1290 = sshrl.u32 %s1289, 1
    %s1291 = sor.u32 %s1289, %s1290
    %s1292 = sand.u32 51, %s1291
    %s1293 = sshrl.u32 %s1292, 2
    %s1294 = sor.u32 %s1292, %s1293
    %s1295 = sand.u32 15, %s1294
    %v1296 = vld [vmem:[%s1286] sm:%s1295]
    %v1297 = vunpack.c.l.bf16 %v1296
    %v1298 = vunpack.c.h.bf16 %v1296
    %s1299 = scalar_lea.vmem [#allocation1], 376
    %1300 = vst [vmem:[%s1299] sm:%s4] %v1297
    %s1301 = smul.addr 4, 46
    %s1302 = scalar_lea.vmem %s0, %s1301
    %s1303 = sshrl.u32 %s4, 1
    %s1304 = sor.u32 %s4, %s1303
    %s1305 = sand.u32 %s1304, 85
    %s1306 = sshrl.u32 %s1305, 1
    %s1307 = sor.u32 %s1305, %s1306
    %s1308 = sand.u32 51, %s1307
    %s1309 = sshrl.u32 %s1308, 2
    %s1310 = sor.u32 %s1308, %s1309
    %s1311 = sand.u32 15, %s1310
    %v1312 = vld [vmem:[%s1302] sm:%s1311]
    %v1313 = vunpack.c.l.bf16 %v1312
    %v1314 = vunpack.c.h.bf16 %v1312
    %s1315 = scalar_lea.vmem [#allocation1], 368
    %1316 = vst [vmem:[%s1315] sm:%s4] %v1313
    %s1317 = smul.addr 4, 45
    %s1318 = scalar_lea.vmem %s0, %s1317
    %s1319 = sshrl.u32 %s4, 1
    %s1320 = sor.u32 %s4, %s1319
    %s1321 = sand.u32 %s1320, 85
    %s1322 = sshrl.u32 %s1321, 1
    %s1323 = sor.u32 %s1321, %s1322
    %s1324 = sand.u32 51, %s1323
    %s1325 = sshrl.u32 %s1324, 2
    %s1326 = sor.u32 %s1324, %s1325
    %s1327 = sand.u32 15, %s1326
    %v1328 = vld [vmem:[%s1318] sm:%s1327]
    %v1329 = vunpack.c.l.bf16 %v1328
    %v1330 = vunpack.c.h.bf16 %v1328
    %s1331 = scalar_lea.vmem [#allocation1], 360
    %1332 = vst [vmem:[%s1331] sm:%s4] %v1329
    %s1333 = smul.addr 4, 44
    %s1334 = scalar_lea.vmem %s0, %s1333
    %s1335 = sshrl.u32 %s4, 1
    %s1336 = sor.u32 %s4, %s1335
    %s1337 = sand.u32 %s1336, 85
    %s1338 = sshrl.u32 %s1337, 1
    %s1339 = sor.u32 %s1337, %s1338
    %s1340 = sand.u32 51, %s1339
    %s1341 = sshrl.u32 %s1340, 2
    %s1342 = sor.u32 %s1340, %s1341
    %s1343 = sand.u32 15, %s1342
    %v1344 = vld [vmem:[%s1334] sm:%s1343]
    %v1345 = vunpack.c.l.bf16 %v1344
    %v1346 = vunpack.c.h.bf16 %v1344
    %s1347 = scalar_lea.vmem [#allocation1], 352
    %1348 = vst [vmem:[%s1347] sm:%s4] %v1345
    %s1349 = smul.addr 4, 43
    %s1350 = scalar_lea.vmem %s0, %s1349
    %s1351 = sshrl.u32 %s4, 1
    %s1352 = sor.u32 %s4, %s1351
    %s1353 = sand.u32 %s1352, 85
    %s1354 = sshrl.u32 %s1353, 1
    %s1355 = sor.u32 %s1353, %s1354
    %s1356 = sand.u32 51, %s1355
    %s1357 = sshrl.u32 %s1356, 2
    %s1358 = sor.u32 %s1356, %s1357
    %s1359 = sand.u32 15, %s1358
    %v1360 = vld [vmem:[%s1350] sm:%s1359]
    %v1361 = vunpack.c.l.bf16 %v1360
    %v1362 = vunpack.c.h.bf16 %v1360
    %s1363 = scalar_lea.vmem [#allocation1], 344
    %1364 = vst [vmem:[%s1363] sm:%s4] %v1361
    %s1365 = smul.addr 4, 42
    %s1366 = scalar_lea.vmem %s0, %s1365
    %s1367 = sshrl.u32 %s4, 1
    %s1368 = sor.u32 %s4, %s1367
    %s1369 = sand.u32 %s1368, 85
    %s1370 = sshrl.u32 %s1369, 1
    %s1371 = sor.u32 %s1369, %s1370
    %s1372 = sand.u32 51, %s1371
    %s1373 = sshrl.u32 %s1372, 2
    %s1374 = sor.u32 %s1372, %s1373
    %s1375 = sand.u32 15, %s1374
    %v1376 = vld [vmem:[%s1366] sm:%s1375]
    %v1377 = vunpack.c.l.bf16 %v1376
    %v1378 = vunpack.c.h.bf16 %v1376
    %s1379 = scalar_lea.vmem [#allocation1], 336
    %1380 = vst [vmem:[%s1379] sm:%s4] %v1377
    %s1381 = smul.addr 4, 41
    %s1382 = scalar_lea.vmem %s0, %s1381
    %s1383 = sshrl.u32 %s4, 1
    %s1384 = sor.u32 %s4, %s1383
    %s1385 = sand.u32 %s1384, 85
    %s1386 = sshrl.u32 %s1385, 1
    %s1387 = sor.u32 %s1385, %s1386
    %s1388 = sand.u32 51, %s1387
    %s1389 = sshrl.u32 %s1388, 2
    %s1390 = sor.u32 %s1388, %s1389
    %s1391 = sand.u32 15, %s1390
    %v1392 = vld [vmem:[%s1382] sm:%s1391]
    %v1393 = vunpack.c.l.bf16 %v1392
    %v1394 = vunpack.c.h.bf16 %v1392
    %s1395 = scalar_lea.vmem [#allocation1], 328
    %1396 = vst [vmem:[%s1395] sm:%s4] %v1393
    %s1397 = smul.addr 4, 40
    %s1398 = scalar_lea.vmem %s0, %s1397
    %s1399 = sshrl.u32 %s4, 1
    %s1400 = sor.u32 %s4, %s1399
    %s1401 = sand.u32 %s1400, 85
    %s1402 = sshrl.u32 %s1401, 1
    %s1403 = sor.u32 %s1401, %s1402
    %s1404 = sand.u32 51, %s1403
    %s1405 = sshrl.u32 %s1404, 2
    %s1406 = sor.u32 %s1404, %s1405
    %s1407 = sand.u32 15, %s1406
    %v1408 = vld [vmem:[%s1398] sm:%s1407]
    %v1409 = vunpack.c.l.bf16 %v1408
    %v1410 = vunpack.c.h.bf16 %v1408
    %s1411 = scalar_lea.vmem [#allocation1], 320
    %1412 = vst [vmem:[%s1411] sm:%s4] %v1409
    %s1413 = smul.addr 4, 39
    %s1414 = scalar_lea.vmem %s0, %s1413
    %s1415 = sshrl.u32 %s4, 1
    %s1416 = sor.u32 %s4, %s1415
    %s1417 = sand.u32 %s1416, 85
    %s1418 = sshrl.u32 %s1417, 1
    %s1419 = sor.u32 %s1417, %s1418
    %s1420 = sand.u32 51, %s1419
    %s1421 = sshrl.u32 %s1420, 2
    %s1422 = sor.u32 %s1420, %s1421
    %s1423 = sand.u32 15, %s1422
    %v1424 = vld [vmem:[%s1414] sm:%s1423]
    %v1425 = vunpack.c.l.bf16 %v1424
    %v1426 = vunpack.c.h.bf16 %v1424
    %s1427 = scalar_lea.vmem [#allocation1], 312
    %1428 = vst [vmem:[%s1427] sm:%s4] %v1425
    %s1429 = smul.addr 4, 38
    %s1430 = scalar_lea.vmem %s0, %s1429
    %s1431 = sshrl.u32 %s4, 1
    %s1432 = sor.u32 %s4, %s1431
    %s1433 = sand.u32 %s1432, 85
    %s1434 = sshrl.u32 %s1433, 1
    %s1435 = sor.u32 %s1433, %s1434
    %s1436 = sand.u32 51, %s1435
    %s1437 = sshrl.u32 %s1436, 2
    %s1438 = sor.u32 %s1436, %s1437
    %s1439 = sand.u32 15, %s1438
    %v1440 = vld [vmem:[%s1430] sm:%s1439]
    %v1441 = vunpack.c.l.bf16 %v1440
    %v1442 = vunpack.c.h.bf16 %v1440
    %s1443 = scalar_lea.vmem [#allocation1], 304
    %1444 = vst [vmem:[%s1443] sm:%s4] %v1441
    %s1445 = smul.addr 4, 37
    %s1446 = scalar_lea.vmem %s0, %s1445
    %s1447 = sshrl.u32 %s4, 1
    %s1448 = sor.u32 %s4, %s1447
    %s1449 = sand.u32 %s1448, 85
    %s1450 = sshrl.u32 %s1449, 1
    %s1451 = sor.u32 %s1449, %s1450
    %s1452 = sand.u32 51, %s1451
    %s1453 = sshrl.u32 %s1452, 2
    %s1454 = sor.u32 %s1452, %s1453
    %s1455 = sand.u32 15, %s1454
    %v1456 = vld [vmem:[%s1446] sm:%s1455]
    %v1457 = vunpack.c.l.bf16 %v1456
    %v1458 = vunpack.c.h.bf16 %v1456
    %s1459 = scalar_lea.vmem [#allocation1], 296
    %1460 = vst [vmem:[%s1459] sm:%s4] %v1457
    %s1461 = smul.addr 4, 36
    %s1462 = scalar_lea.vmem %s0, %s1461
    %s1463 = sshrl.u32 %s4, 1
    %s1464 = sor.u32 %s4, %s1463
    %s1465 = sand.u32 %s1464, 85
    %s1466 = sshrl.u32 %s1465, 1
    %s1467 = sor.u32 %s1465, %s1466
    %s1468 = sand.u32 51, %s1467
    %s1469 = sshrl.u32 %s1468, 2
    %s1470 = sor.u32 %s1468, %s1469
    %s1471 = sand.u32 15, %s1470
    %v1472 = vld [vmem:[%s1462] sm:%s1471]
    %v1473 = vunpack.c.l.bf16 %v1472
    %v1474 = vunpack.c.h.bf16 %v1472
    %s1475 = scalar_lea.vmem [#allocation1], 288
    %1476 = vst [vmem:[%s1475] sm:%s4] %v1473
    %s1477 = smul.addr 4, 35
    %s1478 = scalar_lea.vmem %s0, %s1477
    %s1479 = sshrl.u32 %s4, 1
    %s1480 = sor.u32 %s4, %s1479
    %s1481 = sand.u32 %s1480, 85
    %s1482 = sshrl.u32 %s1481, 1
    %s1483 = sor.u32 %s1481, %s1482
    %s1484 = sand.u32 51, %s1483
    %s1485 = sshrl.u32 %s1484, 2
    %s1486 = sor.u32 %s1484, %s1485
    %s1487 = sand.u32 15, %s1486
    %v1488 = vld [vmem:[%s1478] sm:%s1487]
    %v1489 = vunpack.c.l.bf16 %v1488
    %v1490 = vunpack.c.h.bf16 %v1488
    %s1491 = scalar_lea.vmem [#allocation1], 280
    %1492 = vst [vmem:[%s1491] sm:%s4] %v1489
    %s1493 = smul.addr 4, 34
    %s1494 = scalar_lea.vmem %s0, %s1493
    %s1495 = sshrl.u32 %s4, 1
    %s1496 = sor.u32 %s4, %s1495
    %s1497 = sand.u32 %s1496, 85
    %s1498 = sshrl.u32 %s1497, 1
    %s1499 = sor.u32 %s1497, %s1498
    %s1500 = sand.u32 51, %s1499
    %s1501 = sshrl.u32 %s1500, 2
    %s1502 = sor.u32 %s1500, %s1501
    %s1503 = sand.u32 15, %s1502
    %v1504 = vld [vmem:[%s1494] sm:%s1503]
    %v1505 = vunpack.c.l.bf16 %v1504
    %v1506 = vunpack.c.h.bf16 %v1504
    %s1507 = scalar_lea.vmem [#allocation1], 272
    %1508 = vst [vmem:[%s1507] sm:%s4] %v1505
    %s1509 = smul.addr 4, 33
    %s1510 = scalar_lea.vmem %s0, %s1509
    %s1511 = sshrl.u32 %s4, 1
    %s1512 = sor.u32 %s4, %s1511
    %s1513 = sand.u32 %s1512, 85
    %s1514 = sshrl.u32 %s1513, 1
    %s1515 = sor.u32 %s1513, %s1514
    %s1516 = sand.u32 51, %s1515
    %s1517 = sshrl.u32 %s1516, 2
    %s1518 = sor.u32 %s1516, %s1517
    %s1519 = sand.u32 15, %s1518
    %v1520 = vld [vmem:[%s1510] sm:%s1519]
    %v1521 = vunpack.c.l.bf16 %v1520
    %v1522 = vunpack.c.h.bf16 %v1520
    %s1523 = scalar_lea.vmem [#allocation1], 264
    %1524 = vst [vmem:[%s1523] sm:%s4] %v1521
    %s1525 = smul.addr 4, 32
    %s1526 = scalar_lea.vmem %s0, %s1525
    %s1527 = sshrl.u32 %s4, 1
    %s1528 = sor.u32 %s4, %s1527
    %s1529 = sand.u32 %s1528, 85
    %s1530 = sshrl.u32 %s1529, 1
    %s1531 = sor.u32 %s1529, %s1530
    %s1532 = sand.u32 51, %s1531
    %s1533 = sshrl.u32 %s1532, 2
    %s1534 = sor.u32 %s1532, %s1533
    %s1535 = sand.u32 15, %s1534
    %v1536 = vld [vmem:[%s1526] sm:%s1535]
    %v1537 = vunpack.c.l.bf16 %v1536
    %v1538 = vunpack.c.h.bf16 %v1536
    %s1539 = scalar_lea.vmem [#allocation1], 256
    %1540 = vst [vmem:[%s1539] sm:%s4] %v1537
    %s1541 = smul.addr 4, 31
    %s1542 = scalar_lea.vmem %s0, %s1541
    %s1543 = sshrl.u32 %s4, 1
    %s1544 = sor.u32 %s4, %s1543
    %s1545 = sand.u32 %s1544, 85
    %s1546 = sshrl.u32 %s1545, 1
    %s1547 = sor.u32 %s1545, %s1546
    %s1548 = sand.u32 51, %s1547
    %s1549 = sshrl.u32 %s1548, 2
    %s1550 = sor.u32 %s1548, %s1549
    %s1551 = sand.u32 15, %s1550
    %v1552 = vld [vmem:[%s1542] sm:%s1551]
    %v1553 = vunpack.c.l.bf16 %v1552
    %v1554 = vunpack.c.h.bf16 %v1552
    %s1555 = scalar_lea.vmem [#allocation1], 248
    %1556 = vst [vmem:[%s1555] sm:%s4] %v1553
    %s1557 = smul.addr 4, 30
    %s1558 = scalar_lea.vmem %s0, %s1557
    %s1559 = sshrl.u32 %s4, 1
    %s1560 = sor.u32 %s4, %s1559
    %s1561 = sand.u32 %s1560, 85
    %s1562 = sshrl.u32 %s1561, 1
    %s1563 = sor.u32 %s1561, %s1562
    %s1564 = sand.u32 51, %s1563
    %s1565 = sshrl.u32 %s1564, 2
    %s1566 = sor.u32 %s1564, %s1565
    %s1567 = sand.u32 15, %s1566
    %v1568 = vld [vmem:[%s1558] sm:%s1567]
    %v1569 = vunpack.c.l.bf16 %v1568
    %v1570 = vunpack.c.h.bf16 %v1568
    %s1571 = scalar_lea.vmem [#allocation1], 240
    %1572 = vst [vmem:[%s1571] sm:%s4] %v1569
    %s1573 = smul.addr 4, 29
    %s1574 = scalar_lea.vmem %s0, %s1573
    %s1575 = sshrl.u32 %s4, 1
    %s1576 = sor.u32 %s4, %s1575
    %s1577 = sand.u32 %s1576, 85
    %s1578 = sshrl.u32 %s1577, 1
    %s1579 = sor.u32 %s1577, %s1578
    %s1580 = sand.u32 51, %s1579
    %s1581 = sshrl.u32 %s1580, 2
    %s1582 = sor.u32 %s1580, %s1581
    %s1583 = sand.u32 15, %s1582
    %v1584 = vld [vmem:[%s1574] sm:%s1583]
    %v1585 = vunpack.c.l.bf16 %v1584
    %v1586 = vunpack.c.h.bf16 %v1584
    %s1587 = scalar_lea.vmem [#allocation1], 232
    %1588 = vst [vmem:[%s1587] sm:%s4] %v1585
    %s1589 = smul.addr 4, 28
    %s1590 = scalar_lea.vmem %s0, %s1589
    %s1591 = sshrl.u32 %s4, 1
    %s1592 = sor.u32 %s4, %s1591
    %s1593 = sand.u32 %s1592, 85
    %s1594 = sshrl.u32 %s1593, 1
    %s1595 = sor.u32 %s1593, %s1594
    %s1596 = sand.u32 51, %s1595
    %s1597 = sshrl.u32 %s1596, 2
    %s1598 = sor.u32 %s1596, %s1597
    %s1599 = sand.u32 15, %s1598
    %v1600 = vld [vmem:[%s1590] sm:%s1599]
    %v1601 = vunpack.c.l.bf16 %v1600
    %v1602 = vunpack.c.h.bf16 %v1600
    %s1603 = scalar_lea.vmem [#allocation1], 224
    %1604 = vst [vmem:[%s1603] sm:%s4] %v1601
    %s1605 = smul.addr 4, 27
    %s1606 = scalar_lea.vmem %s0, %s1605
    %s1607 = sshrl.u32 %s4, 1
    %s1608 = sor.u32 %s4, %s1607
    %s1609 = sand.u32 %s1608, 85
    %s1610 = sshrl.u32 %s1609, 1
    %s1611 = sor.u32 %s1609, %s1610
    %s1612 = sand.u32 51, %s1611
    %s1613 = sshrl.u32 %s1612, 2
    %s1614 = sor.u32 %s1612, %s1613
    %s1615 = sand.u32 15, %s1614
    %v1616 = vld [vmem:[%s1606] sm:%s1615]
    %v1617 = vunpack.c.l.bf16 %v1616
    %v1618 = vunpack.c.h.bf16 %v1616
    %s1619 = scalar_lea.vmem [#allocation1], 216
    %1620 = vst [vmem:[%s1619] sm:%s4] %v1617
    %s1621 = smul.addr 4, 26
    %s1622 = scalar_lea.vmem %s0, %s1621
    %s1623 = sshrl.u32 %s4, 1
    %s1624 = sor.u32 %s4, %s1623
    %s1625 = sand.u32 %s1624, 85
    %s1626 = sshrl.u32 %s1625, 1
    %s1627 = sor.u32 %s1625, %s1626
    %s1628 = sand.u32 51, %s1627
    %s1629 = sshrl.u32 %s1628, 2
    %s1630 = sor.u32 %s1628, %s1629
    %s1631 = sand.u32 15, %s1630
    %v1632 = vld [vmem:[%s1622] sm:%s1631]
    %v1633 = vunpack.c.l.bf16 %v1632
    %v1634 = vunpack.c.h.bf16 %v1632
    %s1635 = scalar_lea.vmem [#allocation1], 208
    %1636 = vst [vmem:[%s1635] sm:%s4] %v1633
    %s1637 = smul.addr 4, 25
    %s1638 = scalar_lea.vmem %s0, %s1637
    %s1639 = sshrl.u32 %s4, 1
    %s1640 = sor.u32 %s4, %s1639
    %s1641 = sand.u32 %s1640, 85
    %s1642 = sshrl.u32 %s1641, 1
    %s1643 = sor.u32 %s1641, %s1642
    %s1644 = sand.u32 51, %s1643
    %s1645 = sshrl.u32 %s1644, 2
    %s1646 = sor.u32 %s1644, %s1645
    %s1647 = sand.u32 15, %s1646
    %v1648 = vld [vmem:[%s1638] sm:%s1647]
    %v1649 = vunpack.c.l.bf16 %v1648
    %v1650 = vunpack.c.h.bf16 %v1648
    %s1651 = scalar_lea.vmem [#allocation1], 200
    %1652 = vst [vmem:[%s1651] sm:%s4] %v1649
    %s1653 = smul.addr 4, 24
    %s1654 = scalar_lea.vmem %s0, %s1653
    %s1655 = sshrl.u32 %s4, 1
    %s1656 = sor.u32 %s4, %s1655
    %s1657 = sand.u32 %s1656, 85
    %s1658 = sshrl.u32 %s1657, 1
    %s1659 = sor.u32 %s1657, %s1658
    %s1660 = sand.u32 51, %s1659
    %s1661 = sshrl.u32 %s1660, 2
    %s1662 = sor.u32 %s1660, %s1661
    %s1663 = sand.u32 15, %s1662
    %v1664 = vld [vmem:[%s1654] sm:%s1663]
    %v1665 = vunpack.c.l.bf16 %v1664
    %v1666 = vunpack.c.h.bf16 %v1664
    %s1667 = scalar_lea.vmem [#allocation1], 192
    %1668 = vst [vmem:[%s1667] sm:%s4] %v1665
    %s1669 = smul.addr 4, 23
    %s1670 = scalar_lea.vmem %s0, %s1669
    %s1671 = sshrl.u32 %s4, 1
    %s1672 = sor.u32 %s4, %s1671
    %s1673 = sand.u32 %s1672, 85
    %s1674 = sshrl.u32 %s1673, 1
    %s1675 = sor.u32 %s1673, %s1674
    %s1676 = sand.u32 51, %s1675
    %s1677 = sshrl.u32 %s1676, 2
    %s1678 = sor.u32 %s1676, %s1677
    %s1679 = sand.u32 15, %s1678
    %v1680 = vld [vmem:[%s1670] sm:%s1679]
    %v1681 = vunpack.c.l.bf16 %v1680
    %v1682 = vunpack.c.h.bf16 %v1680
    %s1683 = scalar_lea.vmem [#allocation1], 184
    %1684 = vst [vmem:[%s1683] sm:%s4] %v1681
    %s1685 = smul.addr 4, 22
    %s1686 = scalar_lea.vmem %s0, %s1685
    %s1687 = sshrl.u32 %s4, 1
    %s1688 = sor.u32 %s4, %s1687
    %s1689 = sand.u32 %s1688, 85
    %s1690 = sshrl.u32 %s1689, 1
    %s1691 = sor.u32 %s1689, %s1690
    %s1692 = sand.u32 51, %s1691
    %s1693 = sshrl.u32 %s1692, 2
    %s1694 = sor.u32 %s1692, %s1693
    %s1695 = sand.u32 15, %s1694
    %v1696 = vld [vmem:[%s1686] sm:%s1695]
    %v1697 = vunpack.c.l.bf16 %v1696
    %v1698 = vunpack.c.h.bf16 %v1696
    %s1699 = scalar_lea.vmem [#allocation1], 176
    %1700 = vst [vmem:[%s1699] sm:%s4] %v1697
    %s1701 = smul.addr 4, 21
    %s1702 = scalar_lea.vmem %s0, %s1701
    %s1703 = sshrl.u32 %s4, 1
    %s1704 = sor.u32 %s4, %s1703
    %s1705 = sand.u32 %s1704, 85
    %s1706 = sshrl.u32 %s1705, 1
    %s1707 = sor.u32 %s1705, %s1706
    %s1708 = sand.u32 51, %s1707
    %s1709 = sshrl.u32 %s1708, 2
    %s1710 = sor.u32 %s1708, %s1709
    %s1711 = sand.u32 15, %s1710
    %v1712 = vld [vmem:[%s1702] sm:%s1711]
    %v1713 = vunpack.c.l.bf16 %v1712
    %v1714 = vunpack.c.h.bf16 %v1712
    %s1715 = scalar_lea.vmem [#allocation1], 168
    %1716 = vst [vmem:[%s1715] sm:%s4] %v1713
    %s1717 = smul.addr 4, 20
    %s1718 = scalar_lea.vmem %s0, %s1717
    %s1719 = sshrl.u32 %s4, 1
    %s1720 = sor.u32 %s4, %s1719
    %s1721 = sand.u32 %s1720, 85
    %s1722 = sshrl.u32 %s1721, 1
    %s1723 = sor.u32 %s1721, %s1722
    %s1724 = sand.u32 51, %s1723
    %s1725 = sshrl.u32 %s1724, 2
    %s1726 = sor.u32 %s1724, %s1725
    %s1727 = sand.u32 15, %s1726
    %v1728 = vld [vmem:[%s1718] sm:%s1727]
    %v1729 = vunpack.c.l.bf16 %v1728
    %v1730 = vunpack.c.h.bf16 %v1728
    %s1731 = scalar_lea.vmem [#allocation1], 160
    %1732 = vst [vmem:[%s1731] sm:%s4] %v1729
    %s1733 = smul.addr 4, 19
    %s1734 = scalar_lea.vmem %s0, %s1733
    %s1735 = sshrl.u32 %s4, 1
    %s1736 = sor.u32 %s4, %s1735
    %s1737 = sand.u32 %s1736, 85
    %s1738 = sshrl.u32 %s1737, 1
    %s1739 = sor.u32 %s1737, %s1738
    %s1740 = sand.u32 51, %s1739
    %s1741 = sshrl.u32 %s1740, 2
    %s1742 = sor.u32 %s1740, %s1741
    %s1743 = sand.u32 15, %s1742
    %v1744 = vld [vmem:[%s1734] sm:%s1743]
    %v1745 = vunpack.c.l.bf16 %v1744
    %v1746 = vunpack.c.h.bf16 %v1744
    %s1747 = scalar_lea.vmem [#allocation1], 152
    %1748 = vst [vmem:[%s1747] sm:%s4] %v1745
    %s1749 = smul.addr 4, 18
    %s1750 = scalar_lea.vmem %s0, %s1749
    %s1751 = sshrl.u32 %s4, 1
    %s1752 = sor.u32 %s4, %s1751
    %s1753 = sand.u32 %s1752, 85
    %s1754 = sshrl.u32 %s1753, 1
    %s1755 = sor.u32 %s1753, %s1754
    %s1756 = sand.u32 51, %s1755
    %s1757 = sshrl.u32 %s1756, 2
    %s1758 = sor.u32 %s1756, %s1757
    %s1759 = sand.u32 15, %s1758
    %v1760 = vld [vmem:[%s1750] sm:%s1759]
    %v1761 = vunpack.c.l.bf16 %v1760
    %v1762 = vunpack.c.h.bf16 %v1760
    %s1763 = scalar_lea.vmem [#allocation1], 144
    %1764 = vst [vmem:[%s1763] sm:%s4] %v1761
    %s1765 = smul.addr 4, 17
    %s1766 = scalar_lea.vmem %s0, %s1765
    %s1767 = sshrl.u32 %s4, 1
    %s1768 = sor.u32 %s4, %s1767
    %s1769 = sand.u32 %s1768, 85
    %s1770 = sshrl.u32 %s1769, 1
    %s1771 = sor.u32 %s1769, %s1770
    %s1772 = sand.u32 51, %s1771
    %s1773 = sshrl.u32 %s1772, 2
    %s1774 = sor.u32 %s1772, %s1773
    %s1775 = sand.u32 15, %s1774
    %v1776 = vld [vmem:[%s1766] sm:%s1775]
    %v1777 = vunpack.c.l.bf16 %v1776
    %v1778 = vunpack.c.h.bf16 %v1776
    %s1779 = scalar_lea.vmem [#allocation1], 136
    %1780 = vst [vmem:[%s1779] sm:%s4] %v1777
    %s1781 = smul.addr 4, 16
    %s1782 = scalar_lea.vmem %s0, %s1781
    %s1783 = sshrl.u32 %s4, 1
    %s1784 = sor.u32 %s4, %s1783
    %s1785 = sand.u32 %s1784, 85
    %s1786 = sshrl.u32 %s1785, 1
    %s1787 = sor.u32 %s1785, %s1786
    %s1788 = sand.u32 51, %s1787
    %s1789 = sshrl.u32 %s1788, 2
    %s1790 = sor.u32 %s1788, %s1789
    %s1791 = sand.u32 15, %s1790
    %v1792 = vld [vmem:[%s1782] sm:%s1791]
    %v1793 = vunpack.c.l.bf16 %v1792
    %v1794 = vunpack.c.h.bf16 %v1792
    %s1795 = scalar_lea.vmem [#allocation1], 128
    %1796 = vst [vmem:[%s1795] sm:%s4] %v1793
    %s1797 = smul.addr 4, 15
    %s1798 = scalar_lea.vmem %s0, %s1797
    %s1799 = sshrl.u32 %s4, 1
    %s1800 = sor.u32 %s4, %s1799
    %s1801 = sand.u32 %s1800, 85
    %s1802 = sshrl.u32 %s1801, 1
    %s1803 = sor.u32 %s1801, %s1802
    %s1804 = sand.u32 51, %s1803
    %s1805 = sshrl.u32 %s1804, 2
    %s1806 = sor.u32 %s1804, %s1805
    %s1807 = sand.u32 15, %s1806
    %v1808 = vld [vmem:[%s1798] sm:%s1807]
    %v1809 = vunpack.c.l.bf16 %v1808
    %v1810 = vunpack.c.h.bf16 %v1808
    %s1811 = scalar_lea.vmem [#allocation1], 120
    %1812 = vst [vmem:[%s1811] sm:%s4] %v1809
    %s1813 = smul.addr 4, 14
    %s1814 = scalar_lea.vmem %s0, %s1813
    %s1815 = sshrl.u32 %s4, 1
    %s1816 = sor.u32 %s4, %s1815
    %s1817 = sand.u32 %s1816, 85
    %s1818 = sshrl.u32 %s1817, 1
    %s1819 = sor.u32 %s1817, %s1818
    %s1820 = sand.u32 51, %s1819
    %s1821 = sshrl.u32 %s1820, 2
    %s1822 = sor.u32 %s1820, %s1821
    %s1823 = sand.u32 15, %s1822
    %v1824 = vld [vmem:[%s1814] sm:%s1823]
    %v1825 = vunpack.c.l.bf16 %v1824
    %v1826 = vunpack.c.h.bf16 %v1824
    %s1827 = scalar_lea.vmem [#allocation1], 112
    %1828 = vst [vmem:[%s1827] sm:%s4] %v1825
    %s1829 = smul.addr 4, 13
    %s1830 = scalar_lea.vmem %s0, %s1829
    %s1831 = sshrl.u32 %s4, 1
    %s1832 = sor.u32 %s4, %s1831
    %s1833 = sand.u32 %s1832, 85
    %s1834 = sshrl.u32 %s1833, 1
    %s1835 = sor.u32 %s1833, %s1834
    %s1836 = sand.u32 51, %s1835
    %s1837 = sshrl.u32 %s1836, 2
    %s1838 = sor.u32 %s1836, %s1837
    %s1839 = sand.u32 15, %s1838
    %v1840 = vld [vmem:[%s1830] sm:%s1839]
    %v1841 = vunpack.c.l.bf16 %v1840
    %v1842 = vunpack.c.h.bf16 %v1840
    %s1843 = scalar_lea.vmem [#allocation1], 104
    %1844 = vst [vmem:[%s1843] sm:%s4] %v1841
    %s1845 = smul.addr 4, 12
    %s1846 = scalar_lea.vmem %s0, %s1845
    %s1847 = sshrl.u32 %s4, 1
    %s1848 = sor.u32 %s4, %s1847
    %s1849 = sand.u32 %s1848, 85
    %s1850 = sshrl.u32 %s1849, 1
    %s1851 = sor.u32 %s1849, %s1850
    %s1852 = sand.u32 51, %s1851
    %s1853 = sshrl.u32 %s1852, 2
    %s1854 = sor.u32 %s1852, %s1853
    %s1855 = sand.u32 15, %s1854
    %v1856 = vld [vmem:[%s1846] sm:%s1855]
    %v1857 = vunpack.c.l.bf16 %v1856
    %v1858 = vunpack.c.h.bf16 %v1856
    %s1859 = scalar_lea.vmem [#allocation1], 96
    %1860 = vst [vmem:[%s1859] sm:%s4] %v1857
    %s1861 = smul.addr 4, 11
    %s1862 = scalar_lea.vmem %s0, %s1861
    %s1863 = sshrl.u32 %s4, 1
    %s1864 = sor.u32 %s4, %s1863
    %s1865 = sand.u32 %s1864, 85
    %s1866 = sshrl.u32 %s1865, 1
    %s1867 = sor.u32 %s1865, %s1866
    %s1868 = sand.u32 51, %s1867
    %s1869 = sshrl.u32 %s1868, 2
    %s1870 = sor.u32 %s1868, %s1869
    %s1871 = sand.u32 15, %s1870
    %v1872 = vld [vmem:[%s1862] sm:%s1871]
    %v1873 = vunpack.c.l.bf16 %v1872
    %v1874 = vunpack.c.h.bf16 %v1872
    %s1875 = scalar_lea.vmem [#allocation1], 88
    %1876 = vst [vmem:[%s1875] sm:%s4] %v1873
    %s1877 = smul.addr 4, 10
    %s1878 = scalar_lea.vmem %s0, %s1877
    %s1879 = sshrl.u32 %s4, 1
    %s1880 = sor.u32 %s4, %s1879
    %s1881 = sand.u32 %s1880, 85
    %s1882 = sshrl.u32 %s1881, 1
    %s1883 = sor.u32 %s1881, %s1882
    %s1884 = sand.u32 51, %s1883
    %s1885 = sshrl.u32 %s1884, 2
    %s1886 = sor.u32 %s1884, %s1885
    %s1887 = sand.u32 15, %s1886
    %v1888 = vld [vmem:[%s1878] sm:%s1887]
    %v1889 = vunpack.c.l.bf16 %v1888
    %v1890 = vunpack.c.h.bf16 %v1888
    %s1891 = scalar_lea.vmem [#allocation1], 80
    %1892 = vst [vmem:[%s1891] sm:%s4] %v1889
    %s1893 = smul.addr 4, 9
    %s1894 = scalar_lea.vmem %s0, %s1893
    %s1895 = sshrl.u32 %s4, 1
    %s1896 = sor.u32 %s4, %s1895
    %s1897 = sand.u32 %s1896, 85
    %s1898 = sshrl.u32 %s1897, 1
    %s1899 = sor.u32 %s1897, %s1898
    %s1900 = sand.u32 51, %s1899
    %s1901 = sshrl.u32 %s1900, 2
    %s1902 = sor.u32 %s1900, %s1901
    %s1903 = sand.u32 15, %s1902
    %v1904 = vld [vmem:[%s1894] sm:%s1903]
    %v1905 = vunpack.c.l.bf16 %v1904
    %v1906 = vunpack.c.h.bf16 %v1904
    %s1907 = scalar_lea.vmem [#allocation1], 72
    %1908 = vst [vmem:[%s1907] sm:%s4] %v1905
    %s1909 = smul.addr 4, 8
    %s1910 = scalar_lea.vmem %s0, %s1909
    %s1911 = sshrl.u32 %s4, 1
    %s1912 = sor.u32 %s4, %s1911
    %s1913 = sand.u32 %s1912, 85
    %s1914 = sshrl.u32 %s1913, 1
    %s1915 = sor.u32 %s1913, %s1914
    %s1916 = sand.u32 51, %s1915
    %s1917 = sshrl.u32 %s1916, 2
    %s1918 = sor.u32 %s1916, %s1917
    %s1919 = sand.u32 15, %s1918
    %v1920 = vld [vmem:[%s1910] sm:%s1919]
    %v1921 = vunpack.c.l.bf16 %v1920
    %v1922 = vunpack.c.h.bf16 %v1920
    %s1923 = scalar_lea.vmem [#allocation1], 64
    %1924 = vst [vmem:[%s1923] sm:%s4] %v1921
    %s1925 = smul.addr 4, 7
    %s1926 = scalar_lea.vmem %s0, %s1925
    %s1927 = sshrl.u32 %s4, 1
    %s1928 = sor.u32 %s4, %s1927
    %s1929 = sand.u32 %s1928, 85
    %s1930 = sshrl.u32 %s1929, 1
    %s1931 = sor.u32 %s1929, %s1930
    %s1932 = sand.u32 51, %s1931
    %s1933 = sshrl.u32 %s1932, 2
    %s1934 = sor.u32 %s1932, %s1933
    %s1935 = sand.u32 15, %s1934
    %v1936 = vld [vmem:[%s1926] sm:%s1935]
    %v1937 = vunpack.c.l.bf16 %v1936
    %v1938 = vunpack.c.h.bf16 %v1936
    %s1939 = scalar_lea.vmem [#allocation1], 56
    %1940 = vst [vmem:[%s1939] sm:%s4] %v1937
    %s1941 = smul.addr 4, 6
    %s1942 = scalar_lea.vmem %s0, %s1941
    %s1943 = sshrl.u32 %s4, 1
    %s1944 = sor.u32 %s4, %s1943
    %s1945 = sand.u32 %s1944, 85
    %s1946 = sshrl.u32 %s1945, 1
    %s1947 = sor.u32 %s1945, %s1946
    %s1948 = sand.u32 51, %s1947
    %s1949 = sshrl.u32 %s1948, 2
    %s1950 = sor.u32 %s1948, %s1949
    %s1951 = sand.u32 15, %s1950
    %v1952 = vld [vmem:[%s1942] sm:%s1951]
    %v1953 = vunpack.c.l.bf16 %v1952
    %v1954 = vunpack.c.h.bf16 %v1952
    %s1955 = scalar_lea.vmem [#allocation1], 48
    %1956 = vst [vmem:[%s1955] sm:%s4] %v1953
    %s1957 = smul.addr 4, 5
    %s1958 = scalar_lea.vmem %s0, %s1957
    %s1959 = sshrl.u32 %s4, 1
    %s1960 = sor.u32 %s4, %s1959
    %s1961 = sand.u32 %s1960, 85
    %s1962 = sshrl.u32 %s1961, 1
    %s1963 = sor.u32 %s1961, %s1962
    %s1964 = sand.u32 51, %s1963
    %s1965 = sshrl.u32 %s1964, 2
    %s1966 = sor.u32 %s1964, %s1965
    %s1967 = sand.u32 15, %s1966
    %v1968 = vld [vmem:[%s1958] sm:%s1967]
    %v1969 = vunpack.c.l.bf16 %v1968
    %v1970 = vunpack.c.h.bf16 %v1968
    %s1971 = scalar_lea.vmem [#allocation1], 40
    %1972 = vst [vmem:[%s1971] sm:%s4] %v1969
    %s1973 = smul.addr 4, 4
    %s1974 = scalar_lea.vmem %s0, %s1973
    %s1975 = sshrl.u32 %s4, 1
    %s1976 = sor.u32 %s4, %s1975
    %s1977 = sand.u32 %s1976, 85
    %s1978 = sshrl.u32 %s1977, 1
    %s1979 = sor.u32 %s1977, %s1978
    %s1980 = sand.u32 51, %s1979
    %s1981 = sshrl.u32 %s1980, 2
    %s1982 = sor.u32 %s1980, %s1981
    %s1983 = sand.u32 15, %s1982
    %v1984 = vld [vmem:[%s1974] sm:%s1983]
    %v1985 = vunpack.c.l.bf16 %v1984
    %v1986 = vunpack.c.h.bf16 %v1984
    %s1987 = scalar_lea.vmem [#allocation1], 32
    %1988 = vst [vmem:[%s1987] sm:%s4] %v1985
    %s1989 = smul.addr 4, 3
    %s1990 = scalar_lea.vmem %s0, %s1989
    %s1991 = sshrl.u32 %s4, 1
    %s1992 = sor.u32 %s4, %s1991
    %s1993 = sand.u32 %s1992, 85
    %s1994 = sshrl.u32 %s1993, 1
    %s1995 = sor.u32 %s1993, %s1994
    %s1996 = sand.u32 51, %s1995
    %s1997 = sshrl.u32 %s1996, 2
    %s1998 = sor.u32 %s1996, %s1997
    %s1999 = sand.u32 15, %s1998
    %v2000 = vld [vmem:[%s1990] sm:%s1999]
    %v2001 = vunpack.c.l.bf16 %v2000
    %v2002 = vunpack.c.h.bf16 %v2000
    %s2003 = scalar_lea.vmem [#allocation1], 24
    %2004 = vst [vmem:[%s2003] sm:%s4] %v2001
    %s2005 = smul.addr 4, 2
    %s2006 = scalar_lea.vmem %s0, %s2005
    %s2007 = sshrl.u32 %s4, 1
    %s2008 = sor.u32 %s4, %s2007
    %s2009 = sand.u32 %s2008, 85
    %s2010 = sshrl.u32 %s2009, 1
    %s2011 = sor.u32 %s2009, %s2010
    %s2012 = sand.u32 51, %s2011
    %s2013 = sshrl.u32 %s2012, 2
    %s2014 = sor.u32 %s2012, %s2013
    %s2015 = sand.u32 15, %s2014
    %v2016 = vld [vmem:[%s2006] sm:%s2015]
    %v2017 = vunpack.c.l.bf16 %v2016
    %v2018 = vunpack.c.h.bf16 %v2016
    %s2019 = scalar_lea.vmem [#allocation1], 16
    %2020 = vst [vmem:[%s2019] sm:%s4] %v2017
    %s2021 = scalar_lea.vmem %s0, 4
    %s2022 = sshrl.u32 %s4, 1
    %s2023 = sor.u32 %s4, %s2022
    %s2024 = sand.u32 %s2023, 85
    %s2025 = sshrl.u32 %s2024, 1
    %s2026 = sor.u32 %s2024, %s2025
    %s2027 = sand.u32 51, %s2026
    %s2028 = sshrl.u32 %s2027, 2
    %s2029 = sor.u32 %s2027, %s2028
    %s2030 = sand.u32 15, %s2029
    %v2031 = vld [vmem:[%s2021] sm:%s2030]
    %v2032 = vunpack.c.l.bf16 %v2031
    %v2033 = vunpack.c.h.bf16 %v2031
    %s2034 = scalar_lea.vmem [#allocation1], 8
    %2035 = vst [vmem:[%s2034] sm:%s4] %v2032
    %s2036 = sshrl.u32 %s4, 1
    %s2037 = sor.u32 %s4, %s2036
    %s2038 = sand.u32 %s2037, 85
    %s2039 = sshrl.u32 %s2038, 1
    %s2040 = sor.u32 %s2038, %s2039
    %s2041 = sand.u32 51, %s2040
    %s2042 = sshrl.u32 %s2041, 2
    %s2043 = sor.u32 %s2041, %s2042
    %s2044 = sand.u32 15, %s2043
    %v2045 = vld [vmem:[%s0] sm:%s2044]
    %v2046 = vunpack.c.l.bf16 %v2045
    %v2047 = vunpack.c.h.bf16 %v2045
    %2048 = vst [vmem:[#allocation1] sm:%s4] %v2046
    %s2049 = smov 3
    %v2050 = vld [vmem:[#allocation1] ss:$16 sm:%s2049]
    %s2051 = smov 12
    %v2052 = vld [vmem:[#allocation1] ss:$16 sm:%s2051]
    %vm2053 = vcmask 1043458
    %v2054 = vsel %vm2053, %v2052, %v2050
    %s2055 = smov 48
    %v2056 = vld [vmem:[#allocation1] ss:$16 sm:%s2055]
    %vm2057 = vcmask 1045508
    %v2058 = vsel %vm2057, %v2056, %v2054
    %s2059 = smov 192
    %v2060 = vld [vmem:[#allocation1] ss:$16 sm:%s2059]
    %vm2061 = vcmask 1047558
    %v2062 = vsel %vm2061, %v2060, %v2058
    %vm2063 = vcmask 31744
    %2064 = vst.msk [vmem:[#allocation0] sm:$0xff] %vm2063, %v2062
    %s2065 = scalar_lea.vmem [#allocation1], 128
    %s2066 = smov 3
    %v2067 = vld [vmem:[%s2065] ss:$16 sm:%s2066]
    %s2068 = scalar_lea.vmem [#allocation1], 128
    %s2069 = smov 12
    %v2070 = vld [vmem:[%s2068] ss:$16 sm:%s2069]
    %vm2071 = vcmask 1043458
    %v2072 = vsel %vm2071, %v2070, %v2067
    %s2073 = scalar_lea.vmem [#allocation1], 128
    %s2074 = smov 48
    %v2075 = vld [vmem:[%s2073] ss:$16 sm:%s2074]
    %vm2076 = vcmask 1045508
    %v2077 = vsel %vm2076, %v2075, %v2072
    %s2078 = scalar_lea.vmem [#allocation1], 128
    %s2079 = smov 192
    %v2080 = vld [vmem:[%s2078] ss:$16 sm:%s2079]
    %vm2081 = vcmask 1047558
    %v2082 = vsel %vm2081, %v2080, %v2077
    %vm2083 = vcmask 31744
    %s2084 = scalar_lea.vmem [#allocation0], 8
    %2085 = vst.msk [vmem:[%s2084] sm:$0xff] %vm2083, %v2082
    %s2086 = scalar_lea.vmem [#allocation1], 256
    %s2087 = smov 3
    %v2088 = vld [vmem:[%s2086] ss:$16 sm:%s2087]
    %s2089 = scalar_lea.vmem [#allocation1], 256
    %s2090 = smov 12
    %v2091 = vld [vmem:[%s2089] ss:$16 sm:%s2090]
    %vm2092 = vcmask 1043458
    %v2093 = vsel %vm2092, %v2091, %v2088
    %s2094 = scalar_lea.vmem [#allocation1], 256
    %s2095 = smov 48
    %v2096 = vld [vmem:[%s2094] ss:$16 sm:%s2095]
    %vm2097 = vcmask 1045508
    %v2098 = vsel %vm2097, %v2096, %v2093
    %s2099 = scalar_lea.vmem [#allocation1], 256
    %s2100 = smov 192
    %v2101 = vld [vmem:[%s2099] ss:$16 sm:%s2100]
    %vm2102 = vcmask 1047558
    %v2103 = vsel %vm2102, %v2101, %v2098
    %vm2104 = vcmask 31744
    %s2105 = scalar_lea.vmem [#allocation0], 16
    %2106 = vst.msk [vmem:[%s2105] sm:$0xff] %vm2104, %v2103
    %s2107 = scalar_lea.vmem [#allocation1], 384
    %s2108 = smov 3
    %v2109 = vld [vmem:[%s2107] ss:$16 sm:%s2108]
    %s2110 = scalar_lea.vmem [#allocation1], 384
    %s2111 = smov 12
    %v2112 = vld [vmem:[%s2110] ss:$16 sm:%s2111]
    %vm2113 = vcmask 1043458
    %v2114 = vsel %vm2113, %v2112, %v2109
    %s2115 = scalar_lea.vmem [#allocation1], 384
    %s2116 = smov 48
    %v2117 = vld [vmem:[%s2115] ss:$16 sm:%s2116]
    %vm2118 = vcmask 1045508
    %v2119 = vsel %vm2118, %v2117, %v2114
    %s2120 = scalar_lea.vmem [#allocation1], 384
    %s2121 = smov 192
    %v2122 = vld [vmem:[%s2120] ss:$16 sm:%s2121]
    %vm2123 = vcmask 1047558
    %v2124 = vsel %vm2123, %v2122, %v2119
    %vm2125 = vcmask 31744
    %s2126 = scalar_lea.vmem [#allocation0], 24
    %2127 = vst.msk [vmem:[%s2126] sm:$0xff] %vm2125, %v2124
    %s2128 = scalar_lea.vmem [#allocation1], 512
    %s2129 = smov 3
    %v2130 = vld [vmem:[%s2128] ss:$16 sm:%s2129]
    %s2131 = scalar_lea.vmem [#allocation1], 512
    %s2132 = smov 12
    %v2133 = vld [vmem:[%s2131] ss:$16 sm:%s2132]
    %vm2134 = vcmask 1043458
    %v2135 = vsel %vm2134, %v2133, %v2130
    %s2136 = scalar_lea.vmem [#allocation1], 512
    %s2137 = smov 48
    %v2138 = vld [vmem:[%s2136] ss:$16 sm:%s2137]
    %vm2139 = vcmask 1045508
    %v2140 = vsel %vm2139, %v2138, %v2135
    %s2141 = scalar_lea.vmem [#allocation1], 512
    %s2142 = smov 192
    %v2143 = vld [vmem:[%s2141] ss:$16 sm:%s2142]
    %vm2144 = vcmask 1047558
    %v2145 = vsel %vm2144, %v2143, %v2140
    %vm2146 = vcmask 31744
    %s2147 = scalar_lea.vmem [#allocation0], 32
    %2148 = vst.msk [vmem:[%s2147] sm:$0xff] %vm2146, %v2145
    %s2149 = scalar_lea.vmem [#allocation1], 640
    %s2150 = smov 3
    %v2151 = vld [vmem:[%s2149] ss:$16 sm:%s2150]
    %s2152 = scalar_lea.vmem [#allocation1], 640
    %s2153 = smov 12
    %v2154 = vld [vmem:[%s2152] ss:$16 sm:%s2153]
    %vm2155 = vcmask 1043458
    %v2156 = vsel %vm2155, %v2154, %v2151
    %s2157 = scalar_lea.vmem [#allocation1], 640
    %s2158 = smov 48
    %v2159 = vld [vmem:[%s2157] ss:$16 sm:%s2158]
    %vm2160 = vcmask 1045508
    %v2161 = vsel %vm2160, %v2159, %v2156
    %s2162 = scalar_lea.vmem [#allocation1], 640
    %s2163 = smov 192
    %v2164 = vld [vmem:[%s2162] ss:$16 sm:%s2163]
    %vm2165 = vcmask 1047558
    %v2166 = vsel %vm2165, %v2164, %v2161
    %vm2167 = vcmask 31744
    %s2168 = scalar_lea.vmem [#allocation0], 40
    %2169 = vst.msk [vmem:[%s2168] sm:$0xff] %vm2167, %v2166
    %s2170 = scalar_lea.vmem [#allocation1], 768
    %s2171 = smov 3
    %v2172 = vld [vmem:[%s2170] ss:$16 sm:%s2171]
    %s2173 = scalar_lea.vmem [#allocation1], 768
    %s2174 = smov 12
    %v2175 = vld [vmem:[%s2173] ss:$16 sm:%s2174]
    %vm2176 = vcmask 1043458
    %v2177 = vsel %vm2176, %v2175, %v2172
    %s2178 = scalar_lea.vmem [#allocation1], 768
    %s2179 = smov 48
    %v2180 = vld [vmem:[%s2178] ss:$16 sm:%s2179]
    %vm2181 = vcmask 1045508
    %v2182 = vsel %vm2181, %v2180, %v2177
    %s2183 = scalar_lea.vmem [#allocation1], 768
    %s2184 = smov 192
    %v2185 = vld [vmem:[%s2183] ss:$16 sm:%s2184]
    %vm2186 = vcmask 1047558
    %v2187 = vsel %vm2186, %v2185, %v2182
    %vm2188 = vcmask 31744
    %s2189 = scalar_lea.vmem [#allocation0], 48
    %2190 = vst.msk [vmem:[%s2189] sm:$0xff] %vm2188, %v2187
    %s2191 = scalar_lea.vmem [#allocation1], 896
    %s2192 = smov 3
    %v2193 = vld [vmem:[%s2191] ss:$16 sm:%s2192]
    %s2194 = scalar_lea.vmem [#allocation1], 896
    %s2195 = smov 12
    %v2196 = vld [vmem:[%s2194] ss:$16 sm:%s2195]
    %vm2197 = vcmask 1043458
    %v2198 = vsel %vm2197, %v2196, %v2193
    %s2199 = scalar_lea.vmem [#allocation1], 896
    %s2200 = smov 48
    %v2201 = vld [vmem:[%s2199] ss:$16 sm:%s2200]
    %vm2202 = vcmask 1045508
    %v2203 = vsel %vm2202, %v2201, %v2198
    %s2204 = scalar_lea.vmem [#allocation1], 896
    %s2205 = smov 192
    %v2206 = vld [vmem:[%s2204] ss:$16 sm:%s2205]
    %vm2207 = vcmask 1047558
    %v2208 = vsel %vm2207, %v2206, %v2203
    %vm2209 = vcmask 31744
    %s2210 = scalar_lea.vmem [#allocation0], 56
    %2211 = vst.msk [vmem:[%s2210] sm:$0xff] %vm2209, %v2208
    %s2212 = scalar_lea.vmem [#allocation1], 15
    %s2213 = smov 3
    %v2214 = vld [vmem:[%s2212] ss:$16 sm:%s2213]
    %s2215 = scalar_lea.vmem [#allocation1], 15
    %s2216 = smov 12
    %v2217 = vld [vmem:[%s2215] ss:$16 sm:%s2216]
    %vm2218 = vcmask 1043458
    %v2219 = vsel %vm2218, %v2217, %v2214
    %s2220 = scalar_lea.vmem [#allocation1], 15
    %s2221 = smov 48
    %v2222 = vld [vmem:[%s2220] ss:$16 sm:%s2221]
    %vm2223 = vcmask 1045508
    %v2224 = vsel %vm2223, %v2222, %v2219
    %s2225 = scalar_lea.vmem [#allocation1], 15
    %s2226 = smov 192
    %v2227 = vld [vmem:[%s2225] ss:$16 sm:%s2226]
    %vm2228 = vcmask 1047558
    %v2229 = vsel %vm2228, %v2227, %v2224
    %2230 = vrot.lane.b32.xlu0 %v2229, 60
    %v2231 = vpop.permute.xlu0 %2230
    %vm2232 = vcmask 523744
    %2233 = vst.msk [vmem:[#allocation0] sm:$0xff] %vm2232, %v2231
    %s2234 = scalar_lea.vmem [#allocation1], 527
    %s2235 = smov 3
    %v2236 = vld [vmem:[%s2234] ss:$16 sm:%s2235]
    %s2237 = scalar_lea.vmem [#allocation1], 527
    %s2238 = smov 12
    %v2239 = vld [vmem:[%s2237] ss:$16 sm:%s2238]
    %vm2240 = vcmask 1043458
    %v2241 = vsel %vm2240, %v2239, %v2236
    %s2242 = scalar_lea.vmem [#allocation1], 527
    %s2243 = smov 48
    %v2244 = vld [vmem:[%s2242] ss:$16 sm:%s2243]
    %vm2245 = vcmask 1045508
    %v2246 = vsel %vm2245, %v2244, %v2241
    %s2247 = scalar_lea.vmem [#allocation1], 527
    %s2248 = smov 192
    %v2249 = vld [vmem:[%s2247] ss:$16 sm:%s2248]
    %vm2250 = vcmask 1047558
    %v2251 = vsel %vm2250, %v2249, %v2246
    %2252 = vrot.lane.b32.xlu0 %v2251, 60
    %v2253 = vpop.permute.xlu0 %2252
    %vm2254 = vcmask 523744
    %s2255 = scalar_lea.vmem [#allocation0], 32
    %2256 = vst.msk [vmem:[%s2255] sm:$0xff] %vm2254, %v2253
    %s2257 = scalar_lea.vmem [#allocation1], 143
    %s2258 = smov 3
    %v2259 = vld [vmem:[%s2257] ss:$16 sm:%s2258]
    %s2260 = scalar_lea.vmem [#allocation1], 143
    %s2261 = smov 12
    %v2262 = vld [vmem:[%s2260] ss:$16 sm:%s2261]
    %vm2263 = vcmask 1043458
    %v2264 = vsel %vm2263, %v2262, %v2259
    %s2265 = scalar_lea.vmem [#allocation1], 143
    %s2266 = smov 48
    %v2267 = vld [vmem:[%s2265] ss:$16 sm:%s2266]
    %vm2268 = vcmask 1045508
    %v2269 = vsel %vm2268, %v2267, %v2264
    %s2270 = scalar_lea.vmem [#allocation1], 143
    %s2271 = smov 192
    %v2272 = vld [vmem:[%s2270] ss:$16 sm:%s2271]
    %vm2273 = vcmask 1047558
    %v2274 = vsel %vm2273, %v2272, %v2269
    %2275 = vrot.lane.b32.xlu0 %v2274, 60
    %v2276 = vpop.permute.xlu0 %2275
    %vm2277 = vcmask 523744
    %s2278 = scalar_lea.vmem [#allocation0], 8
    %2279 = vst.msk [vmem:[%s2278] sm:$0xff] %vm2277, %v2276
    %s2280 = scalar_lea.vmem [#allocation1], 655
    %s2281 = smov 3
    %v2282 = vld [vmem:[%s2280] ss:$16 sm:%s2281]
    %s2283 = scalar_lea.vmem [#allocation1], 655
    %s2284 = smov 12
    %v2285 = vld [vmem:[%s2283] ss:$16 sm:%s2284]
    %vm2286 = vcmask 1043458
    %v2287 = vsel %vm2286, %v2285, %v2282
    %s2288 = scalar_lea.vmem [#allocation1], 655
    %s2289 = smov 48
    %v2290 = vld [vmem:[%s2288] ss:$16 sm:%s2289]
    %vm2291 = vcmask 1045508
    %v2292 = vsel %vm2291, %v2290, %v2287
    %s2293 = scalar_lea.vmem [#allocation1], 655
    %s2294 = smov 192
    %v2295 = vld [vmem:[%s2293] ss:$16 sm:%s2294]
    %vm2296 = vcmask 1047558
    %v2297 = vsel %vm2296, %v2295, %v2292
    %2298 = vrot.lane.b32.xlu0 %v2297, 60
    %v2299 = vpop.permute.xlu0 %2298
    %vm2300 = vcmask 523744
    %s2301 = scalar_lea.vmem [#allocation0], 40
    %2302 = vst.msk [vmem:[%s2301] sm:$0xff] %vm2300, %v2299
    %s2303 = scalar_lea.vmem [#allocation1], 271
    %s2304 = smov 3
    %v2305 = vld [vmem:[%s2303] ss:$16 sm:%s2304]
    %s2306 = scalar_lea.vmem [#allocation1], 271
    %s2307 = smov 12
    %v2308 = vld [vmem:[%s2306] ss:$16 sm:%s2307]
    %vm2309 = vcmask 1043458
    %v2310 = vsel %vm2309, %v2308, %v2305
    %s2311 = scalar_lea.vmem [#allocation1], 271
    %s2312 = smov 48
    %v2313 = vld [vmem:[%s2311] ss:$16 sm:%s2312]
    %vm2314 = vcmask 1045508
    %v2315 = vsel %vm2314, %v2313, %v2310
    %s2316 = scalar_lea.vmem [#allocation1], 271
    %s2317 = smov 192
    %v2318 = vld [vmem:[%s2316] ss:$16 sm:%s2317]
    %vm2319 = vcmask 1047558
    %v2320 = vsel %vm2319, %v2318, %v2315
    %2321 = vrot.lane.b32.xlu0 %v2320, 60
    %v2322 = vpop.permute.xlu0 %2321
    %vm2323 = vcmask 523744
    %s2324 = scalar_lea.vmem [#allocation0], 16
    %2325 = vst.msk [vmem:[%s2324] sm:$0xff] %vm2323, %v2322
    %s2326 = scalar_lea.vmem [#allocation1], 783
    %s2327 = smov 3
    %v2328 = vld [vmem:[%s2326] ss:$16 sm:%s2327]
    %s2329 = scalar_lea.vmem [#allocation1], 783
    %s2330 = smov 12
    %v2331 = vld [vmem:[%s2329] ss:$16 sm:%s2330]
    %vm2332 = vcmask 1043458
    %v2333 = vsel %vm2332, %v2331, %v2328
    %s2334 = scalar_lea.vmem [#allocation1], 783
    %s2335 = smov 48
    %v2336 = vld [vmem:[%s2334] ss:$16 sm:%s2335]
    %vm2337 = vcmask 1045508
    %v2338 = vsel %vm2337, %v2336, %v2333
    %s2339 = scalar_lea.vmem [#allocation1], 783
    %s2340 = smov 192
    %v2341 = vld [vmem:[%s2339] ss:$16 sm:%s2340]
    %vm2342 = vcmask 1047558
    %v2343 = vsel %vm2342, %v2341, %v2338
    %2344 = vrot.lane.b32.xlu0 %v2343, 60
    %v2345 = vpop.permute.xlu0 %2344
    %vm2346 = vcmask 523744
    %s2347 = scalar_lea.vmem [#allocation0], 48
    %2348 = vst.msk [vmem:[%s2347] sm:$0xff] %vm2346, %v2345
    %s2349 = scalar_lea.vmem [#allocation1], 399
    %s2350 = smov 3
    %v2351 = vld [vmem:[%s2349] ss:$16 sm:%s2350]
    %s2352 = scalar_lea.vmem [#allocation1], 399
    %s2353 = smov 12
    %v2354 = vld [vmem:[%s2352] ss:$16 sm:%s2353]
    %vm2355 = vcmask 1043458
    %v2356 = vsel %vm2355, %v2354, %v2351
    %s2357 = scalar_lea.vmem [#allocation1], 399
    %s2358 = smov 48
    %v2359 = vld [vmem:[%s2357] ss:$16 sm:%s2358]
    %vm2360 = vcmask 1045508
    %v2361 = vsel %vm2360, %v2359, %v2356
    %s2362 = scalar_lea.vmem [#allocation1], 399
    %s2363 = smov 192
    %v2364 = vld [vmem:[%s2362] ss:$16 sm:%s2363]
    %vm2365 = vcmask 1047558
    %v2366 = vsel %vm2365, %v2364, %v2361
    %2367 = vrot.lane.b32.xlu0 %v2366, 60
    %v2368 = vpop.permute.xlu0 %2367
    %vm2369 = vcmask 523744
    %s2370 = scalar_lea.vmem [#allocation0], 24
    %2371 = vst.msk [vmem:[%s2370] sm:$0xff] %vm2369, %v2368
    %s2372 = scalar_lea.vmem [#allocation1], 911
    %s2373 = smov 3
    %v2374 = vld [vmem:[%s2372] ss:$16 sm:%s2373]
    %s2375 = scalar_lea.vmem [#allocation1], 911
    %s2376 = smov 12
    %v2377 = vld [vmem:[%s2375] ss:$16 sm:%s2376]
    %vm2378 = vcmask 1043458
    %v2379 = vsel %vm2378, %v2377, %v2374
    %s2380 = scalar_lea.vmem [#allocation1], 911
    %s2381 = smov 48
    %v2382 = vld [vmem:[%s2380] ss:$16 sm:%s2381]
    %vm2383 = vcmask 1045508
    %v2384 = vsel %vm2383, %v2382, %v2379
    %s2385 = scalar_lea.vmem [#allocation1], 911
    %s2386 = smov 192
    %v2387 = vld [vmem:[%s2385] ss:$16 sm:%s2386]
    %vm2388 = vcmask 1047558
    %v2389 = vsel %vm2388, %v2387, %v2384
    %2390 = vrot.lane.b32.xlu0 %v2389, 60
    %v2391 = vpop.permute.xlu0 %2390
    %vm2392 = vcmask 523744
    %s2393 = scalar_lea.vmem [#allocation0], 56
    %2394 = vst.msk [vmem:[%s2393] sm:$0xff] %vm2392, %v2391
    %s2395 = scalar_lea.vmem [#allocation1], 14
    %s2396 = smov 3
    %v2397 = vld [vmem:[%s2395] ss:$16 sm:%s2396]
    %s2398 = scalar_lea.vmem [#allocation1], 14
    %s2399 = smov 12
    %v2400 = vld [vmem:[%s2398] ss:$16 sm:%s2399]
    %vm2401 = vcmask 1043458
    %v2402 = vsel %vm2401, %v2400, %v2397
    %s2403 = scalar_lea.vmem [#allocation1], 14
    %s2404 = smov 48
    %v2405 = vld [vmem:[%s2403] ss:$16 sm:%s2404]
    %vm2406 = vcmask 1045508
    %v2407 = vsel %vm2406, %v2405, %v2402
    %s2408 = scalar_lea.vmem [#allocation1], 14
    %s2409 = smov 192
    %v2410 = vld [vmem:[%s2408] ss:$16 sm:%s2409]
    %vm2411 = vcmask 1047558
    %v2412 = vsel %vm2411, %v2410, %v2407
    %2413 = vrot.lane.b32.xlu0 %v2412, 56
    %v2414 = vpop.permute.xlu0 %2413
    %vm2415 = vcmask 490944
    %2416 = vst.msk [vmem:[#allocation0] sm:$0xff] %vm2415, %v2414
    %s2417 = scalar_lea.vmem [#allocation1], 526
    %s2418 = smov 3
    %v2419 = vld [vmem:[%s2417] ss:$16 sm:%s2418]
    %s2420 = scalar_lea.vmem [#allocation1], 526
    %s2421 = smov 12
    %v2422 = vld [vmem:[%s2420] ss:$16 sm:%s2421]
    %vm2423 = vcmask 1043458
    %v2424 = vsel %vm2423, %v2422, %v2419
    %s2425 = scalar_lea.vmem [#allocation1], 526
    %s2426 = smov 48
    %v2427 = vld [vmem:[%s2425] ss:$16 sm:%s2426]
    %vm2428 = vcmask 1045508
    %v2429 = vsel %vm2428, %v2427, %v2424
    %s2430 = scalar_lea.vmem [#allocation1], 526
    %s2431 = smov 192
    %v2432 = vld [vmem:[%s2430] ss:$16 sm:%s2431]
    %vm2433 = vcmask 1047558
    %v2434 = vsel %vm2433, %v2432, %v2429
    %2435 = vrot.lane.b32.xlu0 %v2434, 56
    %v2436 = vpop.permute.xlu0 %2435
    %vm2437 = vcmask 490944
    %s2438 = scalar_lea.vmem [#allocation0], 32
    %2439 = vst.msk [vmem:[%s2438] sm:$0xff] %vm2437, %v2436
    %s2440 = scalar_lea.vmem [#allocation1], 142
    %s2441 = smov 3
    %v2442 = vld [vmem:[%s2440] ss:$16 sm:%s2441]
    %s2443 = scalar_lea.vmem [#allocation1], 142
    %s2444 = smov 12
    %v2445 = vld [vmem:[%s2443] ss:$16 sm:%s2444]
    %vm2446 = vcmask 1043458
    %v2447 = vsel %vm2446, %v2445, %v2442
    %s2448 = scalar_lea.vmem [#allocation1], 142
    %s2449 = smov 48
    %v2450 = vld [vmem:[%s2448] ss:$16 sm:%s2449]
    %vm2451 = vcmask 1045508
    %v2452 = vsel %vm2451, %v2450, %v2447
    %s2453 = scalar_lea.vmem [#allocation1], 142
    %s2454 = smov 192
    %v2455 = vld [vmem:[%s2453] ss:$16 sm:%s2454]
    %vm2456 = vcmask 1047558
    %v2457 = vsel %vm2456, %v2455, %v2452
    %2458 = vrot.lane.b32.xlu0 %v2457, 56
    %v2459 = vpop.permute.xlu0 %2458
    %vm2460 = vcmask 490944
    %s2461 = scalar_lea.vmem [#allocation0], 8
    %2462 = vst.msk [vmem:[%s2461] sm:$0xff] %vm2460, %v2459
    %s2463 = scalar_lea.vmem [#allocation1], 654
    %s2464 = smov 3
    %v2465 = vld [vmem:[%s2463] ss:$16 sm:%s2464]
    %s2466 = scalar_lea.vmem [#allocation1], 654
    %s2467 = smov 12
    %v2468 = vld [vmem:[%s2466] ss:$16 sm:%s2467]
    %vm2469 = vcmask 1043458
    %v2470 = vsel %vm2469, %v2468, %v2465
    %s2471 = scalar_lea.vmem [#allocation1], 654
    %s2472 = smov 48
    %v2473 = vld [vmem:[%s2471] ss:$16 sm:%s2472]
    %vm2474 = vcmask 1045508
    %v2475 = vsel %vm2474, %v2473, %v2470
    %s2476 = scalar_lea.vmem [#allocation1], 654
    %s2477 = smov 192
    %v2478 = vld [vmem:[%s2476] ss:$16 sm:%s2477]
    %vm2479 = vcmask 1047558
    %v2480 = vsel %vm2479, %v2478, %v2475
    %2481 = vrot.lane.b32.xlu0 %v2480, 56
    %v2482 = vpop.permute.xlu0 %2481
    %vm2483 = vcmask 490944
    %s2484 = scalar_lea.vmem [#allocation0], 40
    %2485 = vst.msk [vmem:[%s2484] sm:$0xff] %vm2483, %v2482
    %s2486 = scalar_lea.vmem [#allocation1], 270
    %s2487 = smov 3
    %v2488 = vld [vmem:[%s2486] ss:$16 sm:%s2487]
    %s2489 = scalar_lea.vmem [#allocation1], 270
    %s2490 = smov 12
    %v2491 = vld [vmem:[%s2489] ss:$16 sm:%s2490]
    %vm2492 = vcmask 1043458
    %v2493 = vsel %vm2492, %v2491, %v2488
    %s2494 = scalar_lea.vmem [#allocation1], 270
    %s2495 = smov 48
    %v2496 = vld [vmem:[%s2494] ss:$16 sm:%s2495]
    %vm2497 = vcmask 1045508
    %v2498 = vsel %vm2497, %v2496, %v2493
    %s2499 = scalar_lea.vmem [#allocation1], 270
    %s2500 = smov 192
    %v2501 = vld [vmem:[%s2499] ss:$16 sm:%s2500]
    %vm2502 = vcmask 1047558
    %v2503 = vsel %vm2502, %v2501, %v2498
    %2504 = vrot.lane.b32.xlu0 %v2503, 56
    %v2505 = vpop.permute.xlu0 %2504
    %vm2506 = vcmask 490944
    %s2507 = scalar_lea.vmem [#allocation0], 16
    %2508 = vst.msk [vmem:[%s2507] sm:$0xff] %vm2506, %v2505
    %s2509 = scalar_lea.vmem [#allocation1], 782
    %s2510 = smov 3
    %v2511 = vld [vmem:[%s2509] ss:$16 sm:%s2510]
    %s2512 = scalar_lea.vmem [#allocation1], 782
    %s2513 = smov 12
    %v2514 = vld [vmem:[%s2512] ss:$16 sm:%s2513]
    %vm2515 = vcmask 1043458
    %v2516 = vsel %vm2515, %v2514, %v2511
    %s2517 = scalar_lea.vmem [#allocation1], 782
    %s2518 = smov 48
    %v2519 = vld [vmem:[%s2517] ss:$16 sm:%s2518]
    %vm2520 = vcmask 1045508
    %v2521 = vsel %vm2520, %v2519, %v2516
    %s2522 = scalar_lea.vmem [#allocation1], 782
    %s2523 = smov 192
    %v2524 = vld [vmem:[%s2522] ss:$16 sm:%s2523]
    %vm2525 = vcmask 1047558
    %v2526 = vsel %vm2525, %v2524, %v2521
    %2527 = vrot.lane.b32.xlu0 %v2526, 56
    %v2528 = vpop.permute.xlu0 %2527
    %vm2529 = vcmask 490944
    %s2530 = scalar_lea.vmem [#allocation0], 48
    %2531 = vst.msk [vmem:[%s2530] sm:$0xff] %vm2529, %v2528
    %s2532 = scalar_lea.vmem [#allocation1], 398
    %s2533 = smov 3
    %v2534 = vld [vmem:[%s2532] ss:$16 sm:%s2533]
    %s2535 = scalar_lea.vmem [#allocation1], 398
    %s2536 = smov 12
    %v2537 = vld [vmem:[%s2535] ss:$16 sm:%s2536]
    %vm2538 = vcmask 1043458
    %v2539 = vsel %vm2538, %v2537, %v2534
    %s2540 = scalar_lea.vmem [#allocation1], 398
    %s2541 = smov 48
    %v2542 = vld [vmem:[%s2540] ss:$16 sm:%s2541]
    %vm2543 = vcmask 1045508
    %v2544 = vsel %vm2543, %v2542, %v2539
    %s2545 = scalar_lea.vmem [#allocation1], 398
    %s2546 = smov 192
    %v2547 = vld [vmem:[%s2545] ss:$16 sm:%s2546]
    %vm2548 = vcmask 1047558
    %v2549 = vsel %vm2548, %v2547, %v2544
    %2550 = vrot.lane.b32.xlu0 %v2549, 56
    %v2551 = vpop.permute.xlu0 %2550
    %vm2552 = vcmask 490944
    %s2553 = scalar_lea.vmem [#allocation0], 24
    %2554 = vst.msk [vmem:[%s2553] sm:$0xff] %vm2552, %v2551
    %s2555 = scalar_lea.vmem [#allocation1], 910
    %s2556 = smov 3
    %v2557 = vld [vmem:[%s2555] ss:$16 sm:%s2556]
    %s2558 = scalar_lea.vmem [#allocation1], 910
    %s2559 = smov 12
    %v2560 = vld [vmem:[%s2558] ss:$16 sm:%s2559]
    %vm2561 = vcmask 1043458
    %v2562 = vsel %vm2561, %v2560, %v2557
    %s2563 = scalar_lea.vmem [#allocation1], 910
    %s2564 = smov 48
    %v2565 = vld [vmem:[%s2563] ss:$16 sm:%s2564]
    %vm2566 = vcmask 1045508
    %v2567 = vsel %vm2566, %v2565, %v2562
    %s2568 = scalar_lea.vmem [#allocation1], 910
    %s2569 = smov 192
    %v2570 = vld [vmem:[%s2568] ss:$16 sm:%s2569]
    %vm2571 = vcmask 1047558
    %v2572 = vsel %vm2571, %v2570, %v2567
    %2573 = vrot.lane.b32.xlu0 %v2572, 56
    %v2574 = vpop.permute.xlu0 %2573
    %vm2575 = vcmask 490944
    %s2576 = scalar_lea.vmem [#allocation0], 56
    %2577 = vst.msk [vmem:[%s2576] sm:$0xff] %vm2575, %v2574
    %s2578 = scalar_lea.vmem [#allocation1], 13
    %s2579 = smov 3
    %v2580 = vld [vmem:[%s2578] ss:$16 sm:%s2579]
    %s2581 = scalar_lea.vmem [#allocation1], 13
    %s2582 = smov 12
    %v2583 = vld [vmem:[%s2581] ss:$16 sm:%s2582]
    %vm2584 = vcmask 1043458
    %v2585 = vsel %vm2584, %v2583, %v2580
    %s2586 = scalar_lea.vmem [#allocation1], 13
    %s2587 = smov 48
    %v2588 = vld [vmem:[%s2586] ss:$16 sm:%s2587]
    %vm2589 = vcmask 1045508
    %v2590 = vsel %vm2589, %v2588, %v2585
    %s2591 = scalar_lea.vmem [#allocation1], 13
    %s2592 = smov 192
    %v2593 = vld [vmem:[%s2591] ss:$16 sm:%s2592]
    %vm2594 = vcmask 1047558
    %v2595 = vsel %vm2594, %v2593, %v2590
    %2596 = vrot.lane.b32.xlu0 %v2595, 52
    %v2597 = vpop.permute.xlu0 %2596
    %vm2598 = vcmask 458144
    %2599 = vst.msk [vmem:[#allocation0] sm:$0xff] %vm2598, %v2597
    %s2600 = scalar_lea.vmem [#allocation1], 525
    %s2601 = smov 3
    %v2602 = vld [vmem:[%s2600] ss:$16 sm:%s2601]
    %s2603 = scalar_lea.vmem [#allocation1], 525
    %s2604 = smov 12
    %v2605 = vld [vmem:[%s2603] ss:$16 sm:%s2604]
    %vm2606 = vcmask 1043458
    %v2607 = vsel %vm2606, %v2605, %v2602
    %s2608 = scalar_lea.vmem [#allocation1], 525
    %s2609 = smov 48
    %v2610 = vld [vmem:[%s2608] ss:$16 sm:%s2609]
    %vm2611 = vcmask 1045508
    %v2612 = vsel %vm2611, %v2610, %v2607
    %s2613 = scalar_lea.vmem [#allocation1], 525
    %s2614 = smov 192
    %v2615 = vld [vmem:[%s2613] ss:$16 sm:%s2614]
    %vm2616 = vcmask 1047558
    %v2617 = vsel %vm2616, %v2615, %v2612
    %2618 = vrot.lane.b32.xlu0 %v2617, 52
    %v2619 = vpop.permute.xlu0 %2618
    %vm2620 = vcmask 458144
    %s2621 = scalar_lea.vmem [#allocation0], 32
    %2622 = vst.msk [vmem:[%s2621] sm:$0xff] %vm2620, %v2619
    %s2623 = scalar_lea.vmem [#allocation1], 141
    %s2624 = smov 3
    %v2625 = vld [vmem:[%s2623] ss:$16 sm:%s2624]
    %s2626 = scalar_lea.vmem [#allocation1], 141
    %s2627 = smov 12
    %v2628 = vld [vmem:[%s2626] ss:$16 sm:%s2627]
    %vm2629 = vcmask 1043458
    %v2630 = vsel %vm2629, %v2628, %v2625
    %s2631 = scalar_lea.vmem [#allocation1], 141
    %s2632 = smov 48
    %v2633 = vld [vmem:[%s2631] ss:$16 sm:%s2632]
    %vm2634 = vcmask 1045508
    %v2635 = vsel %vm2634, %v2633, %v2630
    %s2636 = scalar_lea.vmem [#allocation1], 141
    %s2637 = smov 192
    %v2638 = vld [vmem:[%s2636] ss:$16 sm:%s2637]
    %vm2639 = vcmask 1047558
    %v2640 = vsel %vm2639, %v2638, %v2635
    %2641 = vrot.lane.b32.xlu0 %v2640, 52
    %v2642 = vpop.permute.xlu0 %2641
    %vm2643 = vcmask 458144
    %s2644 = scalar_lea.vmem [#allocation0], 8
    %2645 = vst.msk [vmem:[%s2644] sm:$0xff] %vm2643, %v2642
    %s2646 = scalar_lea.vmem [#allocation1], 653
    %s2647 = smov 3
    %v2648 = vld [vmem:[%s2646] ss:$16 sm:%s2647]
    %s2649 = scalar_lea.vmem [#allocation1], 653
    %s2650 = smov 12
    %v2651 = vld [vmem:[%s2649] ss:$16 sm:%s2650]
    %vm2652 = vcmask 1043458
    %v2653 = vsel %vm2652, %v2651, %v2648
    %s2654 = scalar_lea.vmem [#allocation1], 653
    %s2655 = smov 48
    %v2656 = vld [vmem:[%s2654] ss:$16 sm:%s2655]
    %vm2657 = vcmask 1045508
    %v2658 = vsel %vm2657, %v2656, %v2653
    %s2659 = scalar_lea.vmem [#allocation1], 653
    %s2660 = smov 192
    %v2661 = vld [vmem:[%s2659] ss:$16 sm:%s2660]
    %vm2662 = vcmask 1047558
    %v2663 = vsel %vm2662, %v2661, %v2658
    %2664 = vrot.lane.b32.xlu0 %v2663, 52
    %v2665 = vpop.permute.xlu0 %2664
    %vm2666 = vcmask 458144
    %s2667 = scalar_lea.vmem [#allocation0], 40
    %2668 = vst.msk [vmem:[%s2667] sm:$0xff] %vm2666, %v2665
    %s2669 = scalar_lea.vmem [#allocation1], 269
    %s2670 = smov 3
    %v2671 = vld [vmem:[%s2669] ss:$16 sm:%s2670]
    %s2672 = scalar_lea.vmem [#allocation1], 269
    %s2673 = smov 12
    %v2674 = vld [vmem:[%s2672] ss:$16 sm:%s2673]
    %vm2675 = vcmask 1043458
    %v2676 = vsel %vm2675, %v2674, %v2671
    %s2677 = scalar_lea.vmem [#allocation1], 269
    %s2678 = smov 48
    %v2679 = vld [vmem:[%s2677] ss:$16 sm:%s2678]
    %vm2680 = vcmask 1045508
    %v2681 = vsel %vm2680, %v2679, %v2676
    %s2682 = scalar_lea.vmem [#allocation1], 269
    %s2683 = smov 192
    %v2684 = vld [vmem:[%s2682] ss:$16 sm:%s2683]
    %vm2685 = vcmask 1047558
    %v2686 = vsel %vm2685, %v2684, %v2681
    %2687 = vrot.lane.b32.xlu0 %v2686, 52
    %v2688 = vpop.permute.xlu0 %2687
    %vm2689 = vcmask 458144
    %s2690 = scalar_lea.vmem [#allocation0], 16
    %2691 = vst.msk [vmem:[%s2690] sm:$0xff] %vm2689, %v2688
    %s2692 = scalar_lea.vmem [#allocation1], 781
    %s2693 = smov 3
    %v2694 = vld [vmem:[%s2692] ss:$16 sm:%s2693]
    %s2695 = scalar_lea.vmem [#allocation1], 781
    %s2696 = smov 12
    %v2697 = vld [vmem:[%s2695] ss:$16 sm:%s2696]
    %vm2698 = vcmask 1043458
    %v2699 = vsel %vm2698, %v2697, %v2694
    %s2700 = scalar_lea.vmem [#allocation1], 781
    %s2701 = smov 48
    %v2702 = vld [vmem:[%s2700] ss:$16 sm:%s2701]
    %vm2703 = vcmask 1045508
    %v2704 = vsel %vm2703, %v2702, %v2699
    %s2705 = scalar_lea.vmem [#allocation1], 781
    %s2706 = smov 192
    %v2707 = vld [vmem:[%s2705] ss:$16 sm:%s2706]
    %vm2708 = vcmask 1047558
    %v2709 = vsel %vm2708, %v2707, %v2704
    %2710 = vrot.lane.b32.xlu0 %v2709, 52
    %v2711 = vpop.permute.xlu0 %2710
    %vm2712 = vcmask 458144
    %s2713 = scalar_lea.vmem [#allocation0], 48
    %2714 = vst.msk [vmem:[%s2713] sm:$0xff] %vm2712, %v2711
    %s2715 = scalar_lea.vmem [#allocation1], 397
    %s2716 = smov 3
    %v2717 = vld [vmem:[%s2715] ss:$16 sm:%s2716]
    %s2718 = scalar_lea.vmem [#allocation1], 397
    %s2719 = smov 12
    %v2720 = vld [vmem:[%s2718] ss:$16 sm:%s2719]
    %vm2721 = vcmask 1043458
    %v2722 = vsel %vm2721, %v2720, %v2717
    %s2723 = scalar_lea.vmem [#allocation1], 397
    %s2724 = smov 48
    %v2725 = vld [vmem:[%s2723] ss:$16 sm:%s2724]
    %vm2726 = vcmask 1045508
    %v2727 = vsel %vm2726, %v2725, %v2722
    %s2728 = scalar_lea.vmem [#allocation1], 397
    %s2729 = smov 192
    %v2730 = vld [vmem:[%s2728] ss:$16 sm:%s2729]
    %vm2731 = vcmask 1047558
    %v2732 = vsel %vm2731, %v2730, %v2727
    %2733 = vrot.lane.b32.xlu0 %v2732, 52
    %v2734 = vpop.permute.xlu0 %2733
    %vm2735 = vcmask 458144
    %s2736 = scalar_lea.vmem [#allocation0], 24
    %2737 = vst.msk [vmem:[%s2736] sm:$0xff] %vm2735, %v2734
    %s2738 = scalar_lea.vmem [#allocation1], 909
    %s2739 = smov 3
    %v2740 = vld [vmem:[%s2738] ss:$16 sm:%s2739]
    %s2741 = scalar_lea.vmem [#allocation1], 909
    %s2742 = smov 12
    %v2743 = vld [vmem:[%s2741] ss:$16 sm:%s2742]
    %vm2744 = vcmask 1043458
    %v2745 = vsel %vm2744, %v2743, %v2740
    %s2746 = scalar_lea.vmem [#allocation1], 909
    %s2747 = smov 48
    %v2748 = vld [vmem:[%s2746] ss:$16 sm:%s2747]
    %vm2749 = vcmask 1045508
    %v2750 = vsel %vm2749, %v2748, %v2745
    %s2751 = scalar_lea.vmem [#allocation1], 909
    %s2752 = smov 192
    %v2753 = vld [vmem:[%s2751] ss:$16 sm:%s2752]
    %vm2754 = vcmask 1047558
    %v2755 = vsel %vm2754, %v2753, %v2750
    %2756 = vrot.lane.b32.xlu0 %v2755, 52
    %v2757 = vpop.permute.xlu0 %2756
    %vm2758 = vcmask 458144
    %s2759 = scalar_lea.vmem [#allocation0], 56
    %2760 = vst.msk [vmem:[%s2759] sm:$0xff] %vm2758, %v2757
    %s2761 = scalar_lea.vmem [#allocation1], 12
    %s2762 = smov 3
    %v2763 = vld [vmem:[%s2761] ss:$16 sm:%s2762]
    %s2764 = scalar_lea.vmem [#allocation1], 12
    %s2765 = smov 12
    %v2766 = vld [vmem:[%s2764] ss:$16 sm:%s2765]
    %vm2767 = vcmask 1043458
    %v2768 = vsel %vm2767, %v2766, %v2763
    %s2769 = scalar_lea.vmem [#allocation1], 12
    %s2770 = smov 48
    %v2771 = vld [vmem:[%s2769] ss:$16 sm:%s2770]
    %vm2772 = vcmask 1045508
    %v2773 = vsel %vm2772, %v2771, %v2768
    %s2774 = scalar_lea.vmem [#allocation1], 12
    %s2775 = smov 192
    %v2776 = vld [vmem:[%s2774] ss:$16 sm:%s2775]
    %vm2777 = vcmask 1047558
    %v2778 = vsel %vm2777, %v2776, %v2773
    %2779 = vrot.lane.b32.xlu0 %v2778, 48
    %v2780 = vpop.permute.xlu0 %2779
    %vm2781 = vcmask 425344
    %2782 = vst.msk [vmem:[#allocation0] sm:$0xff] %vm2781, %v2780
    %s2783 = scalar_lea.vmem [#allocation1], 524
    %s2784 = smov 3
    %v2785 = vld [vmem:[%s2783] ss:$16 sm:%s2784]
    %s2786 = scalar_lea.vmem [#allocation1], 524
    %s2787 = smov 12
    %v2788 = vld [vmem:[%s2786] ss:$16 sm:%s2787]
    %vm2789 = vcmask 1043458
    %v2790 = vsel %vm2789, %v2788, %v2785
    %s2791 = scalar_lea.vmem [#allocation1], 524
    %s2792 = smov 48
    %v2793 = vld [vmem:[%s2791] ss:$16 sm:%s2792]
    %vm2794 = vcmask 1045508
    %v2795 = vsel %vm2794, %v2793, %v2790
    %s2796 = scalar_lea.vmem [#allocation1], 524
    %s2797 = smov 192
    %v2798 = vld [vmem:[%s2796] ss:$16 sm:%s2797]
    %vm2799 = vcmask 1047558
    %v2800 = vsel %vm2799, %v2798, %v2795
    %2801 = vrot.lane.b32.xlu0 %v2800, 48
    %v2802 = vpop.permute.xlu0 %2801
    %vm2803 = vcmask 425344
    %s2804 = scalar_lea.vmem [#allocation0], 32
    %2805 = vst.msk [vmem:[%s2804] sm:$0xff] %vm2803, %v2802
    %s2806 = scalar_lea.vmem [#allocation1], 140
    %s2807 = smov 3
    %v2808 = vld [vmem:[%s2806] ss:$16 sm:%s2807]
    %s2809 = scalar_lea.vmem [#allocation1], 140
    %s2810 = smov 12
    %v2811 = vld [vmem:[%s2809] ss:$16 sm:%s2810]
    %vm2812 = vcmask 1043458
    %v2813 = vsel %vm2812, %v2811, %v2808
    %s2814 = scalar_lea.vmem [#allocation1], 140
    %s2815 = smov 48
    %v2816 = vld [vmem:[%s2814] ss:$16 sm:%s2815]
    %vm2817 = vcmask 1045508
    %v2818 = vsel %vm2817, %v2816, %v2813
    %s2819 = scalar_lea.vmem [#allocation1], 140
    %s2820 = smov 192
    %v2821 = vld [vmem:[%s2819] ss:$16 sm:%s2820]
    %vm2822 = vcmask 1047558
    %v2823 = vsel %vm2822, %v2821, %v2818
    %2824 = vrot.lane.b32.xlu0 %v2823, 48
    %v2825 = vpop.permute.xlu0 %2824
    %vm2826 = vcmask 425344
    %s2827 = scalar_lea.vmem [#allocation0], 8
    %2828 = vst.msk [vmem:[%s2827] sm:$0xff] %vm2826, %v2825
    %s2829 = scalar_lea.vmem [#allocation1], 652
    %s2830 = smov 3
    %v2831 = vld [vmem:[%s2829] ss:$16 sm:%s2830]
    %s2832 = scalar_lea.vmem [#allocation1], 652
    %s2833 = smov 12
    %v2834 = vld [vmem:[%s2832] ss:$16 sm:%s2833]
    %vm2835 = vcmask 1043458
    %v2836 = vsel %vm2835, %v2834, %v2831
    %s2837 = scalar_lea.vmem [#allocation1], 652
    %s2838 = smov 48
    %v2839 = vld [vmem:[%s2837] ss:$16 sm:%s2838]
    %vm2840 = vcmask 1045508
    %v2841 = vsel %vm2840, %v2839, %v2836
    %s2842 = scalar_lea.vmem [#allocation1], 652
    %s2843 = smov 192
    %v2844 = vld [vmem:[%s2842] ss:$16 sm:%s2843]
    %vm2845 = vcmask 1047558
    %v2846 = vsel %vm2845, %v2844, %v2841
    %2847 = vrot.lane.b32.xlu0 %v2846, 48
    %v2848 = vpop.permute.xlu0 %2847
    %vm2849 = vcmask 425344
    %s2850 = scalar_lea.vmem [#allocation0], 40
    %2851 = vst.msk [vmem:[%s2850] sm:$0xff] %vm2849, %v2848
    %s2852 = scalar_lea.vmem [#allocation1], 268
    %s2853 = smov 3
    %v2854 = vld [vmem:[%s2852] ss:$16 sm:%s2853]
    %s2855 = scalar_lea.vmem [#allocation1], 268
    %s2856 = smov 12
    %v2857 = vld [vmem:[%s2855] ss:$16 sm:%s2856]
    %vm2858 = vcmask 1043458
    %v2859 = vsel %vm2858, %v2857, %v2854
    %s2860 = scalar_lea.vmem [#allocation1], 268
    %s2861 = smov 48
    %v2862 = vld [vmem:[%s2860] ss:$16 sm:%s2861]
    %vm2863 = vcmask 1045508
    %v2864 = vsel %vm2863, %v2862, %v2859
    %s2865 = scalar_lea.vmem [#allocation1], 268
    %s2866 = smov 192
    %v2867 = vld [vmem:[%s2865] ss:$16 sm:%s2866]
    %vm2868 = vcmask 1047558
    %v2869 = vsel %vm2868, %v2867, %v2864
    %2870 = vrot.lane.b32.xlu0 %v2869, 48
    %v2871 = vpop.permute.xlu0 %2870
    %vm2872 = vcmask 425344
    %s2873 = scalar_lea.vmem [#allocation0], 16
    %2874 = vst.msk [vmem:[%s2873] sm:$0xff] %vm2872, %v2871
    %s2875 = scalar_lea.vmem [#allocation1], 780
    %s2876 = smov 3
    %v2877 = vld [vmem:[%s2875] ss:$16 sm:%s2876]
    %s2878 = scalar_lea.vmem [#allocation1], 780
    %s2879 = smov 12
    %v2880 = vld [vmem:[%s2878] ss:$16 sm:%s2879]
    %vm2881 = vcmask 1043458
    %v2882 = vsel %vm2881, %v2880, %v2877
    %s2883 = scalar_lea.vmem [#allocation1], 780
    %s2884 = smov 48
    %v2885 = vld [vmem:[%s2883] ss:$16 sm:%s2884]
    %vm2886 = vcmask 1045508
    %v2887 = vsel %vm2886, %v2885, %v2882
    %s2888 = scalar_lea.vmem [#allocation1], 780
    %s2889 = smov 192
    %v2890 = vld [vmem:[%s2888] ss:$16 sm:%s2889]
    %vm2891 = vcmask 1047558
    %v2892 = vsel %vm2891, %v2890, %v2887
    %2893 = vrot.lane.b32.xlu0 %v2892, 48
    %v2894 = vpop.permute.xlu0 %2893
    %vm2895 = vcmask 425344
    %s2896 = scalar_lea.vmem [#allocation0], 48
    %2897 = vst.msk [vmem:[%s2896] sm:$0xff] %vm2895, %v2894
    %s2898 = scalar_lea.vmem [#allocation1], 396
    %s2899 = smov 3
    %v2900 = vld [vmem:[%s2898] ss:$16 sm:%s2899]
    %s2901 = scalar_lea.vmem [#allocation1], 396
    %s2902 = smov 12
    %v2903 = vld [vmem:[%s2901] ss:$16 sm:%s2902]
    %vm2904 = vcmask 1043458
    %v2905 = vsel %vm2904, %v2903, %v2900
    %s2906 = scalar_lea.vmem [#allocation1], 396
    %s2907 = smov 48
    %v2908 = vld [vmem:[%s2906] ss:$16 sm:%s2907]
    %vm2909 = vcmask 1045508
    %v2910 = vsel %vm2909, %v2908, %v2905
    %s2911 = scalar_lea.vmem [#allocation1], 396
    %s2912 = smov 192
    %v2913 = vld [vmem:[%s2911] ss:$16 sm:%s2912]
    %vm2914 = vcmask 1047558
    %v2915 = vsel %vm2914, %v2913, %v2910
    %2916 = vrot.lane.b32.xlu0 %v2915, 48
    %v2917 = vpop.permute.xlu0 %2916
    %vm2918 = vcmask 425344
    %s2919 = scalar_lea.vmem [#allocation0], 24
    %2920 = vst.msk [vmem:[%s2919] sm:$0xff] %vm2918, %v2917
    %s2921 = scalar_lea.vmem [#allocation1], 908
    %s2922 = smov 3
    %v2923 = vld [vmem:[%s2921] ss:$16 sm:%s2922]
    %s2924 = scalar_lea.vmem [#allocation1], 908
    %s2925 = smov 12
    %v2926 = vld [vmem:[%s2924] ss:$16 sm:%s2925]
    %vm2927 = vcmask 1043458
    %v2928 = vsel %vm2927, %v2926, %v2923
    %s2929 = scalar_lea.vmem [#allocation1], 908
    %s2930 = smov 48
    %v2931 = vld [vmem:[%s2929] ss:$16 sm:%s2930]
    %vm2932 = vcmask 1045508
    %v2933 = vsel %vm2932, %v2931, %v2928
    %s2934 = scalar_lea.vmem [#allocation1], 908
    %s2935 = smov 192
    %v2936 = vld [vmem:[%s2934] ss:$16 sm:%s2935]
    %vm2937 = vcmask 1047558
    %v2938 = vsel %vm2937, %v2936, %v2933
    %2939 = vrot.lane.b32.xlu0 %v2938, 48
    %v2940 = vpop.permute.xlu0 %2939
    %vm2941 = vcmask 425344
    %s2942 = scalar_lea.vmem [#allocation0], 56
    %2943 = vst.msk [vmem:[%s2942] sm:$0xff] %vm2941, %v2940
    %s2944 = scalar_lea.vmem [#allocation1], 11
    %s2945 = smov 3
    %v2946 = vld [vmem:[%s2944] ss:$16 sm:%s2945]
    %s2947 = scalar_lea.vmem [#allocation1], 11
    %s2948 = smov 12
    %v2949 = vld [vmem:[%s2947] ss:$16 sm:%s2948]
    %vm2950 = vcmask 1043458
    %v2951 = vsel %vm2950, %v2949, %v2946
    %s2952 = scalar_lea.vmem [#allocation1], 11
    %s2953 = smov 48
    %v2954 = vld [vmem:[%s2952] ss:$16 sm:%s2953]
    %vm2955 = vcmask 1045508
    %v2956 = vsel %vm2955, %v2954, %v2951
    %s2957 = scalar_lea.vmem [#allocation1], 11
    %s2958 = smov 192
    %v2959 = vld [vmem:[%s2957] ss:$16 sm:%s2958]
    %vm2960 = vcmask 1047558
    %v2961 = vsel %vm2960, %v2959, %v2956
    %2962 = vrot.lane.b32.xlu0 %v2961, 44
    %v2963 = vpop.permute.xlu0 %2962
    %vm2964 = vcmask 392544
    %2965 = vst.msk [vmem:[#allocation0] sm:$0xff] %vm2964, %v2963
    %s2966 = scalar_lea.vmem [#allocation1], 523
    %s2967 = smov 3
    %v2968 = vld [vmem:[%s2966] ss:$16 sm:%s2967]
    %s2969 = scalar_lea.vmem [#allocation1], 523
    %s2970 = smov 12
    %v2971 = vld [vmem:[%s2969] ss:$16 sm:%s2970]
    %vm2972 = vcmask 1043458
    %v2973 = vsel %vm2972, %v2971, %v2968
    %s2974 = scalar_lea.vmem [#allocation1], 523
    %s2975 = smov 48
    %v2976 = vld [vmem:[%s2974] ss:$16 sm:%s2975]
    %vm2977 = vcmask 1045508
    %v2978 = vsel %vm2977, %v2976, %v2973
    %s2979 = scalar_lea.vmem [#allocation1], 523
    %s2980 = smov 192
    %v2981 = vld [vmem:[%s2979] ss:$16 sm:%s2980]
    %vm2982 = vcmask 1047558
    %v2983 = vsel %vm2982, %v2981, %v2978
    %2984 = vrot.lane.b32.xlu0 %v2983, 44
    %v2985 = vpop.permute.xlu0 %2984
    %vm2986 = vcmask 392544
    %s2987 = scalar_lea.vmem [#allocation0], 32
    %2988 = vst.msk [vmem:[%s2987] sm:$0xff] %vm2986, %v2985
    %s2989 = scalar_lea.vmem [#allocation1], 139
    %s2990 = smov 3
    %v2991 = vld [vmem:[%s2989] ss:$16 sm:%s2990]
    %s2992 = scalar_lea.vmem [#allocation1], 139
    %s2993 = smov 12
    %v2994 = vld [vmem:[%s2992] ss:$16 sm:%s2993]
    %vm2995 = vcmask 1043458
    %v2996 = vsel %vm2995, %v2994, %v2991
    %s2997 = scalar_lea.vmem [#allocation1], 139
    %s2998 = smov 48
    %v2999 = vld [vmem:[%s2997] ss:$16 sm:%s2998]
    %vm3000 = vcmask 1045508
    %v3001 = vsel %vm3000, %v2999, %v2996
    %s3002 = scalar_lea.vmem [#allocation1], 139
    %s3003 = smov 192
    %v3004 = vld [vmem:[%s3002] ss:$16 sm:%s3003]
    %vm3005 = vcmask 1047558
    %v3006 = vsel %vm3005, %v3004, %v3001
    %3007 = vrot.lane.b32.xlu0 %v3006, 44
    %v3008 = vpop.permute.xlu0 %3007
    %vm3009 = vcmask 392544
    %s3010 = scalar_lea.vmem [#allocation0], 8
    %3011 = vst.msk [vmem:[%s3010] sm:$0xff] %vm3009, %v3008
    %s3012 = scalar_lea.vmem [#allocation1], 651
    %s3013 = smov 3
    %v3014 = vld [vmem:[%s3012] ss:$16 sm:%s3013]
    %s3015 = scalar_lea.vmem [#allocation1], 651
    %s3016 = smov 12
    %v3017 = vld [vmem:[%s3015] ss:$16 sm:%s3016]
    %vm3018 = vcmask 1043458
    %v3019 = vsel %vm3018, %v3017, %v3014
    %s3020 = scalar_lea.vmem [#allocation1], 651
    %s3021 = smov 48
    %v3022 = vld [vmem:[%s3020] ss:$16 sm:%s3021]
    %vm3023 = vcmask 1045508
    %v3024 = vsel %vm3023, %v3022, %v3019
    %s3025 = scalar_lea.vmem [#allocation1], 651
    %s3026 = smov 192
    %v3027 = vld [vmem:[%s3025] ss:$16 sm:%s3026]
    %vm3028 = vcmask 1047558
    %v3029 = vsel %vm3028, %v3027, %v3024
    %3030 = vrot.lane.b32.xlu0 %v3029, 44
    %v3031 = vpop.permute.xlu0 %3030
    %vm3032 = vcmask 392544
    %s3033 = scalar_lea.vmem [#allocation0], 40
    %3034 = vst.msk [vmem:[%s3033] sm:$0xff] %vm3032, %v3031
    %s3035 = scalar_lea.vmem [#allocation1], 267
    %s3036 = smov 3
    %v3037 = vld [vmem:[%s3035] ss:$16 sm:%s3036]
    %s3038 = scalar_lea.vmem [#allocation1], 267
    %s3039 = smov 12
    %v3040 = vld [vmem:[%s3038] ss:$16 sm:%s3039]
    %vm3041 = vcmask 1043458
    %v3042 = vsel %vm3041, %v3040, %v3037
    %s3043 = scalar_lea.vmem [#allocation1], 267
    %s3044 = smov 48
    %v3045 = vld [vmem:[%s3043] ss:$16 sm:%s3044]
    %vm3046 = vcmask 1045508
    %v3047 = vsel %vm3046, %v3045, %v3042
    %s3048 = scalar_lea.vmem [#allocation1], 267
    %s3049 = smov 192
    %v3050 = vld [vmem:[%s3048] ss:$16 sm:%s3049]
    %vm3051 = vcmask 1047558
    %v3052 = vsel %vm3051, %v3050, %v3047
    %3053 = vrot.lane.b32.xlu0 %v3052, 44
    %v3054 = vpop.permute.xlu0 %3053
    %vm3055 = vcmask 392544
    %s3056 = scalar_lea.vmem [#allocation0], 16
    %3057 = vst.msk [vmem:[%s3056] sm:$0xff] %vm3055, %v3054
    %s3058 = scalar_lea.vmem [#allocation1], 779
    %s3059 = smov 3
    %v3060 = vld [vmem:[%s3058] ss:$16 sm:%s3059]
    %s3061 = scalar_lea.vmem [#allocation1], 779
    %s3062 = smov 12
    %v3063 = vld [vmem:[%s3061] ss:$16 sm:%s3062]
    %vm3064 = vcmask 1043458
    %v3065 = vsel %vm3064, %v3063, %v3060
    %s3066 = scalar_lea.vmem [#allocation1], 779
    %s3067 = smov 48
    %v3068 = vld [vmem:[%s3066] ss:$16 sm:%s3067]
    %vm3069 = vcmask 1045508
    %v3070 = vsel %vm3069, %v3068, %v3065
    %s3071 = scalar_lea.vmem [#allocation1], 779
    %s3072 = smov 192
    %v3073 = vld [vmem:[%s3071] ss:$16 sm:%s3072]
    %vm3074 = vcmask 1047558
    %v3075 = vsel %vm3074, %v3073, %v3070
    %3076 = vrot.lane.b32.xlu0 %v3075, 44
    %v3077 = vpop.permute.xlu0 %3076
    %vm3078 = vcmask 392544
    %s3079 = scalar_lea.vmem [#allocation0], 48
    %3080 = vst.msk [vmem:[%s3079] sm:$0xff] %vm3078, %v3077
    %s3081 = scalar_lea.vmem [#allocation1], 395
    %s3082 = smov 3
    %v3083 = vld [vmem:[%s3081] ss:$16 sm:%s3082]
    %s3084 = scalar_lea.vmem [#allocation1], 395
    %s3085 = smov 12
    %v3086 = vld [vmem:[%s3084] ss:$16 sm:%s3085]
    %vm3087 = vcmask 1043458
    %v3088 = vsel %vm3087, %v3086, %v3083
    %s3089 = scalar_lea.vmem [#allocation1], 395
    %s3090 = smov 48
    %v3091 = vld [vmem:[%s3089] ss:$16 sm:%s3090]
    %vm3092 = vcmask 1045508
    %v3093 = vsel %vm3092, %v3091, %v3088
    %s3094 = scalar_lea.vmem [#allocation1], 395
    %s3095 = smov 192
    %v3096 = vld [vmem:[%s3094] ss:$16 sm:%s3095]
    %vm3097 = vcmask 1047558
    %v3098 = vsel %vm3097, %v3096, %v3093
    %3099 = vrot.lane.b32.xlu0 %v3098, 44
    %v3100 = vpop.permute.xlu0 %3099
    %vm3101 = vcmask 392544
    %s3102 = scalar_lea.vmem [#allocation0], 24
    %3103 = vst.msk [vmem:[%s3102] sm:$0xff] %vm3101, %v3100
    %s3104 = scalar_lea.vmem [#allocation1], 907
    %s3105 = smov 3
    %v3106 = vld [vmem:[%s3104] ss:$16 sm:%s3105]
    %s3107 = scalar_lea.vmem [#allocation1], 907
    %s3108 = smov 12
    %v3109 = vld [vmem:[%s3107] ss:$16 sm:%s3108]
    %vm3110 = vcmask 1043458
    %v3111 = vsel %vm3110, %v3109, %v3106
    %s3112 = scalar_lea.vmem [#allocation1], 907
    %s3113 = smov 48
    %v3114 = vld [vmem:[%s3112] ss:$16 sm:%s3113]
    %vm3115 = vcmask 1045508
    %v3116 = vsel %vm3115, %v3114, %v3111
    %s3117 = scalar_lea.vmem [#allocation1], 907
    %s3118 = smov 192
    %v3119 = vld [vmem:[%s3117] ss:$16 sm:%s3118]
    %vm3120 = vcmask 1047558
    %v3121 = vsel %vm3120, %v3119, %v3116
    %3122 = vrot.lane.b32.xlu0 %v3121, 44
    %v3123 = vpop.permute.xlu0 %3122
    %vm3124 = vcmask 392544
    %s3125 = scalar_lea.vmem [#allocation0], 56
    %3126 = vst.msk [vmem:[%s3125] sm:$0xff] %vm3124, %v3123
    %s3127 = scalar_lea.vmem [#allocation1], 10
    %s3128 = smov 3
    %v3129 = vld [vmem:[%s3127] ss:$16 sm:%s3128]
    %s3130 = scalar_lea.vmem [#allocation1], 10
    %s3131 = smov 12
    %v3132 = vld [vmem:[%s3130] ss:$16 sm:%s3131]
    %vm3133 = vcmask 1043458
    %v3134 = vsel %vm3133, %v3132, %v3129
    %s3135 = scalar_lea.vmem [#allocation1], 10
    %s3136 = smov 48
    %v3137 = vld [vmem:[%s3135] ss:$16 sm:%s3136]
    %vm3138 = vcmask 1045508
    %v3139 = vsel %vm3138, %v3137, %v3134
    %s3140 = scalar_lea.vmem [#allocation1], 10
    %s3141 = smov 192
    %v3142 = vld [vmem:[%s3140] ss:$16 sm:%s3141]
    %vm3143 = vcmask 1047558
    %v3144 = vsel %vm3143, %v3142, %v3139
    %3145 = vrot.lane.b32.xlu0 %v3144, 40
    %v3146 = vpop.permute.xlu0 %3145
    %vm3147 = vcmask 359744
    %3148 = vst.msk [vmem:[#allocation0] sm:$0xff] %vm3147, %v3146
    %s3149 = scalar_lea.vmem [#allocation1], 522
    %s3150 = smov 3
    %v3151 = vld [vmem:[%s3149] ss:$16 sm:%s3150]
    %s3152 = scalar_lea.vmem [#allocation1], 522
    %s3153 = smov 12
    %v3154 = vld [vmem:[%s3152] ss:$16 sm:%s3153]
    %vm3155 = vcmask 1043458
    %v3156 = vsel %vm3155, %v3154, %v3151
    %s3157 = scalar_lea.vmem [#allocation1], 522
    %s3158 = smov 48
    %v3159 = vld [vmem:[%s3157] ss:$16 sm:%s3158]
    %vm3160 = vcmask 1045508
    %v3161 = vsel %vm3160, %v3159, %v3156
    %s3162 = scalar_lea.vmem [#allocation1], 522
    %s3163 = smov 192
    %v3164 = vld [vmem:[%s3162] ss:$16 sm:%s3163]
    %vm3165 = vcmask 1047558
    %v3166 = vsel %vm3165, %v3164, %v3161
    %3167 = vrot.lane.b32.xlu0 %v3166, 40
    %v3168 = vpop.permute.xlu0 %3167
    %vm3169 = vcmask 359744
    %s3170 = scalar_lea.vmem [#allocation0], 32
    %3171 = vst.msk [vmem:[%s3170] sm:$0xff] %vm3169, %v3168
    %s3172 = scalar_lea.vmem [#allocation1], 138
    %s3173 = smov 3
    %v3174 = vld [vmem:[%s3172] ss:$16 sm:%s3173]
    %s3175 = scalar_lea.vmem [#allocation1], 138
    %s3176 = smov 12
    %v3177 = vld [vmem:[%s3175] ss:$16 sm:%s3176]
    %vm3178 = vcmask 1043458
    %v3179 = vsel %vm3178, %v3177, %v3174
    %s3180 = scalar_lea.vmem [#allocation1], 138
    %s3181 = smov 48
    %v3182 = vld [vmem:[%s3180] ss:$16 sm:%s3181]
    %vm3183 = vcmask 1045508
    %v3184 = vsel %vm3183, %v3182, %v3179
    %s3185 = scalar_lea.vmem [#allocation1], 138
    %s3186 = smov 192
    %v3187 = vld [vmem:[%s3185] ss:$16 sm:%s3186]
    %vm3188 = vcmask 1047558
    %v3189 = vsel %vm3188, %v3187, %v3184
    %3190 = vrot.lane.b32.xlu0 %v3189, 40
    %v3191 = vpop.permute.xlu0 %3190
    %vm3192 = vcmask 359744
    %s3193 = scalar_lea.vmem [#allocation0], 8
    %3194 = vst.msk [vmem:[%s3193] sm:$0xff] %vm3192, %v3191
    %s3195 = scalar_lea.vmem [#allocation1], 650
    %s3196 = smov 3
    %v3197 = vld [vmem:[%s3195] ss:$16 sm:%s3196]
    %s3198 = scalar_lea.vmem [#allocation1], 650
    %s3199 = smov 12
    %v3200 = vld [vmem:[%s3198] ss:$16 sm:%s3199]
    %vm3201 = vcmask 1043458
    %v3202 = vsel %vm3201, %v3200, %v3197
    %s3203 = scalar_lea.vmem [#allocation1], 650
    %s3204 = smov 48
    %v3205 = vld [vmem:[%s3203] ss:$16 sm:%s3204]
    %vm3206 = vcmask 1045508
    %v3207 = vsel %vm3206, %v3205, %v3202
    %s3208 = scalar_lea.vmem [#allocation1], 650
    %s3209 = smov 192
    %v3210 = vld [vmem:[%s3208] ss:$16 sm:%s3209]
    %vm3211 = vcmask 1047558
    %v3212 = vsel %vm3211, %v3210, %v3207
    %3213 = vrot.lane.b32.xlu0 %v3212, 40
    %v3214 = vpop.permute.xlu0 %3213
    %vm3215 = vcmask 359744
    %s3216 = scalar_lea.vmem [#allocation0], 40
    %3217 = vst.msk [vmem:[%s3216] sm:$0xff] %vm3215, %v3214
    %s3218 = scalar_lea.vmem [#allocation1], 266
    %s3219 = smov 3
    %v3220 = vld [vmem:[%s3218] ss:$16 sm:%s3219]
    %s3221 = scalar_lea.vmem [#allocation1], 266
    %s3222 = smov 12
    %v3223 = vld [vmem:[%s3221] ss:$16 sm:%s3222]
    %vm3224 = vcmask 1043458
    %v3225 = vsel %vm3224, %v3223, %v3220
    %s3226 = scalar_lea.vmem [#allocation1], 266
    %s3227 = smov 48
    %v3228 = vld [vmem:[%s3226] ss:$16 sm:%s3227]
    %vm3229 = vcmask 1045508
    %v3230 = vsel %vm3229, %v3228, %v3225
    %s3231 = scalar_lea.vmem [#allocation1], 266
    %s3232 = smov 192
    %v3233 = vld [vmem:[%s3231] ss:$16 sm:%s3232]
    %vm3234 = vcmask 1047558
    %v3235 = vsel %vm3234, %v3233, %v3230
    %3236 = vrot.lane.b32.xlu0 %v3235, 40
    %v3237 = vpop.permute.xlu0 %3236
    %vm3238 = vcmask 359744
    %s3239 = scalar_lea.vmem [#allocation0], 16
    %3240 = vst.msk [vmem:[%s3239] sm:$0xff] %vm3238, %v3237
    %s3241 = scalar_lea.vmem [#allocation1], 778
    %s3242 = smov 3
    %v3243 = vld [vmem:[%s3241] ss:$16 sm:%s3242]
    %s3244 = scalar_lea.vmem [#allocation1], 778
    %s3245 = smov 12
    %v3246 = vld [vmem:[%s3244] ss:$16 sm:%s3245]
    %vm3247 = vcmask 1043458
    %v3248 = vsel %vm3247, %v3246, %v3243
    %s3249 = scalar_lea.vmem [#allocation1], 778
    %s3250 = smov 48
    %v3251 = vld [vmem:[%s3249] ss:$16 sm:%s3250]
    %vm3252 = vcmask 1045508
    %v3253 = vsel %vm3252, %v3251, %v3248
    %s3254 = scalar_lea.vmem [#allocation1], 778
    %s3255 = smov 192
    %v3256 = vld [vmem:[%s3254] ss:$16 sm:%s3255]
    %vm3257 = vcmask 1047558
    %v3258 = vsel %vm3257, %v3256, %v3253
    %3259 = vrot.lane.b32.xlu0 %v3258, 40
    %v3260 = vpop.permute.xlu0 %3259
    %vm3261 = vcmask 359744
    %s3262 = scalar_lea.vmem [#allocation0], 48
    %3263 = vst.msk [vmem:[%s3262] sm:$0xff] %vm3261, %v3260
    %s3264 = scalar_lea.vmem [#allocation1], 394
    %s3265 = smov 3
    %v3266 = vld [vmem:[%s3264] ss:$16 sm:%s3265]
    %s3267 = scalar_lea.vmem [#allocation1], 394
    %s3268 = smov 12
    %v3269 = vld [vmem:[%s3267] ss:$16 sm:%s3268]
    %vm3270 = vcmask 1043458
    %v3271 = vsel %vm3270, %v3269, %v3266
    %s3272 = scalar_lea.vmem [#allocation1], 394
    %s3273 = smov 48
    %v3274 = vld [vmem:[%s3272] ss:$16 sm:%s3273]
    %vm3275 = vcmask 1045508
    %v3276 = vsel %vm3275, %v3274, %v3271
    %s3277 = scalar_lea.vmem [#allocation1], 394
    %s3278 = smov 192
    %v3279 = vld [vmem:[%s3277] ss:$16 sm:%s3278]
    %vm3280 = vcmask 1047558
    %v3281 = vsel %vm3280, %v3279, %v3276
    %3282 = vrot.lane.b32.xlu0 %v3281, 40
    %v3283 = vpop.permute.xlu0 %3282
    %vm3284 = vcmask 359744
    %s3285 = scalar_lea.vmem [#allocation0], 24
    %3286 = vst.msk [vmem:[%s3285] sm:$0xff] %vm3284, %v3283
    %s3287 = scalar_lea.vmem [#allocation1], 906
    %s3288 = smov 3
    %v3289 = vld [vmem:[%s3287] ss:$16 sm:%s3288]
    %s3290 = scalar_lea.vmem [#allocation1], 906
    %s3291 = smov 12
    %v3292 = vld [vmem:[%s3290] ss:$16 sm:%s3291]
    %vm3293 = vcmask 1043458
    %v3294 = vsel %vm3293, %v3292, %v3289
    %s3295 = scalar_lea.vmem [#allocation1], 906
    %s3296 = smov 48
    %v3297 = vld [vmem:[%s3295] ss:$16 sm:%s3296]
    %vm3298 = vcmask 1045508
    %v3299 = vsel %vm3298, %v3297, %v3294
    %s3300 = scalar_lea.vmem [#allocation1], 906
    %s3301 = smov 192
    %v3302 = vld [vmem:[%s3300] ss:$16 sm:%s3301]
    %vm3303 = vcmask 1047558
    %v3304 = vsel %vm3303, %v3302, %v3299
    %3305 = vrot.lane.b32.xlu0 %v3304, 40
    %v3306 = vpop.permute.xlu0 %3305
    %vm3307 = vcmask 359744
    %s3308 = scalar_lea.vmem [#allocation0], 56
    %3309 = vst.msk [vmem:[%s3308] sm:$0xff] %vm3307, %v3306
    %s3310 = scalar_lea.vmem [#allocation1], 9
    %s3311 = smov 3
    %v3312 = vld [vmem:[%s3310] ss:$16 sm:%s3311]
    %s3313 = scalar_lea.vmem [#allocation1], 9
    %s3314 = smov 12
    %v3315 = vld [vmem:[%s3313] ss:$16 sm:%s3314]
    %vm3316 = vcmask 1043458
    %v3317 = vsel %vm3316, %v3315, %v3312
    %s3318 = scalar_lea.vmem [#allocation1], 9
    %s3319 = smov 48
    %v3320 = vld [vmem:[%s3318] ss:$16 sm:%s3319]
    %vm3321 = vcmask 1045508
    %v3322 = vsel %vm3321, %v3320, %v3317
    %s3323 = scalar_lea.vmem [#allocation1], 9
    %s3324 = smov 192
    %v3325 = vld [vmem:[%s3323] ss:$16 sm:%s3324]
    %vm3326 = vcmask 1047558
    %v3327 = vsel %vm3326, %v3325, %v3322
    %3328 = vrot.lane.b32.xlu0 %v3327, 36
    %v3329 = vpop.permute.xlu0 %3328
    %vm3330 = vcmask 326944
    %3331 = vst.msk [vmem:[#allocation0] sm:$0xff] %vm3330, %v3329
    %s3332 = scalar_lea.vmem [#allocation1], 521
    %s3333 = smov 3
    %v3334 = vld [vmem:[%s3332] ss:$16 sm:%s3333]
    %s3335 = scalar_lea.vmem [#allocation1], 521
    %s3336 = smov 12
    %v3337 = vld [vmem:[%s3335] ss:$16 sm:%s3336]
    %vm3338 = vcmask 1043458
    %v3339 = vsel %vm3338, %v3337, %v3334
    %s3340 = scalar_lea.vmem [#allocation1], 521
    %s3341 = smov 48
    %v3342 = vld [vmem:[%s3340] ss:$16 sm:%s3341]
    %vm3343 = vcmask 1045508
    %v3344 = vsel %vm3343, %v3342, %v3339
    %s3345 = scalar_lea.vmem [#allocation1], 521
    %s3346 = smov 192
    %v3347 = vld [vmem:[%s3345] ss:$16 sm:%s3346]
    %vm3348 = vcmask 1047558
    %v3349 = vsel %vm3348, %v3347, %v3344
    %3350 = vrot.lane.b32.xlu0 %v3349, 36
    %v3351 = vpop.permute.xlu0 %3350
    %vm3352 = vcmask 326944
    %s3353 = scalar_lea.vmem [#allocation0], 32
    %3354 = vst.msk [vmem:[%s3353] sm:$0xff] %vm3352, %v3351
    %s3355 = scalar_lea.vmem [#allocation1], 137
    %s3356 = smov 3
    %v3357 = vld [vmem:[%s3355] ss:$16 sm:%s3356]
    %s3358 = scalar_lea.vmem [#allocation1], 137
    %s3359 = smov 12
    %v3360 = vld [vmem:[%s3358] ss:$16 sm:%s3359]
    %vm3361 = vcmask 1043458
    %v3362 = vsel %vm3361, %v3360, %v3357
    %s3363 = scalar_lea.vmem [#allocation1], 137
    %s3364 = smov 48
    %v3365 = vld [vmem:[%s3363] ss:$16 sm:%s3364]
    %vm3366 = vcmask 1045508
    %v3367 = vsel %vm3366, %v3365, %v3362
    %s3368 = scalar_lea.vmem [#allocation1], 137
    %s3369 = smov 192
    %v3370 = vld [vmem:[%s3368] ss:$16 sm:%s3369]
    %vm3371 = vcmask 1047558
    %v3372 = vsel %vm3371, %v3370, %v3367
    %3373 = vrot.lane.b32.xlu0 %v3372, 36
    %v3374 = vpop.permute.xlu0 %3373
    %vm3375 = vcmask 326944
    %s3376 = scalar_lea.vmem [#allocation0], 8
    %3377 = vst.msk [vmem:[%s3376] sm:$0xff] %vm3375, %v3374
    %s3378 = scalar_lea.vmem [#allocation1], 649
    %s3379 = smov 3
    %v3380 = vld [vmem:[%s3378] ss:$16 sm:%s3379]
    %s3381 = scalar_lea.vmem [#allocation1], 649
    %s3382 = smov 12
    %v3383 = vld [vmem:[%s3381] ss:$16 sm:%s3382]
    %vm3384 = vcmask 1043458
    %v3385 = vsel %vm3384, %v3383, %v3380
    %s3386 = scalar_lea.vmem [#allocation1], 649
    %s3387 = smov 48
    %v3388 = vld [vmem:[%s3386] ss:$16 sm:%s3387]
    %vm3389 = vcmask 1045508
    %v3390 = vsel %vm3389, %v3388, %v3385
    %s3391 = scalar_lea.vmem [#allocation1], 649
    %s3392 = smov 192
    %v3393 = vld [vmem:[%s3391] ss:$16 sm:%s3392]
    %vm3394 = vcmask 1047558
    %v3395 = vsel %vm3394, %v3393, %v3390
    %3396 = vrot.lane.b32.xlu0 %v3395, 36
    %v3397 = vpop.permute.xlu0 %3396
    %vm3398 = vcmask 326944
    %s3399 = scalar_lea.vmem [#allocation0], 40
    %3400 = vst.msk [vmem:[%s3399] sm:$0xff] %vm3398, %v3397
    %s3401 = scalar_lea.vmem [#allocation1], 265
    %s3402 = smov 3
    %v3403 = vld [vmem:[%s3401] ss:$16 sm:%s3402]
    %s3404 = scalar_lea.vmem [#allocation1], 265
    %s3405 = smov 12
    %v3406 = vld [vmem:[%s3404] ss:$16 sm:%s3405]
    %vm3407 = vcmask 1043458
    %v3408 = vsel %vm3407, %v3406, %v3403
    %s3409 = scalar_lea.vmem [#allocation1], 265
    %s3410 = smov 48
    %v3411 = vld [vmem:[%s3409] ss:$16 sm:%s3410]
    %vm3412 = vcmask 1045508
    %v3413 = vsel %vm3412, %v3411, %v3408
    %s3414 = scalar_lea.vmem [#allocation1], 265
    %s3415 = smov 192
    %v3416 = vld [vmem:[%s3414] ss:$16 sm:%s3415]
    %vm3417 = vcmask 1047558
    %v3418 = vsel %vm3417, %v3416, %v3413
    %3419 = vrot.lane.b32.xlu0 %v3418, 36
    %v3420 = vpop.permute.xlu0 %3419
    %vm3421 = vcmask 326944
    %s3422 = scalar_lea.vmem [#allocation0], 16
    %3423 = vst.msk [vmem:[%s3422] sm:$0xff] %vm3421, %v3420
    %s3424 = scalar_lea.vmem [#allocation1], 777
    %s3425 = smov 3
    %v3426 = vld [vmem:[%s3424] ss:$16 sm:%s3425]
    %s3427 = scalar_lea.vmem [#allocation1], 777
    %s3428 = smov 12
    %v3429 = vld [vmem:[%s3427] ss:$16 sm:%s3428]
    %vm3430 = vcmask 1043458
    %v3431 = vsel %vm3430, %v3429, %v3426
    %s3432 = scalar_lea.vmem [#allocation1], 777
    %s3433 = smov 48
    %v3434 = vld [vmem:[%s3432] ss:$16 sm:%s3433]
    %vm3435 = vcmask 1045508
    %v3436 = vsel %vm3435, %v3434, %v3431
    %s3437 = scalar_lea.vmem [#allocation1], 777
    %s3438 = smov 192
    %v3439 = vld [vmem:[%s3437] ss:$16 sm:%s3438]
    %vm3440 = vcmask 1047558
    %v3441 = vsel %vm3440, %v3439, %v3436
    %3442 = vrot.lane.b32.xlu0 %v3441, 36
    %v3443 = vpop.permute.xlu0 %3442
    %vm3444 = vcmask 326944
    %s3445 = scalar_lea.vmem [#allocation0], 48
    %3446 = vst.msk [vmem:[%s3445] sm:$0xff] %vm3444, %v3443
    %s3447 = scalar_lea.vmem [#allocation1], 393
    %s3448 = smov 3
    %v3449 = vld [vmem:[%s3447] ss:$16 sm:%s3448]
    %s3450 = scalar_lea.vmem [#allocation1], 393
    %s3451 = smov 12
    %v3452 = vld [vmem:[%s3450] ss:$16 sm:%s3451]
    %vm3453 = vcmask 1043458
    %v3454 = vsel %vm3453, %v3452, %v3449
    %s3455 = scalar_lea.vmem [#allocation1], 393
    %s3456 = smov 48
    %v3457 = vld [vmem:[%s3455] ss:$16 sm:%s3456]
    %vm3458 = vcmask 1045508
    %v3459 = vsel %vm3458, %v3457, %v3454
    %s3460 = scalar_lea.vmem [#allocation1], 393
    %s3461 = smov 192
    %v3462 = vld [vmem:[%s3460] ss:$16 sm:%s3461]
    %vm3463 = vcmask 1047558
    %v3464 = vsel %vm3463, %v3462, %v3459
    %3465 = vrot.lane.b32.xlu0 %v3464, 36
    %v3466 = vpop.permute.xlu0 %3465
    %vm3467 = vcmask 326944
    %s3468 = scalar_lea.vmem [#allocation0], 24
    %3469 = vst.msk [vmem:[%s3468] sm:$0xff] %vm3467, %v3466
    %s3470 = scalar_lea.vmem [#allocation1], 905
    %s3471 = smov 3
    %v3472 = vld [vmem:[%s3470] ss:$16 sm:%s3471]
    %s3473 = scalar_lea.vmem [#allocation1], 905
    %s3474 = smov 12
    %v3475 = vld [vmem:[%s3473] ss:$16 sm:%s3474]
    %vm3476 = vcmask 1043458
    %v3477 = vsel %vm3476, %v3475, %v3472
    %s3478 = scalar_lea.vmem [#allocation1], 905
    %s3479 = smov 48
    %v3480 = vld [vmem:[%s3478] ss:$16 sm:%s3479]
    %vm3481 = vcmask 1045508
    %v3482 = vsel %vm3481, %v3480, %v3477
    %s3483 = scalar_lea.vmem [#allocation1], 905
    %s3484 = smov 192
    %v3485 = vld [vmem:[%s3483] ss:$16 sm:%s3484]
    %vm3486 = vcmask 1047558
    %v3487 = vsel %vm3486, %v3485, %v3482
    %3488 = vrot.lane.b32.xlu0 %v3487, 36
    %v3489 = vpop.permute.xlu0 %3488
    %vm3490 = vcmask 326944
    %s3491 = scalar_lea.vmem [#allocation0], 56
    %3492 = vst.msk [vmem:[%s3491] sm:$0xff] %vm3490, %v3489
    %s3493 = scalar_lea.vmem [#allocation1], 8
    %s3494 = smov 3
    %v3495 = vld [vmem:[%s3493] ss:$16 sm:%s3494]
    %s3496 = scalar_lea.vmem [#allocation1], 8
    %s3497 = smov 12
    %v3498 = vld [vmem:[%s3496] ss:$16 sm:%s3497]
    %vm3499 = vcmask 1043458
    %v3500 = vsel %vm3499, %v3498, %v3495
    %s3501 = scalar_lea.vmem [#allocation1], 8
    %s3502 = smov 48
    %v3503 = vld [vmem:[%s3501] ss:$16 sm:%s3502]
    %vm3504 = vcmask 1045508
    %v3505 = vsel %vm3504, %v3503, %v3500
    %s3506 = scalar_lea.vmem [#allocation1], 8
    %s3507 = smov 192
    %v3508 = vld [vmem:[%s3506] ss:$16 sm:%s3507]
    %vm3509 = vcmask 1047558
    %v3510 = vsel %vm3509, %v3508, %v3505
    %3511 = vrot.lane.b32.xlu0 %v3510, 32
    %v3512 = vpop.permute.xlu0 %3511
    %vm3513 = vcmask 294144
    %3514 = vst.msk [vmem:[#allocation0] sm:$0xff] %vm3513, %v3512
    %s3515 = scalar_lea.vmem [#allocation1], 520
    %s3516 = smov 3
    %v3517 = vld [vmem:[%s3515] ss:$16 sm:%s3516]
    %s3518 = scalar_lea.vmem [#allocation1], 520
    %s3519 = smov 12
    %v3520 = vld [vmem:[%s3518] ss:$16 sm:%s3519]
    %vm3521 = vcmask 1043458
    %v3522 = vsel %vm3521, %v3520, %v3517
    %s3523 = scalar_lea.vmem [#allocation1], 520
    %s3524 = smov 48
    %v3525 = vld [vmem:[%s3523] ss:$16 sm:%s3524]
    %vm3526 = vcmask 1045508
    %v3527 = vsel %vm3526, %v3525, %v3522
    %s3528 = scalar_lea.vmem [#allocation1], 520
    %s3529 = smov 192
    %v3530 = vld [vmem:[%s3528] ss:$16 sm:%s3529]
    %vm3531 = vcmask 1047558
    %v3532 = vsel %vm3531, %v3530, %v3527
    %3533 = vrot.lane.b32.xlu0 %v3532, 32
    %v3534 = vpop.permute.xlu0 %3533
    %vm3535 = vcmask 294144
    %s3536 = scalar_lea.vmem [#allocation0], 32
    %3537 = vst.msk [vmem:[%s3536] sm:$0xff] %vm3535, %v3534
    %s3538 = scalar_lea.vmem [#allocation1], 136
    %s3539 = smov 3
    %v3540 = vld [vmem:[%s3538] ss:$16 sm:%s3539]
    %s3541 = scalar_lea.vmem [#allocation1], 136
    %s3542 = smov 12
    %v3543 = vld [vmem:[%s3541] ss:$16 sm:%s3542]
    %vm3544 = vcmask 1043458
    %v3545 = vsel %vm3544, %v3543, %v3540
    %s3546 = scalar_lea.vmem [#allocation1], 136
    %s3547 = smov 48
    %v3548 = vld [vmem:[%s3546] ss:$16 sm:%s3547]
    %vm3549 = vcmask 1045508
    %v3550 = vsel %vm3549, %v3548, %v3545
    %s3551 = scalar_lea.vmem [#allocation1], 136
    %s3552 = smov 192
    %v3553 = vld [vmem:[%s3551] ss:$16 sm:%s3552]
    %vm3554 = vcmask 1047558
    %v3555 = vsel %vm3554, %v3553, %v3550
    %3556 = vrot.lane.b32.xlu0 %v3555, 32
    %v3557 = vpop.permute.xlu0 %3556
    %vm3558 = vcmask 294144
    %s3559 = scalar_lea.vmem [#allocation0], 8
    %3560 = vst.msk [vmem:[%s3559] sm:$0xff] %vm3558, %v3557
    %s3561 = scalar_lea.vmem [#allocation1], 648
    %s3562 = smov 3
    %v3563 = vld [vmem:[%s3561] ss:$16 sm:%s3562]
    %s3564 = scalar_lea.vmem [#allocation1], 648
    %s3565 = smov 12
    %v3566 = vld [vmem:[%s3564] ss:$16 sm:%s3565]
    %vm3567 = vcmask 1043458
    %v3568 = vsel %vm3567, %v3566, %v3563
    %s3569 = scalar_lea.vmem [#allocation1], 648
    %s3570 = smov 48
    %v3571 = vld [vmem:[%s3569] ss:$16 sm:%s3570]
    %vm3572 = vcmask 1045508
    %v3573 = vsel %vm3572, %v3571, %v3568
    %s3574 = scalar_lea.vmem [#allocation1], 648
    %s3575 = smov 192
    %v3576 = vld [vmem:[%s3574] ss:$16 sm:%s3575]
    %vm3577 = vcmask 1047558
    %v3578 = vsel %vm3577, %v3576, %v3573
    %3579 = vrot.lane.b32.xlu0 %v3578, 32
    %v3580 = vpop.permute.xlu0 %3579
    %vm3581 = vcmask 294144
    %s3582 = scalar_lea.vmem [#allocation0], 40
    %3583 = vst.msk [vmem:[%s3582] sm:$0xff] %vm3581, %v3580
    %s3584 = scalar_lea.vmem [#allocation1], 264
    %s3585 = smov 3
    %v3586 = vld [vmem:[%s3584] ss:$16 sm:%s3585]
    %s3587 = scalar_lea.vmem [#allocation1], 264
    %s3588 = smov 12
    %v3589 = vld [vmem:[%s3587] ss:$16 sm:%s3588]
    %vm3590 = vcmask 1043458
    %v3591 = vsel %vm3590, %v3589, %v3586
    %s3592 = scalar_lea.vmem [#allocation1], 264
    %s3593 = smov 48
    %v3594 = vld [vmem:[%s3592] ss:$16 sm:%s3593]
    %vm3595 = vcmask 1045508
    %v3596 = vsel %vm3595, %v3594, %v3591
    %s3597 = scalar_lea.vmem [#allocation1], 264
    %s3598 = smov 192
    %v3599 = vld [vmem:[%s3597] ss:$16 sm:%s3598]
    %vm3600 = vcmask 1047558
    %v3601 = vsel %vm3600, %v3599, %v3596
    %3602 = vrot.lane.b32.xlu0 %v3601, 32
    %v3603 = vpop.permute.xlu0 %3602
    %vm3604 = vcmask 294144
    %s3605 = scalar_lea.vmem [#allocation0], 16
    %3606 = vst.msk [vmem:[%s3605] sm:$0xff] %vm3604, %v3603
    %s3607 = scalar_lea.vmem [#allocation1], 776
    %s3608 = smov 3
    %v3609 = vld [vmem:[%s3607] ss:$16 sm:%s3608]
    %s3610 = scalar_lea.vmem [#allocation1], 776
    %s3611 = smov 12
    %v3612 = vld [vmem:[%s3610] ss:$16 sm:%s3611]
    %vm3613 = vcmask 1043458
    %v3614 = vsel %vm3613, %v3612, %v3609
    %s3615 = scalar_lea.vmem [#allocation1], 776
    %s3616 = smov 48
    %v3617 = vld [vmem:[%s3615] ss:$16 sm:%s3616]
    %vm3618 = vcmask 1045508
    %v3619 = vsel %vm3618, %v3617, %v3614
    %s3620 = scalar_lea.vmem [#allocation1], 776
    %s3621 = smov 192
    %v3622 = vld [vmem:[%s3620] ss:$16 sm:%s3621]
    %vm3623 = vcmask 1047558
    %v3624 = vsel %vm3623, %v3622, %v3619
    %3625 = vrot.lane.b32.xlu0 %v3624, 32
    %v3626 = vpop.permute.xlu0 %3625
    %vm3627 = vcmask 294144
    %s3628 = scalar_lea.vmem [#allocation0], 48
    %3629 = vst.msk [vmem:[%s3628] sm:$0xff] %vm3627, %v3626
    %s3630 = scalar_lea.vmem [#allocation1], 392
    %s3631 = smov 3
    %v3632 = vld [vmem:[%s3630] ss:$16 sm:%s3631]
    %s3633 = scalar_lea.vmem [#allocation1], 392
    %s3634 = smov 12
    %v3635 = vld [vmem:[%s3633] ss:$16 sm:%s3634]
    %vm3636 = vcmask 1043458
    %v3637 = vsel %vm3636, %v3635, %v3632
    %s3638 = scalar_lea.vmem [#allocation1], 392
    %s3639 = smov 48
    %v3640 = vld [vmem:[%s3638] ss:$16 sm:%s3639]
    %vm3641 = vcmask 1045508
    %v3642 = vsel %vm3641, %v3640, %v3637
    %s3643 = scalar_lea.vmem [#allocation1], 392
    %s3644 = smov 192
    %v3645 = vld [vmem:[%s3643] ss:$16 sm:%s3644]
    %vm3646 = vcmask 1047558
    %v3647 = vsel %vm3646, %v3645, %v3642
    %3648 = vrot.lane.b32.xlu0 %v3647, 32
    %v3649 = vpop.permute.xlu0 %3648
    %vm3650 = vcmask 294144
    %s3651 = scalar_lea.vmem [#allocation0], 24
    %3652 = vst.msk [vmem:[%s3651] sm:$0xff] %vm3650, %v3649
    %s3653 = scalar_lea.vmem [#allocation1], 904
    %s3654 = smov 3
    %v3655 = vld [vmem:[%s3653] ss:$16 sm:%s3654]
    %s3656 = scalar_lea.vmem [#allocation1], 904
    %s3657 = smov 12
    %v3658 = vld [vmem:[%s3656] ss:$16 sm:%s3657]
    %vm3659 = vcmask 1043458
    %v3660 = vsel %vm3659, %v3658, %v3655
    %s3661 = scalar_lea.vmem [#allocation1], 904
    %s3662 = smov 48
    %v3663 = vld [vmem:[%s3661] ss:$16 sm:%s3662]
    %vm3664 = vcmask 1045508
    %v3665 = vsel %vm3664, %v3663, %v3660
    %s3666 = scalar_lea.vmem [#allocation1], 904
    %s3667 = smov 192
    %v3668 = vld [vmem:[%s3666] ss:$16 sm:%s3667]
    %vm3669 = vcmask 1047558
    %v3670 = vsel %vm3669, %v3668, %v3665
    %3671 = vrot.lane.b32.xlu0 %v3670, 32
    %v3672 = vpop.permute.xlu0 %3671
    %vm3673 = vcmask 294144
    %s3674 = scalar_lea.vmem [#allocation0], 56
    %3675 = vst.msk [vmem:[%s3674] sm:$0xff] %vm3673, %v3672
    %s3676 = scalar_lea.vmem [#allocation1], 7
    %s3677 = smov 3
    %v3678 = vld [vmem:[%s3676] ss:$16 sm:%s3677]
    %s3679 = scalar_lea.vmem [#allocation1], 7
    %s3680 = smov 12
    %v3681 = vld [vmem:[%s3679] ss:$16 sm:%s3680]
    %vm3682 = vcmask 1043458
    %v3683 = vsel %vm3682, %v3681, %v3678
    %s3684 = scalar_lea.vmem [#allocation1], 7
    %s3685 = smov 48
    %v3686 = vld [vmem:[%s3684] ss:$16 sm:%s3685]
    %vm3687 = vcmask 1045508
    %v3688 = vsel %vm3687, %v3686, %v3683
    %s3689 = scalar_lea.vmem [#allocation1], 7
    %s3690 = smov 192
    %v3691 = vld [vmem:[%s3689] ss:$16 sm:%s3690]
    %vm3692 = vcmask 1047558
    %v3693 = vsel %vm3692, %v3691, %v3688
    %3694 = vrot.lane.b32.xlu0 %v3693, 28
    %v3695 = vpop.permute.xlu0 %3694
    %vm3696 = vcmask 261344
    %3697 = vst.msk [vmem:[#allocation0] sm:$0xff] %vm3696, %v3695
    %s3698 = scalar_lea.vmem [#allocation1], 519
    %s3699 = smov 3
    %v3700 = vld [vmem:[%s3698] ss:$16 sm:%s3699]
    %s3701 = scalar_lea.vmem [#allocation1], 519
    %s3702 = smov 12
    %v3703 = vld [vmem:[%s3701] ss:$16 sm:%s3702]
    %vm3704 = vcmask 1043458
    %v3705 = vsel %vm3704, %v3703, %v3700
    %s3706 = scalar_lea.vmem [#allocation1], 519
    %s3707 = smov 48
    %v3708 = vld [vmem:[%s3706] ss:$16 sm:%s3707]
    %vm3709 = vcmask 1045508
    %v3710 = vsel %vm3709, %v3708, %v3705
    %s3711 = scalar_lea.vmem [#allocation1], 519
    %s3712 = smov 192
    %v3713 = vld [vmem:[%s3711] ss:$16 sm:%s3712]
    %vm3714 = vcmask 1047558
    %v3715 = vsel %vm3714, %v3713, %v3710
    %3716 = vrot.lane.b32.xlu0 %v3715, 28
    %v3717 = vpop.permute.xlu0 %3716
    %vm3718 = vcmask 261344
    %s3719 = scalar_lea.vmem [#allocation0], 32
    %3720 = vst.msk [vmem:[%s3719] sm:$0xff] %vm3718, %v3717
    %s3721 = scalar_lea.vmem [#allocation1], 135
    %s3722 = smov 3
    %v3723 = vld [vmem:[%s3721] ss:$16 sm:%s3722]
    %s3724 = scalar_lea.vmem [#allocation1], 135
    %s3725 = smov 12
    %v3726 = vld [vmem:[%s3724] ss:$16 sm:%s3725]
    %vm3727 = vcmask 1043458
    %v3728 = vsel %vm3727, %v3726, %v3723
    %s3729 = scalar_lea.vmem [#allocation1], 135
    %s3730 = smov 48
    %v3731 = vld [vmem:[%s3729] ss:$16 sm:%s3730]
    %vm3732 = vcmask 1045508
    %v3733 = vsel %vm3732, %v3731, %v3728
    %s3734 = scalar_lea.vmem [#allocation1], 135
    %s3735 = smov 192
    %v3736 = vld [vmem:[%s3734] ss:$16 sm:%s3735]
    %vm3737 = vcmask 1047558
    %v3738 = vsel %vm3737, %v3736, %v3733
    %3739 = vrot.lane.b32.xlu0 %v3738, 28
    %v3740 = vpop.permute.xlu0 %3739
    %vm3741 = vcmask 261344
    %s3742 = scalar_lea.vmem [#allocation0], 8
    %3743 = vst.msk [vmem:[%s3742] sm:$0xff] %vm3741, %v3740
    %s3744 = scalar_lea.vmem [#allocation1], 647
    %s3745 = smov 3
    %v3746 = vld [vmem:[%s3744] ss:$16 sm:%s3745]
    %s3747 = scalar_lea.vmem [#allocation1], 647
    %s3748 = smov 12
    %v3749 = vld [vmem:[%s3747] ss:$16 sm:%s3748]
    %vm3750 = vcmask 1043458
    %v3751 = vsel %vm3750, %v3749, %v3746
    %s3752 = scalar_lea.vmem [#allocation1], 647
    %s3753 = smov 48
    %v3754 = vld [vmem:[%s3752] ss:$16 sm:%s3753]
    %vm3755 = vcmask 1045508
    %v3756 = vsel %vm3755, %v3754, %v3751
    %s3757 = scalar_lea.vmem [#allocation1], 647
    %s3758 = smov 192
    %v3759 = vld [vmem:[%s3757] ss:$16 sm:%s3758]
    %vm3760 = vcmask 1047558
    %v3761 = vsel %vm3760, %v3759, %v3756
    %3762 = vrot.lane.b32.xlu0 %v3761, 28
    %v3763 = vpop.permute.xlu0 %3762
    %vm3764 = vcmask 261344
    %s3765 = scalar_lea.vmem [#allocation0], 40
    %3766 = vst.msk [vmem:[%s3765] sm:$0xff] %vm3764, %v3763
    %s3767 = scalar_lea.vmem [#allocation1], 263
    %s3768 = smov 3
    %v3769 = vld [vmem:[%s3767] ss:$16 sm:%s3768]
    %s3770 = scalar_lea.vmem [#allocation1], 263
    %s3771 = smov 12
    %v3772 = vld [vmem:[%s3770] ss:$16 sm:%s3771]
    %vm3773 = vcmask 1043458
    %v3774 = vsel %vm3773, %v3772, %v3769
    %s3775 = scalar_lea.vmem [#allocation1], 263
    %s3776 = smov 48
    %v3777 = vld [vmem:[%s3775] ss:$16 sm:%s3776]
    %vm3778 = vcmask 1045508
    %v3779 = vsel %vm3778, %v3777, %v3774
    %s3780 = scalar_lea.vmem [#allocation1], 263
    %s3781 = smov 192
    %v3782 = vld [vmem:[%s3780] ss:$16 sm:%s3781]
    %vm3783 = vcmask 1047558
    %v3784 = vsel %vm3783, %v3782, %v3779
    %3785 = vrot.lane.b32.xlu0 %v3784, 28
    %v3786 = vpop.permute.xlu0 %3785
    %vm3787 = vcmask 261344
    %s3788 = scalar_lea.vmem [#allocation0], 16
    %3789 = vst.msk [vmem:[%s3788] sm:$0xff] %vm3787, %v3786
    %s3790 = scalar_lea.vmem [#allocation1], 775
    %s3791 = smov 3
    %v3792 = vld [vmem:[%s3790] ss:$16 sm:%s3791]
    %s3793 = scalar_lea.vmem [#allocation1], 775
    %s3794 = smov 12
    %v3795 = vld [vmem:[%s3793] ss:$16 sm:%s3794]
    %vm3796 = vcmask 1043458
    %v3797 = vsel %vm3796, %v3795, %v3792
    %s3798 = scalar_lea.vmem [#allocation1], 775
    %s3799 = smov 48
    %v3800 = vld [vmem:[%s3798] ss:$16 sm:%s3799]
    %vm3801 = vcmask 1045508
    %v3802 = vsel %vm3801, %v3800, %v3797
    %s3803 = scalar_lea.vmem [#allocation1], 775
    %s3804 = smov 192
    %v3805 = vld [vmem:[%s3803] ss:$16 sm:%s3804]
    %vm3806 = vcmask 1047558
    %v3807 = vsel %vm3806, %v3805, %v3802
    %3808 = vrot.lane.b32.xlu0 %v3807, 28
    %v3809 = vpop.permute.xlu0 %3808
    %vm3810 = vcmask 261344
    %s3811 = scalar_lea.vmem [#allocation0], 48
    %3812 = vst.msk [vmem:[%s3811] sm:$0xff] %vm3810, %v3809
    %s3813 = scalar_lea.vmem [#allocation1], 391
    %s3814 = smov 3
    %v3815 = vld [vmem:[%s3813] ss:$16 sm:%s3814]
    %s3816 = scalar_lea.vmem [#allocation1], 391
    %s3817 = smov 12
    %v3818 = vld [vmem:[%s3816] ss:$16 sm:%s3817]
    %vm3819 = vcmask 1043458
    %v3820 = vsel %vm3819, %v3818, %v3815
    %s3821 = scalar_lea.vmem [#allocation1], 391
    %s3822 = smov 48
    %v3823 = vld [vmem:[%s3821] ss:$16 sm:%s3822]
    %vm3824 = vcmask 1045508
    %v3825 = vsel %vm3824, %v3823, %v3820
    %s3826 = scalar_lea.vmem [#allocation1], 391
    %s3827 = smov 192
    %v3828 = vld [vmem:[%s3826] ss:$16 sm:%s3827]
    %vm3829 = vcmask 1047558
    %v3830 = vsel %vm3829, %v3828, %v3825
    %3831 = vrot.lane.b32.xlu0 %v3830, 28
    %v3832 = vpop.permute.xlu0 %3831
    %vm3833 = vcmask 261344
    %s3834 = scalar_lea.vmem [#allocation0], 24
    %3835 = vst.msk [vmem:[%s3834] sm:$0xff] %vm3833, %v3832
    %s3836 = scalar_lea.vmem [#allocation1], 903
    %s3837 = smov 3
    %v3838 = vld [vmem:[%s3836] ss:$16 sm:%s3837]
    %s3839 = scalar_lea.vmem [#allocation1], 903
    %s3840 = smov 12
    %v3841 = vld [vmem:[%s3839] ss:$16 sm:%s3840]
    %vm3842 = vcmask 1043458
    %v3843 = vsel %vm3842, %v3841, %v3838
    %s3844 = scalar_lea.vmem [#allocation1], 903
    %s3845 = smov 48
    %v3846 = vld [vmem:[%s3844] ss:$16 sm:%s3845]
    %vm3847 = vcmask 1045508
    %v3848 = vsel %vm3847, %v3846, %v3843
    %s3849 = scalar_lea.vmem [#allocation1], 903
    %s3850 = smov 192
    %v3851 = vld [vmem:[%s3849] ss:$16 sm:%s3850]
    %vm3852 = vcmask 1047558
    %v3853 = vsel %vm3852, %v3851, %v3848
    %3854 = vrot.lane.b32.xlu0 %v3853, 28
    %v3855 = vpop.permute.xlu0 %3854
    %vm3856 = vcmask 261344
    %s3857 = scalar_lea.vmem [#allocation0], 56
    %3858 = vst.msk [vmem:[%s3857] sm:$0xff] %vm3856, %v3855
    %s3859 = scalar_lea.vmem [#allocation1], 6
    %s3860 = smov 3
    %v3861 = vld [vmem:[%s3859] ss:$16 sm:%s3860]
    %s3862 = scalar_lea.vmem [#allocation1], 6
    %s3863 = smov 12
    %v3864 = vld [vmem:[%s3862] ss:$16 sm:%s3863]
    %vm3865 = vcmask 1043458
    %v3866 = vsel %vm3865, %v3864, %v3861
    %s3867 = scalar_lea.vmem [#allocation1], 6
    %s3868 = smov 48
    %v3869 = vld [vmem:[%s3867] ss:$16 sm:%s3868]
    %vm3870 = vcmask 1045508
    %v3871 = vsel %vm3870, %v3869, %v3866
    %s3872 = scalar_lea.vmem [#allocation1], 6
    %s3873 = smov 192
    %v3874 = vld [vmem:[%s3872] ss:$16 sm:%s3873]
    %vm3875 = vcmask 1047558
    %v3876 = vsel %vm3875, %v3874, %v3871
    %3877 = vrot.lane.b32.xlu0 %v3876, 24
    %v3878 = vpop.permute.xlu0 %3877
    %vm3879 = vcmask 228544
    %3880 = vst.msk [vmem:[#allocation0] sm:$0xff] %vm3879, %v3878
    %s3881 = scalar_lea.vmem [#allocation1], 518
    %s3882 = smov 3
    %v3883 = vld [vmem:[%s3881] ss:$16 sm:%s3882]
    %s3884 = scalar_lea.vmem [#allocation1], 518
    %s3885 = smov 12
    %v3886 = vld [vmem:[%s3884] ss:$16 sm:%s3885]
    %vm3887 = vcmask 1043458
    %v3888 = vsel %vm3887, %v3886, %v3883
    %s3889 = scalar_lea.vmem [#allocation1], 518
    %s3890 = smov 48
    %v3891 = vld [vmem:[%s3889] ss:$16 sm:%s3890]
    %vm3892 = vcmask 1045508
    %v3893 = vsel %vm3892, %v3891, %v3888
    %s3894 = scalar_lea.vmem [#allocation1], 518
    %s3895 = smov 192
    %v3896 = vld [vmem:[%s3894] ss:$16 sm:%s3895]
    %vm3897 = vcmask 1047558
    %v3898 = vsel %vm3897, %v3896, %v3893
    %3899 = vrot.lane.b32.xlu0 %v3898, 24
    %v3900 = vpop.permute.xlu0 %3899
    %vm3901 = vcmask 228544
    %s3902 = scalar_lea.vmem [#allocation0], 32
    %3903 = vst.msk [vmem:[%s3902] sm:$0xff] %vm3901, %v3900
    %s3904 = scalar_lea.vmem [#allocation1], 134
    %s3905 = smov 3
    %v3906 = vld [vmem:[%s3904] ss:$16 sm:%s3905]
    %s3907 = scalar_lea.vmem [#allocation1], 134
    %s3908 = smov 12
    %v3909 = vld [vmem:[%s3907] ss:$16 sm:%s3908]
    %vm3910 = vcmask 1043458
    %v3911 = vsel %vm3910, %v3909, %v3906
    %s3912 = scalar_lea.vmem [#allocation1], 134
    %s3913 = smov 48
    %v3914 = vld [vmem:[%s3912] ss:$16 sm:%s3913]
    %vm3915 = vcmask 1045508
    %v3916 = vsel %vm3915, %v3914, %v3911
    %s3917 = scalar_lea.vmem [#allocation1], 134
    %s3918 = smov 192
    %v3919 = vld [vmem:[%s3917] ss:$16 sm:%s3918]
    %vm3920 = vcmask 1047558
    %v3921 = vsel %vm3920, %v3919, %v3916
    %3922 = vrot.lane.b32.xlu0 %v3921, 24
    %v3923 = vpop.permute.xlu0 %3922
    %vm3924 = vcmask 228544
    %s3925 = scalar_lea.vmem [#allocation0], 8
    %3926 = vst.msk [vmem:[%s3925] sm:$0xff] %vm3924, %v3923
    %s3927 = scalar_lea.vmem [#allocation1], 646
    %s3928 = smov 3
    %v3929 = vld [vmem:[%s3927] ss:$16 sm:%s3928]
    %s3930 = scalar_lea.vmem [#allocation1], 646
    %s3931 = smov 12
    %v3932 = vld [vmem:[%s3930] ss:$16 sm:%s3931]
    %vm3933 = vcmask 1043458
    %v3934 = vsel %vm3933, %v3932, %v3929
    %s3935 = scalar_lea.vmem [#allocation1], 646
    %s3936 = smov 48
    %v3937 = vld [vmem:[%s3935] ss:$16 sm:%s3936]
    %vm3938 = vcmask 1045508
    %v3939 = vsel %vm3938, %v3937, %v3934
    %s3940 = scalar_lea.vmem [#allocation1], 646
    %s3941 = smov 192
    %v3942 = vld [vmem:[%s3940] ss:$16 sm:%s3941]
    %vm3943 = vcmask 1047558
    %v3944 = vsel %vm3943, %v3942, %v3939
    %3945 = vrot.lane.b32.xlu0 %v3944, 24
    %v3946 = vpop.permute.xlu0 %3945
    %vm3947 = vcmask 228544
    %s3948 = scalar_lea.vmem [#allocation0], 40
    %3949 = vst.msk [vmem:[%s3948] sm:$0xff] %vm3947, %v3946
    %s3950 = scalar_lea.vmem [#allocation1], 262
    %s3951 = smov 3
    %v3952 = vld [vmem:[%s3950] ss:$16 sm:%s3951]
    %s3953 = scalar_lea.vmem [#allocation1], 262
    %s3954 = smov 12
    %v3955 = vld [vmem:[%s3953] ss:$16 sm:%s3954]
    %vm3956 = vcmask 1043458
    %v3957 = vsel %vm3956, %v3955, %v3952
    %s3958 = scalar_lea.vmem [#allocation1], 262
    %s3959 = smov 48
    %v3960 = vld [vmem:[%s3958] ss:$16 sm:%s3959]
    %vm3961 = vcmask 1045508
    %v3962 = vsel %vm3961, %v3960, %v3957
    %s3963 = scalar_lea.vmem [#allocation1], 262
    %s3964 = smov 192
    %v3965 = vld [vmem:[%s3963] ss:$16 sm:%s3964]
    %vm3966 = vcmask 1047558
    %v3967 = vsel %vm3966, %v3965, %v3962
    %3968 = vrot.lane.b32.xlu0 %v3967, 24
    %v3969 = vpop.permute.xlu0 %3968
    %vm3970 = vcmask 228544
    %s3971 = scalar_lea.vmem [#allocation0], 16
    %3972 = vst.msk [vmem:[%s3971] sm:$0xff] %vm3970, %v3969
    %s3973 = scalar_lea.vmem [#allocation1], 774
    %s3974 = smov 3
    %v3975 = vld [vmem:[%s3973] ss:$16 sm:%s3974]
    %s3976 = scalar_lea.vmem [#allocation1], 774
    %s3977 = smov 12
    %v3978 = vld [vmem:[%s3976] ss:$16 sm:%s3977]
    %vm3979 = vcmask 1043458
    %v3980 = vsel %vm3979, %v3978, %v3975
    %s3981 = scalar_lea.vmem [#allocation1], 774
    %s3982 = smov 48
    %v3983 = vld [vmem:[%s3981] ss:$16 sm:%s3982]
    %vm3984 = vcmask 1045508
    %v3985 = vsel %vm3984, %v3983, %v3980
    %s3986 = scalar_lea.vmem [#allocation1], 774
    %s3987 = smov 192
    %v3988 = vld [vmem:[%s3986] ss:$16 sm:%s3987]
    %vm3989 = vcmask 1047558
    %v3990 = vsel %vm3989, %v3988, %v3985
    %3991 = vrot.lane.b32.xlu0 %v3990, 24
    %v3992 = vpop.permute.xlu0 %3991
    %vm3993 = vcmask 228544
    %s3994 = scalar_lea.vmem [#allocation0], 48
    %3995 = vst.msk [vmem:[%s3994] sm:$0xff] %vm3993, %v3992
    %s3996 = scalar_lea.vmem [#allocation1], 390
    %s3997 = smov 3
    %v3998 = vld [vmem:[%s3996] ss:$16 sm:%s3997]
    %s3999 = scalar_lea.vmem [#allocation1], 390
    %s4000 = smov 12
    %v4001 = vld [vmem:[%s3999] ss:$16 sm:%s4000]
    %vm4002 = vcmask 1043458
    %v4003 = vsel %vm4002, %v4001, %v3998
    %s4004 = scalar_lea.vmem [#allocation1], 390
    %s4005 = smov 48
    %v4006 = vld [vmem:[%s4004] ss:$16 sm:%s4005]
    %vm4007 = vcmask 1045508
    %v4008 = vsel %vm4007, %v4006, %v4003
    %s4009 = scalar_lea.vmem [#allocation1], 390
    %s4010 = smov 192
    %v4011 = vld [vmem:[%s4009] ss:$16 sm:%s4010]
    %vm4012 = vcmask 1047558
    %v4013 = vsel %vm4012, %v4011, %v4008
    %4014 = vrot.lane.b32.xlu0 %v4013, 24
    %v4015 = vpop.permute.xlu0 %4014
    %vm4016 = vcmask 228544
    %s4017 = scalar_lea.vmem [#allocation0], 24
    %4018 = vst.msk [vmem:[%s4017] sm:$0xff] %vm4016, %v4015
    %s4019 = scalar_lea.vmem [#allocation1], 902
    %s4020 = smov 3
    %v4021 = vld [vmem:[%s4019] ss:$16 sm:%s4020]
    %s4022 = scalar_lea.vmem [#allocation1], 902
    %s4023 = smov 12
    %v4024 = vld [vmem:[%s4022] ss:$16 sm:%s4023]
    %vm4025 = vcmask 1043458
    %v4026 = vsel %vm4025, %v4024, %v4021
    %s4027 = scalar_lea.vmem [#allocation1], 902
    %s4028 = smov 48
    %v4029 = vld [vmem:[%s4027] ss:$16 sm:%s4028]
    %vm4030 = vcmask 1045508
    %v4031 = vsel %vm4030, %v4029, %v4026
    %s4032 = scalar_lea.vmem [#allocation1], 902
    %s4033 = smov 192
    %v4034 = vld [vmem:[%s4032] ss:$16 sm:%s4033]
    %vm4035 = vcmask 1047558
    %v4036 = vsel %vm4035, %v4034, %v4031
    %4037 = vrot.lane.b32.xlu0 %v4036, 24
    %v4038 = vpop.permute.xlu0 %4037
    %vm4039 = vcmask 228544
    %s4040 = scalar_lea.vmem [#allocation0], 56
    %4041 = vst.msk [vmem:[%s4040] sm:$0xff] %vm4039, %v4038
    %s4042 = scalar_lea.vmem [#allocation1], 5
    %s4043 = smov 3
    %v4044 = vld [vmem:[%s4042] ss:$16 sm:%s4043]
    %s4045 = scalar_lea.vmem [#allocation1], 5
    %s4046 = smov 12
    %v4047 = vld [vmem:[%s4045] ss:$16 sm:%s4046]
    %vm4048 = vcmask 1043458
    %v4049 = vsel %vm4048, %v4047, %v4044
    %s4050 = scalar_lea.vmem [#allocation1], 5
    %s4051 = smov 48
    %v4052 = vld [vmem:[%s4050] ss:$16 sm:%s4051]
    %vm4053 = vcmask 1045508
    %v4054 = vsel %vm4053, %v4052, %v4049
    %s4055 = scalar_lea.vmem [#allocation1], 5
    %s4056 = smov 192
    %v4057 = vld [vmem:[%s4055] ss:$16 sm:%s4056]
    %vm4058 = vcmask 1047558
    %v4059 = vsel %vm4058, %v4057, %v4054
    %4060 = vrot.lane.b32.xlu0 %v4059, 20
    %v4061 = vpop.permute.xlu0 %4060
    %vm4062 = vcmask 195744
    %4063 = vst.msk [vmem:[#allocation0] sm:$0xff] %vm4062, %v4061
    %s4064 = scalar_lea.vmem [#allocation1], 517
    %s4065 = smov 3
    %v4066 = vld [vmem:[%s4064] ss:$16 sm:%s4065]
    %s4067 = scalar_lea.vmem [#allocation1], 517
    %s4068 = smov 12
    %v4069 = vld [vmem:[%s4067] ss:$16 sm:%s4068]
    %vm4070 = vcmask 1043458
    %v4071 = vsel %vm4070, %v4069, %v4066
    %s4072 = scalar_lea.vmem [#allocation1], 517
    %s4073 = smov 48
    %v4074 = vld [vmem:[%s4072] ss:$16 sm:%s4073]
    %vm4075 = vcmask 1045508
    %v4076 = vsel %vm4075, %v4074, %v4071
    %s4077 = scalar_lea.vmem [#allocation1], 517
    %s4078 = smov 192
    %v4079 = vld [vmem:[%s4077] ss:$16 sm:%s4078]
    %vm4080 = vcmask 1047558
    %v4081 = vsel %vm4080, %v4079, %v4076
    %4082 = vrot.lane.b32.xlu0 %v4081, 20
    %v4083 = vpop.permute.xlu0 %4082
    %vm4084 = vcmask 195744
    %s4085 = scalar_lea.vmem [#allocation0], 32
    %4086 = vst.msk [vmem:[%s4085] sm:$0xff] %vm4084, %v4083
    %s4087 = scalar_lea.vmem [#allocation1], 133
    %s4088 = smov 3
    %v4089 = vld [vmem:[%s4087] ss:$16 sm:%s4088]
    %s4090 = scalar_lea.vmem [#allocation1], 133
    %s4091 = smov 12
    %v4092 = vld [vmem:[%s4090] ss:$16 sm:%s4091]
    %vm4093 = vcmask 1043458
    %v4094 = vsel %vm4093, %v4092, %v4089
    %s4095 = scalar_lea.vmem [#allocation1], 133
    %s4096 = smov 48
    %v4097 = vld [vmem:[%s4095] ss:$16 sm:%s4096]
    %vm4098 = vcmask 1045508
    %v4099 = vsel %vm4098, %v4097, %v4094
    %s4100 = scalar_lea.vmem [#allocation1], 133
    %s4101 = smov 192
    %v4102 = vld [vmem:[%s4100] ss:$16 sm:%s4101]
    %vm4103 = vcmask 1047558
    %v4104 = vsel %vm4103, %v4102, %v4099
    %4105 = vrot.lane.b32.xlu0 %v4104, 20
    %v4106 = vpop.permute.xlu0 %4105
    %vm4107 = vcmask 195744
    %s4108 = scalar_lea.vmem [#allocation0], 8
    %4109 = vst.msk [vmem:[%s4108] sm:$0xff] %vm4107, %v4106
    %s4110 = scalar_lea.vmem [#allocation1], 645
    %s4111 = smov 3
    %v4112 = vld [vmem:[%s4110] ss:$16 sm:%s4111]
    %s4113 = scalar_lea.vmem [#allocation1], 645
    %s4114 = smov 12
    %v4115 = vld [vmem:[%s4113] ss:$16 sm:%s4114]
    %vm4116 = vcmask 1043458
    %v4117 = vsel %vm4116, %v4115, %v4112
    %s4118 = scalar_lea.vmem [#allocation1], 645
    %s4119 = smov 48
    %v4120 = vld [vmem:[%s4118] ss:$16 sm:%s4119]
    %vm4121 = vcmask 1045508
    %v4122 = vsel %vm4121, %v4120, %v4117
    %s4123 = scalar_lea.vmem [#allocation1], 645
    %s4124 = smov 192
    %v4125 = vld [vmem:[%s4123] ss:$16 sm:%s4124]
    %vm4126 = vcmask 1047558
    %v4127 = vsel %vm4126, %v4125, %v4122
    %4128 = vrot.lane.b32.xlu0 %v4127, 20
    %v4129 = vpop.permute.xlu0 %4128
    %vm4130 = vcmask 195744
    %s4131 = scalar_lea.vmem [#allocation0], 40
    %4132 = vst.msk [vmem:[%s4131] sm:$0xff] %vm4130, %v4129
    %s4133 = scalar_lea.vmem [#allocation1], 261
    %s4134 = smov 3
    %v4135 = vld [vmem:[%s4133] ss:$16 sm:%s4134]
    %s4136 = scalar_lea.vmem [#allocation1], 261
    %s4137 = smov 12
    %v4138 = vld [vmem:[%s4136] ss:$16 sm:%s4137]
    %vm4139 = vcmask 1043458
    %v4140 = vsel %vm4139, %v4138, %v4135
    %s4141 = scalar_lea.vmem [#allocation1], 261
    %s4142 = smov 48
    %v4143 = vld [vmem:[%s4141] ss:$16 sm:%s4142]
    %vm4144 = vcmask 1045508
    %v4145 = vsel %vm4144, %v4143, %v4140
    %s4146 = scalar_lea.vmem [#allocation1], 261
    %s4147 = smov 192
    %v4148 = vld [vmem:[%s4146] ss:$16 sm:%s4147]
    %vm4149 = vcmask 1047558
    %v4150 = vsel %vm4149, %v4148, %v4145
    %4151 = vrot.lane.b32.xlu0 %v4150, 20
    %v4152 = vpop.permute.xlu0 %4151
    %vm4153 = vcmask 195744
    %s4154 = scalar_lea.vmem [#allocation0], 16
    %4155 = vst.msk [vmem:[%s4154] sm:$0xff] %vm4153, %v4152
    %s4156 = scalar_lea.vmem [#allocation1], 773
    %s4157 = smov 3
    %v4158 = vld [vmem:[%s4156] ss:$16 sm:%s4157]
    %s4159 = scalar_lea.vmem [#allocation1], 773
    %s4160 = smov 12
    %v4161 = vld [vmem:[%s4159] ss:$16 sm:%s4160]
    %vm4162 = vcmask 1043458
    %v4163 = vsel %vm4162, %v4161, %v4158
    %s4164 = scalar_lea.vmem [#allocation1], 773
    %s4165 = smov 48
    %v4166 = vld [vmem:[%s4164] ss:$16 sm:%s4165]
    %vm4167 = vcmask 1045508
    %v4168 = vsel %vm4167, %v4166, %v4163
    %s4169 = scalar_lea.vmem [#allocation1], 773
    %s4170 = smov 192
    %v4171 = vld [vmem:[%s4169] ss:$16 sm:%s4170]
    %vm4172 = vcmask 1047558
    %v4173 = vsel %vm4172, %v4171, %v4168
    %4174 = vrot.lane.b32.xlu0 %v4173, 20
    %v4175 = vpop.permute.xlu0 %4174
    %vm4176 = vcmask 195744
    %s4177 = scalar_lea.vmem [#allocation0], 48
    %4178 = vst.msk [vmem:[%s4177] sm:$0xff] %vm4176, %v4175
    %s4179 = scalar_lea.vmem [#allocation1], 389
    %s4180 = smov 3
    %v4181 = vld [vmem:[%s4179] ss:$16 sm:%s4180]
    %s4182 = scalar_lea.vmem [#allocation1], 389
    %s4183 = smov 12
    %v4184 = vld [vmem:[%s4182] ss:$16 sm:%s4183]
    %vm4185 = vcmask 1043458
    %v4186 = vsel %vm4185, %v4184, %v4181
    %s4187 = scalar_lea.vmem [#allocation1], 389
    %s4188 = smov 48
    %v4189 = vld [vmem:[%s4187] ss:$16 sm:%s4188]
    %vm4190 = vcmask 1045508
    %v4191 = vsel %vm4190, %v4189, %v4186
    %s4192 = scalar_lea.vmem [#allocation1], 389
    %s4193 = smov 192
    %v4194 = vld [vmem:[%s4192] ss:$16 sm:%s4193]
    %vm4195 = vcmask 1047558
    %v4196 = vsel %vm4195, %v4194, %v4191
    %4197 = vrot.lane.b32.xlu0 %v4196, 20
    %v4198 = vpop.permute.xlu0 %4197
    %vm4199 = vcmask 195744
    %s4200 = scalar_lea.vmem [#allocation0], 24
    %4201 = vst.msk [vmem:[%s4200] sm:$0xff] %vm4199, %v4198
    %s4202 = scalar_lea.vmem [#allocation1], 901
    %s4203 = smov 3
    %v4204 = vld [vmem:[%s4202] ss:$16 sm:%s4203]
    %s4205 = scalar_lea.vmem [#allocation1], 901
    %s4206 = smov 12
    %v4207 = vld [vmem:[%s4205] ss:$16 sm:%s4206]
    %vm4208 = vcmask 1043458
    %v4209 = vsel %vm4208, %v4207, %v4204
    %s4210 = scalar_lea.vmem [#allocation1], 901
    %s4211 = smov 48
    %v4212 = vld [vmem:[%s4210] ss:$16 sm:%s4211]
    %vm4213 = vcmask 1045508
    %v4214 = vsel %vm4213, %v4212, %v4209
    %s4215 = scalar_lea.vmem [#allocation1], 901
    %s4216 = smov 192
    %v4217 = vld [vmem:[%s4215] ss:$16 sm:%s4216]
    %vm4218 = vcmask 1047558
    %v4219 = vsel %vm4218, %v4217, %v4214
    %4220 = vrot.lane.b32.xlu0 %v4219, 20
    %v4221 = vpop.permute.xlu0 %4220
    %vm4222 = vcmask 195744
    %s4223 = scalar_lea.vmem [#allocation0], 56
    %4224 = vst.msk [vmem:[%s4223] sm:$0xff] %vm4222, %v4221
    %s4225 = scalar_lea.vmem [#allocation1], 4
    %s4226 = smov 3
    %v4227 = vld [vmem:[%s4225] ss:$16 sm:%s4226]
    %s4228 = scalar_lea.vmem [#allocation1], 4
    %s4229 = smov 12
    %v4230 = vld [vmem:[%s4228] ss:$16 sm:%s4229]
    %vm4231 = vcmask 1043458
    %v4232 = vsel %vm4231, %v4230, %v4227
    %s4233 = scalar_lea.vmem [#allocation1], 4
    %s4234 = smov 48
    %v4235 = vld [vmem:[%s4233] ss:$16 sm:%s4234]
    %vm4236 = vcmask 1045508
    %v4237 = vsel %vm4236, %v4235, %v4232
    %s4238 = scalar_lea.vmem [#allocation1], 4
    %s4239 = smov 192
    %v4240 = vld [vmem:[%s4238] ss:$16 sm:%s4239]
    %vm4241 = vcmask 1047558
    %v4242 = vsel %vm4241, %v4240, %v4237
    %4243 = vrot.lane.b32.xlu0 %v4242, 16
    %v4244 = vpop.permute.xlu0 %4243
    %vm4245 = vcmask 162944
    %4246 = vst.msk [vmem:[#allocation0] sm:$0xff] %vm4245, %v4244
    %s4247 = scalar_lea.vmem [#allocation1], 516
    %s4248 = smov 3
    %v4249 = vld [vmem:[%s4247] ss:$16 sm:%s4248]
    %s4250 = scalar_lea.vmem [#allocation1], 516
    %s4251 = smov 12
    %v4252 = vld [vmem:[%s4250] ss:$16 sm:%s4251]
    %vm4253 = vcmask 1043458
    %v4254 = vsel %vm4253, %v4252, %v4249
    %s4255 = scalar_lea.vmem [#allocation1], 516
    %s4256 = smov 48
    %v4257 = vld [vmem:[%s4255] ss:$16 sm:%s4256]
    %vm4258 = vcmask 1045508
    %v4259 = vsel %vm4258, %v4257, %v4254
    %s4260 = scalar_lea.vmem [#allocation1], 516
    %s4261 = smov 192
    %v4262 = vld [vmem:[%s4260] ss:$16 sm:%s4261]
    %vm4263 = vcmask 1047558
    %v4264 = vsel %vm4263, %v4262, %v4259
    %4265 = vrot.lane.b32.xlu0 %v4264, 16
    %v4266 = vpop.permute.xlu0 %4265
    %vm4267 = vcmask 162944
    %s4268 = scalar_lea.vmem [#allocation0], 32
    %4269 = vst.msk [vmem:[%s4268] sm:$0xff] %vm4267, %v4266
    %s4270 = scalar_lea.vmem [#allocation1], 132
    %s4271 = smov 3
    %v4272 = vld [vmem:[%s4270] ss:$16 sm:%s4271]
    %s4273 = scalar_lea.vmem [#allocation1], 132
    %s4274 = smov 12
    %v4275 = vld [vmem:[%s4273] ss:$16 sm:%s4274]
    %vm4276 = vcmask 1043458
    %v4277 = vsel %vm4276, %v4275, %v4272
    %s4278 = scalar_lea.vmem [#allocation1], 132
    %s4279 = smov 48
    %v4280 = vld [vmem:[%s4278] ss:$16 sm:%s4279]
    %vm4281 = vcmask 1045508
    %v4282 = vsel %vm4281, %v4280, %v4277
    %s4283 = scalar_lea.vmem [#allocation1], 132
    %s4284 = smov 192
    %v4285 = vld [vmem:[%s4283] ss:$16 sm:%s4284]
    %vm4286 = vcmask 1047558
    %v4287 = vsel %vm4286, %v4285, %v4282
    %4288 = vrot.lane.b32.xlu0 %v4287, 16
    %v4289 = vpop.permute.xlu0 %4288
    %vm4290 = vcmask 162944
    %s4291 = scalar_lea.vmem [#allocation0], 8
    %4292 = vst.msk [vmem:[%s4291] sm:$0xff] %vm4290, %v4289
    %s4293 = scalar_lea.vmem [#allocation1], 644
    %s4294 = smov 3
    %v4295 = vld [vmem:[%s4293] ss:$16 sm:%s4294]
    %s4296 = scalar_lea.vmem [#allocation1], 644
    %s4297 = smov 12
    %v4298 = vld [vmem:[%s4296] ss:$16 sm:%s4297]
    %vm4299 = vcmask 1043458
    %v4300 = vsel %vm4299, %v4298, %v4295
    %s4301 = scalar_lea.vmem [#allocation1], 644
    %s4302 = smov 48
    %v4303 = vld [vmem:[%s4301] ss:$16 sm:%s4302]
    %vm4304 = vcmask 1045508
    %v4305 = vsel %vm4304, %v4303, %v4300
    %s4306 = scalar_lea.vmem [#allocation1], 644
    %s4307 = smov 192
    %v4308 = vld [vmem:[%s4306] ss:$16 sm:%s4307]
    %vm4309 = vcmask 1047558
    %v4310 = vsel %vm4309, %v4308, %v4305
    %4311 = vrot.lane.b32.xlu0 %v4310, 16
    %v4312 = vpop.permute.xlu0 %4311
    %vm4313 = vcmask 162944
    %s4314 = scalar_lea.vmem [#allocation0], 40
    %4315 = vst.msk [vmem:[%s4314] sm:$0xff] %vm4313, %v4312
    %s4316 = scalar_lea.vmem [#allocation1], 260
    %s4317 = smov 3
    %v4318 = vld [vmem:[%s4316] ss:$16 sm:%s4317]
    %s4319 = scalar_lea.vmem [#allocation1], 260
    %s4320 = smov 12
    %v4321 = vld [vmem:[%s4319] ss:$16 sm:%s4320]
    %vm4322 = vcmask 1043458
    %v4323 = vsel %vm4322, %v4321, %v4318
    %s4324 = scalar_lea.vmem [#allocation1], 260
    %s4325 = smov 48
    %v4326 = vld [vmem:[%s4324] ss:$16 sm:%s4325]
    %vm4327 = vcmask 1045508
    %v4328 = vsel %vm4327, %v4326, %v4323
    %s4329 = scalar_lea.vmem [#allocation1], 260
    %s4330 = smov 192
    %v4331 = vld [vmem:[%s4329] ss:$16 sm:%s4330]
    %vm4332 = vcmask 1047558
    %v4333 = vsel %vm4332, %v4331, %v4328
    %4334 = vrot.lane.b32.xlu0 %v4333, 16
    %v4335 = vpop.permute.xlu0 %4334
    %vm4336 = vcmask 162944
    %s4337 = scalar_lea.vmem [#allocation0], 16
    %4338 = vst.msk [vmem:[%s4337] sm:$0xff] %vm4336, %v4335
    %s4339 = scalar_lea.vmem [#allocation1], 772
    %s4340 = smov 3
    %v4341 = vld [vmem:[%s4339] ss:$16 sm:%s4340]
    %s4342 = scalar_lea.vmem [#allocation1], 772
    %s4343 = smov 12
    %v4344 = vld [vmem:[%s4342] ss:$16 sm:%s4343]
    %vm4345 = vcmask 1043458
    %v4346 = vsel %vm4345, %v4344, %v4341
    %s4347 = scalar_lea.vmem [#allocation1], 772
    %s4348 = smov 48
    %v4349 = vld [vmem:[%s4347] ss:$16 sm:%s4348]
    %vm4350 = vcmask 1045508
    %v4351 = vsel %vm4350, %v4349, %v4346
    %s4352 = scalar_lea.vmem [#allocation1], 772
    %s4353 = smov 192
    %v4354 = vld [vmem:[%s4352] ss:$16 sm:%s4353]
    %vm4355 = vcmask 1047558
    %v4356 = vsel %vm4355, %v4354, %v4351
    %4357 = vrot.lane.b32.xlu0 %v4356, 16
    %v4358 = vpop.permute.xlu0 %4357
    %vm4359 = vcmask 162944
    %s4360 = scalar_lea.vmem [#allocation0], 48
    %4361 = vst.msk [vmem:[%s4360] sm:$0xff] %vm4359, %v4358
    %s4362 = scalar_lea.vmem [#allocation1], 388
    %s4363 = smov 3
    %v4364 = vld [vmem:[%s4362] ss:$16 sm:%s4363]
    %s4365 = scalar_lea.vmem [#allocation1], 388
    %s4366 = smov 12
    %v4367 = vld [vmem:[%s4365] ss:$16 sm:%s4366]
    %vm4368 = vcmask 1043458
    %v4369 = vsel %vm4368, %v4367, %v4364
    %s4370 = scalar_lea.vmem [#allocation1], 388
    %s4371 = smov 48
    %v4372 = vld [vmem:[%s4370] ss:$16 sm:%s4371]
    %vm4373 = vcmask 1045508
    %v4374 = vsel %vm4373, %v4372, %v4369
    %s4375 = scalar_lea.vmem [#allocation1], 388
    %s4376 = smov 192
    %v4377 = vld [vmem:[%s4375] ss:$16 sm:%s4376]
    %vm4378 = vcmask 1047558
    %v4379 = vsel %vm4378, %v4377, %v4374
    %4380 = vrot.lane.b32.xlu0 %v4379, 16
    %v4381 = vpop.permute.xlu0 %4380
    %vm4382 = vcmask 162944
    %s4383 = scalar_lea.vmem [#allocation0], 24
    %4384 = vst.msk [vmem:[%s4383] sm:$0xff] %vm4382, %v4381
    %s4385 = scalar_lea.vmem [#allocation1], 900
    %s4386 = smov 3
    %v4387 = vld [vmem:[%s4385] ss:$16 sm:%s4386]
    %s4388 = scalar_lea.vmem [#allocation1], 900
    %s4389 = smov 12
    %v4390 = vld [vmem:[%s4388] ss:$16 sm:%s4389]
    %vm4391 = vcmask 1043458
    %v4392 = vsel %vm4391, %v4390, %v4387
    %s4393 = scalar_lea.vmem [#allocation1], 900
    %s4394 = smov 48
    %v4395 = vld [vmem:[%s4393] ss:$16 sm:%s4394]
    %vm4396 = vcmask 1045508
    %v4397 = vsel %vm4396, %v4395, %v4392
    %s4398 = scalar_lea.vmem [#allocation1], 900
    %s4399 = smov 192
    %v4400 = vld [vmem:[%s4398] ss:$16 sm:%s4399]
    %vm4401 = vcmask 1047558
    %v4402 = vsel %vm4401, %v4400, %v4397
    %4403 = vrot.lane.b32.xlu0 %v4402, 16
    %v4404 = vpop.permute.xlu0 %4403
    %vm4405 = vcmask 162944
    %s4406 = scalar_lea.vmem [#allocation0], 56
    %4407 = vst.msk [vmem:[%s4406] sm:$0xff] %vm4405, %v4404
    %s4408 = scalar_lea.vmem [#allocation1], 3
    %s4409 = smov 3
    %v4410 = vld [vmem:[%s4408] ss:$16 sm:%s4409]
    %s4411 = scalar_lea.vmem [#allocation1], 3
    %s4412 = smov 12
    %v4413 = vld [vmem:[%s4411] ss:$16 sm:%s4412]
    %vm4414 = vcmask 1043458
    %v4415 = vsel %vm4414, %v4413, %v4410
    %s4416 = scalar_lea.vmem [#allocation1], 3
    %s4417 = smov 48
    %v4418 = vld [vmem:[%s4416] ss:$16 sm:%s4417]
    %vm4419 = vcmask 1045508
    %v4420 = vsel %vm4419, %v4418, %v4415
    %s4421 = scalar_lea.vmem [#allocation1], 3
    %s4422 = smov 192
    %v4423 = vld [vmem:[%s4421] ss:$16 sm:%s4422]
    %vm4424 = vcmask 1047558
    %v4425 = vsel %vm4424, %v4423, %v4420
    %4426 = vrot.lane.b32.xlu0 %v4425, 12
    %v4427 = vpop.permute.xlu0 %4426
    %vm4428 = vcmask 130144
    %4429 = vst.msk [vmem:[#allocation0] sm:$0xff] %vm4428, %v4427
    %s4430 = scalar_lea.vmem [#allocation1], 515
    %s4431 = smov 3
    %v4432 = vld [vmem:[%s4430] ss:$16 sm:%s4431]
    %s4433 = scalar_lea.vmem [#allocation1], 515
    %s4434 = smov 12
    %v4435 = vld [vmem:[%s4433] ss:$16 sm:%s4434]
    %vm4436 = vcmask 1043458
    %v4437 = vsel %vm4436, %v4435, %v4432
    %s4438 = scalar_lea.vmem [#allocation1], 515
    %s4439 = smov 48
    %v4440 = vld [vmem:[%s4438] ss:$16 sm:%s4439]
    %vm4441 = vcmask 1045508
    %v4442 = vsel %vm4441, %v4440, %v4437
    %s4443 = scalar_lea.vmem [#allocation1], 515
    %s4444 = smov 192
    %v4445 = vld [vmem:[%s4443] ss:$16 sm:%s4444]
    %vm4446 = vcmask 1047558
    %v4447 = vsel %vm4446, %v4445, %v4442
    %4448 = vrot.lane.b32.xlu0 %v4447, 12
    %v4449 = vpop.permute.xlu0 %4448
    %vm4450 = vcmask 130144
    %s4451 = scalar_lea.vmem [#allocation0], 32
    %4452 = vst.msk [vmem:[%s4451] sm:$0xff] %vm4450, %v4449
    %s4453 = scalar_lea.vmem [#allocation1], 131
    %s4454 = smov 3
    %v4455 = vld [vmem:[%s4453] ss:$16 sm:%s4454]
    %s4456 = scalar_lea.vmem [#allocation1], 131
    %s4457 = smov 12
    %v4458 = vld [vmem:[%s4456] ss:$16 sm:%s4457]
    %vm4459 = vcmask 1043458
    %v4460 = vsel %vm4459, %v4458, %v4455
    %s4461 = scalar_lea.vmem [#allocation1], 131
    %s4462 = smov 48
    %v4463 = vld [vmem:[%s4461] ss:$16 sm:%s4462]
    %vm4464 = vcmask 1045508
    %v4465 = vsel %vm4464, %v4463, %v4460
    %s4466 = scalar_lea.vmem [#allocation1], 131
    %s4467 = smov 192
    %v4468 = vld [vmem:[%s4466] ss:$16 sm:%s4467]
    %vm4469 = vcmask 1047558
    %v4470 = vsel %vm4469, %v4468, %v4465
    %4471 = vrot.lane.b32.xlu0 %v4470, 12
    %v4472 = vpop.permute.xlu0 %4471
    %vm4473 = vcmask 130144
    %s4474 = scalar_lea.vmem [#allocation0], 8
    %4475 = vst.msk [vmem:[%s4474] sm:$0xff] %vm4473, %v4472
    %s4476 = scalar_lea.vmem [#allocation1], 643
    %s4477 = smov 3
    %v4478 = vld [vmem:[%s4476] ss:$16 sm:%s4477]
    %s4479 = scalar_lea.vmem [#allocation1], 643
    %s4480 = smov 12
    %v4481 = vld [vmem:[%s4479] ss:$16 sm:%s4480]
    %vm4482 = vcmask 1043458
    %v4483 = vsel %vm4482, %v4481, %v4478
    %s4484 = scalar_lea.vmem [#allocation1], 643
    %s4485 = smov 48
    %v4486 = vld [vmem:[%s4484] ss:$16 sm:%s4485]
    %vm4487 = vcmask 1045508
    %v4488 = vsel %vm4487, %v4486, %v4483
    %s4489 = scalar_lea.vmem [#allocation1], 643
    %s4490 = smov 192
    %v4491 = vld [vmem:[%s4489] ss:$16 sm:%s4490]
    %vm4492 = vcmask 1047558
    %v4493 = vsel %vm4492, %v4491, %v4488
    %4494 = vrot.lane.b32.xlu0 %v4493, 12
    %v4495 = vpop.permute.xlu0 %4494
    %vm4496 = vcmask 130144
    %s4497 = scalar_lea.vmem [#allocation0], 40
    %4498 = vst.msk [vmem:[%s4497] sm:$0xff] %vm4496, %v4495
    %s4499 = scalar_lea.vmem [#allocation1], 259
    %s4500 = smov 3
    %v4501 = vld [vmem:[%s4499] ss:$16 sm:%s4500]
    %s4502 = scalar_lea.vmem [#allocation1], 259
    %s4503 = smov 12
    %v4504 = vld [vmem:[%s4502] ss:$16 sm:%s4503]
    %vm4505 = vcmask 1043458
    %v4506 = vsel %vm4505, %v4504, %v4501
    %s4507 = scalar_lea.vmem [#allocation1], 259
    %s4508 = smov 48
    %v4509 = vld [vmem:[%s4507] ss:$16 sm:%s4508]
    %vm4510 = vcmask 1045508
    %v4511 = vsel %vm4510, %v4509, %v4506
    %s4512 = scalar_lea.vmem [#allocation1], 259
    %s4513 = smov 192
    %v4514 = vld [vmem:[%s4512] ss:$16 sm:%s4513]
    %vm4515 = vcmask 1047558
    %v4516 = vsel %vm4515, %v4514, %v4511
    %4517 = vrot.lane.b32.xlu0 %v4516, 12
    %v4518 = vpop.permute.xlu0 %4517
    %vm4519 = vcmask 130144
    %s4520 = scalar_lea.vmem [#allocation0], 16
    %4521 = vst.msk [vmem:[%s4520] sm:$0xff] %vm4519, %v4518
    %s4522 = scalar_lea.vmem [#allocation1], 771
    %s4523 = smov 3
    %v4524 = vld [vmem:[%s4522] ss:$16 sm:%s4523]
    %s4525 = scalar_lea.vmem [#allocation1], 771
    %s4526 = smov 12
    %v4527 = vld [vmem:[%s4525] ss:$16 sm:%s4526]
    %vm4528 = vcmask 1043458
    %v4529 = vsel %vm4528, %v4527, %v4524
    %s4530 = scalar_lea.vmem [#allocation1], 771
    %s4531 = smov 48
    %v4532 = vld [vmem:[%s4530] ss:$16 sm:%s4531]
    %vm4533 = vcmask 1045508
    %v4534 = vsel %vm4533, %v4532, %v4529
    %s4535 = scalar_lea.vmem [#allocation1], 771
    %s4536 = smov 192
    %v4537 = vld [vmem:[%s4535] ss:$16 sm:%s4536]
    %vm4538 = vcmask 1047558
    %v4539 = vsel %vm4538, %v4537, %v4534
    %4540 = vrot.lane.b32.xlu0 %v4539, 12
    %v4541 = vpop.permute.xlu0 %4540
    %vm4542 = vcmask 130144
    %s4543 = scalar_lea.vmem [#allocation0], 48
    %4544 = vst.msk [vmem:[%s4543] sm:$0xff] %vm4542, %v4541
    %s4545 = scalar_lea.vmem [#allocation1], 387
    %s4546 = smov 3
    %v4547 = vld [vmem:[%s4545] ss:$16 sm:%s4546]
    %s4548 = scalar_lea.vmem [#allocation1], 387
    %s4549 = smov 12
    %v4550 = vld [vmem:[%s4548] ss:$16 sm:%s4549]
    %vm4551 = vcmask 1043458
    %v4552 = vsel %vm4551, %v4550, %v4547
    %s4553 = scalar_lea.vmem [#allocation1], 387
    %s4554 = smov 48
    %v4555 = vld [vmem:[%s4553] ss:$16 sm:%s4554]
    %vm4556 = vcmask 1045508
    %v4557 = vsel %vm4556, %v4555, %v4552
    %s4558 = scalar_lea.vmem [#allocation1], 387
    %s4559 = smov 192
    %v4560 = vld [vmem:[%s4558] ss:$16 sm:%s4559]
    %vm4561 = vcmask 1047558
    %v4562 = vsel %vm4561, %v4560, %v4557
    %4563 = vrot.lane.b32.xlu0 %v4562, 12
    %v4564 = vpop.permute.xlu0 %4563
    %vm4565 = vcmask 130144
    %s4566 = scalar_lea.vmem [#allocation0], 24
    %4567 = vst.msk [vmem:[%s4566] sm:$0xff] %vm4565, %v4564
    %s4568 = scalar_lea.vmem [#allocation1], 899
    %s4569 = smov 3
    %v4570 = vld [vmem:[%s4568] ss:$16 sm:%s4569]
    %s4571 = scalar_lea.vmem [#allocation1], 899
    %s4572 = smov 12
    %v4573 = vld [vmem:[%s4571] ss:$16 sm:%s4572]
    %vm4574 = vcmask 1043458
    %v4575 = vsel %vm4574, %v4573, %v4570
    %s4576 = scalar_lea.vmem [#allocation1], 899
    %s4577 = smov 48
    %v4578 = vld [vmem:[%s4576] ss:$16 sm:%s4577]
    %vm4579 = vcmask 1045508
    %v4580 = vsel %vm4579, %v4578, %v4575
    %s4581 = scalar_lea.vmem [#allocation1], 899
    %s4582 = smov 192
    %v4583 = vld [vmem:[%s4581] ss:$16 sm:%s4582]
    %vm4584 = vcmask 1047558
    %v4585 = vsel %vm4584, %v4583, %v4580
    %4586 = vrot.lane.b32.xlu0 %v4585, 12
    %v4587 = vpop.permute.xlu0 %4586
    %vm4588 = vcmask 130144
    %s4589 = scalar_lea.vmem [#allocation0], 56
    %4590 = vst.msk [vmem:[%s4589] sm:$0xff] %vm4588, %v4587
    %s4591 = scalar_lea.vmem [#allocation1], 2
    %s4592 = smov 3
    %v4593 = vld [vmem:[%s4591] ss:$16 sm:%s4592]
    %s4594 = scalar_lea.vmem [#allocation1], 2
    %s4595 = smov 12
    %v4596 = vld [vmem:[%s4594] ss:$16 sm:%s4595]
    %vm4597 = vcmask 1043458
    %v4598 = vsel %vm4597, %v4596, %v4593
    %s4599 = scalar_lea.vmem [#allocation1], 2
    %s4600 = smov 48
    %v4601 = vld [vmem:[%s4599] ss:$16 sm:%s4600]
    %vm4602 = vcmask 1045508
    %v4603 = vsel %vm4602, %v4601, %v4598
    %s4604 = scalar_lea.vmem [#allocation1], 2
    %s4605 = smov 192
    %v4606 = vld [vmem:[%s4604] ss:$16 sm:%s4605]
    %vm4607 = vcmask 1047558
    %v4608 = vsel %vm4607, %v4606, %v4603
    %4609 = vrot.lane.b32.xlu0 %v4608, 8
    %v4610 = vpop.permute.xlu0 %4609
    %vm4611 = vcmask 97344
    %4612 = vst.msk [vmem:[#allocation0] sm:$0xff] %vm4611, %v4610
    %s4613 = scalar_lea.vmem [#allocation1], 514
    %s4614 = smov 3
    %v4615 = vld [vmem:[%s4613] ss:$16 sm:%s4614]
    %s4616 = scalar_lea.vmem [#allocation1], 514
    %s4617 = smov 12
    %v4618 = vld [vmem:[%s4616] ss:$16 sm:%s4617]
    %vm4619 = vcmask 1043458
    %v4620 = vsel %vm4619, %v4618, %v4615
    %s4621 = scalar_lea.vmem [#allocation1], 514
    %s4622 = smov 48
    %v4623 = vld [vmem:[%s4621] ss:$16 sm:%s4622]
    %vm4624 = vcmask 1045508
    %v4625 = vsel %vm4624, %v4623, %v4620
    %s4626 = scalar_lea.vmem [#allocation1], 514
    %s4627 = smov 192
    %v4628 = vld [vmem:[%s4626] ss:$16 sm:%s4627]
    %vm4629 = vcmask 1047558
    %v4630 = vsel %vm4629, %v4628, %v4625
    %4631 = vrot.lane.b32.xlu0 %v4630, 8
    %v4632 = vpop.permute.xlu0 %4631
    %vm4633 = vcmask 97344
    %s4634 = scalar_lea.vmem [#allocation0], 32
    %4635 = vst.msk [vmem:[%s4634] sm:$0xff] %vm4633, %v4632
    %s4636 = scalar_lea.vmem [#allocation1], 130
    %s4637 = smov 3
    %v4638 = vld [vmem:[%s4636] ss:$16 sm:%s4637]
    %s4639 = scalar_lea.vmem [#allocation1], 130
    %s4640 = smov 12
    %v4641 = vld [vmem:[%s4639] ss:$16 sm:%s4640]
    %vm4642 = vcmask 1043458
    %v4643 = vsel %vm4642, %v4641, %v4638
    %s4644 = scalar_lea.vmem [#allocation1], 130
    %s4645 = smov 48
    %v4646 = vld [vmem:[%s4644] ss:$16 sm:%s4645]
    %vm4647 = vcmask 1045508
    %v4648 = vsel %vm4647, %v4646, %v4643
    %s4649 = scalar_lea.vmem [#allocation1], 130
    %s4650 = smov 192
    %v4651 = vld [vmem:[%s4649] ss:$16 sm:%s4650]
    %vm4652 = vcmask 1047558
    %v4653 = vsel %vm4652, %v4651, %v4648
    %4654 = vrot.lane.b32.xlu0 %v4653, 8
    %v4655 = vpop.permute.xlu0 %4654
    %vm4656 = vcmask 97344
    %s4657 = scalar_lea.vmem [#allocation0], 8
    %4658 = vst.msk [vmem:[%s4657] sm:$0xff] %vm4656, %v4655
    %s4659 = scalar_lea.vmem [#allocation1], 642
    %s4660 = smov 3
    %v4661 = vld [vmem:[%s4659] ss:$16 sm:%s4660]
    %s4662 = scalar_lea.vmem [#allocation1], 642
    %s4663 = smov 12
    %v4664 = vld [vmem:[%s4662] ss:$16 sm:%s4663]
    %vm4665 = vcmask 1043458
    %v4666 = vsel %vm4665, %v4664, %v4661
    %s4667 = scalar_lea.vmem [#allocation1], 642
    %s4668 = smov 48
    %v4669 = vld [vmem:[%s4667] ss:$16 sm:%s4668]
    %vm4670 = vcmask 1045508
    %v4671 = vsel %vm4670, %v4669, %v4666
    %s4672 = scalar_lea.vmem [#allocation1], 642
    %s4673 = smov 192
    %v4674 = vld [vmem:[%s4672] ss:$16 sm:%s4673]
    %vm4675 = vcmask 1047558
    %v4676 = vsel %vm4675, %v4674, %v4671
    %4677 = vrot.lane.b32.xlu0 %v4676, 8
    %v4678 = vpop.permute.xlu0 %4677
    %vm4679 = vcmask 97344
    %s4680 = scalar_lea.vmem [#allocation0], 40
    %4681 = vst.msk [vmem:[%s4680] sm:$0xff] %vm4679, %v4678
    %s4682 = scalar_lea.vmem [#allocation1], 258
    %s4683 = smov 3
    %v4684 = vld [vmem:[%s4682] ss:$16 sm:%s4683]
    %s4685 = scalar_lea.vmem [#allocation1], 258
    %s4686 = smov 12
    %v4687 = vld [vmem:[%s4685] ss:$16 sm:%s4686]
    %vm4688 = vcmask 1043458
    %v4689 = vsel %vm4688, %v4687, %v4684
    %s4690 = scalar_lea.vmem [#allocation1], 258
    %s4691 = smov 48
    %v4692 = vld [vmem:[%s4690] ss:$16 sm:%s4691]
    %vm4693 = vcmask 1045508
    %v4694 = vsel %vm4693, %v4692, %v4689
    %s4695 = scalar_lea.vmem [#allocation1], 258
    %s4696 = smov 192
    %v4697 = vld [vmem:[%s4695] ss:$16 sm:%s4696]
    %vm4698 = vcmask 1047558
    %v4699 = vsel %vm4698, %v4697, %v4694
    %4700 = vrot.lane.b32.xlu0 %v4699, 8
    %v4701 = vpop.permute.xlu0 %4700
    %vm4702 = vcmask 97344
    %s4703 = scalar_lea.vmem [#allocation0], 16
    %4704 = vst.msk [vmem:[%s4703] sm:$0xff] %vm4702, %v4701
    %s4705 = scalar_lea.vmem [#allocation1], 770
    %s4706 = smov 3
    %v4707 = vld [vmem:[%s4705] ss:$16 sm:%s4706]
    %s4708 = scalar_lea.vmem [#allocation1], 770
    %s4709 = smov 12
    %v4710 = vld [vmem:[%s4708] ss:$16 sm:%s4709]
    %vm4711 = vcmask 1043458
    %v4712 = vsel %vm4711, %v4710, %v4707
    %s4713 = scalar_lea.vmem [#allocation1], 770
    %s4714 = smov 48
    %v4715 = vld [vmem:[%s4713] ss:$16 sm:%s4714]
    %vm4716 = vcmask 1045508
    %v4717 = vsel %vm4716, %v4715, %v4712
    %s4718 = scalar_lea.vmem [#allocation1], 770
    %s4719 = smov 192
    %v4720 = vld [vmem:[%s4718] ss:$16 sm:%s4719]
    %vm4721 = vcmask 1047558
    %v4722 = vsel %vm4721, %v4720, %v4717
    %4723 = vrot.lane.b32.xlu0 %v4722, 8
    %v4724 = vpop.permute.xlu0 %4723
    %vm4725 = vcmask 97344
    %s4726 = scalar_lea.vmem [#allocation0], 48
    %4727 = vst.msk [vmem:[%s4726] sm:$0xff] %vm4725, %v4724
    %s4728 = scalar_lea.vmem [#allocation1], 386
    %s4729 = smov 3
    %v4730 = vld [vmem:[%s4728] ss:$16 sm:%s4729]
    %s4731 = scalar_lea.vmem [#allocation1], 386
    %s4732 = smov 12
    %v4733 = vld [vmem:[%s4731] ss:$16 sm:%s4732]
    %vm4734 = vcmask 1043458
    %v4735 = vsel %vm4734, %v4733, %v4730
    %s4736 = scalar_lea.vmem [#allocation1], 386
    %s4737 = smov 48
    %v4738 = vld [vmem:[%s4736] ss:$16 sm:%s4737]
    %vm4739 = vcmask 1045508
    %v4740 = vsel %vm4739, %v4738, %v4735
    %s4741 = scalar_lea.vmem [#allocation1], 386
    %s4742 = smov 192
    %v4743 = vld [vmem:[%s4741] ss:$16 sm:%s4742]
    %vm4744 = vcmask 1047558
    %v4745 = vsel %vm4744, %v4743, %v4740
    %4746 = vrot.lane.b32.xlu0 %v4745, 8
    %v4747 = vpop.permute.xlu0 %4746
    %vm4748 = vcmask 97344
    %s4749 = scalar_lea.vmem [#allocation0], 24
    %4750 = vst.msk [vmem:[%s4749] sm:$0xff] %vm4748, %v4747
    %s4751 = scalar_lea.vmem [#allocation1], 898
    %s4752 = smov 3
    %v4753 = vld [vmem:[%s4751] ss:$16 sm:%s4752]
    %s4754 = scalar_lea.vmem [#allocation1], 898
    %s4755 = smov 12
    %v4756 = vld [vmem:[%s4754] ss:$16 sm:%s4755]
    %vm4757 = vcmask 1043458
    %v4758 = vsel %vm4757, %v4756, %v4753
    %s4759 = scalar_lea.vmem [#allocation1], 898
    %s4760 = smov 48
    %v4761 = vld [vmem:[%s4759] ss:$16 sm:%s4760]
    %vm4762 = vcmask 1045508
    %v4763 = vsel %vm4762, %v4761, %v4758
    %s4764 = scalar_lea.vmem [#allocation1], 898
    %s4765 = smov 192
    %v4766 = vld [vmem:[%s4764] ss:$16 sm:%s4765]
    %vm4767 = vcmask 1047558
    %v4768 = vsel %vm4767, %v4766, %v4763
    %4769 = vrot.lane.b32.xlu0 %v4768, 8
    %v4770 = vpop.permute.xlu0 %4769
    %vm4771 = vcmask 97344
    %s4772 = scalar_lea.vmem [#allocation0], 56
    %4773 = vst.msk [vmem:[%s4772] sm:$0xff] %vm4771, %v4770
    %s4774 = scalar_lea.vmem [#allocation1], 1
    %s4775 = smov 3
    %v4776 = vld [vmem:[%s4774] ss:$16 sm:%s4775]
    %s4777 = scalar_lea.vmem [#allocation1], 1
    %s4778 = smov 12
    %v4779 = vld [vmem:[%s4777] ss:$16 sm:%s4778]
    %vm4780 = vcmask 1043458
    %v4781 = vsel %vm4780, %v4779, %v4776
    %s4782 = scalar_lea.vmem [#allocation1], 1
    %s4783 = smov 48
    %v4784 = vld [vmem:[%s4782] ss:$16 sm:%s4783]
    %vm4785 = vcmask 1045508
    %v4786 = vsel %vm4785, %v4784, %v4781
    %s4787 = scalar_lea.vmem [#allocation1], 1
    %s4788 = smov 192
    %v4789 = vld [vmem:[%s4787] ss:$16 sm:%s4788]
    %vm4790 = vcmask 1047558
    %v4791 = vsel %vm4790, %v4789, %v4786
    %4792 = vrot.lane.b32.xlu0 %v4791, 4
    %v4793 = vpop.permute.xlu0 %4792
    %vm4794 = vcmask 64544
    %4795 = vst.msk [vmem:[#allocation0] sm:$0xff] %vm4794, %v4793
    %s4796 = scalar_lea.vmem [#allocation1], 513
    %s4797 = smov 3
    %v4798 = vld [vmem:[%s4796] ss:$16 sm:%s4797]
    %s4799 = scalar_lea.vmem [#allocation1], 513
    %s4800 = smov 12
    %v4801 = vld [vmem:[%s4799] ss:$16 sm:%s4800]
    %vm4802 = vcmask 1043458
    %v4803 = vsel %vm4802, %v4801, %v4798
    %s4804 = scalar_lea.vmem [#allocation1], 513
    %s4805 = smov 48
    %v4806 = vld [vmem:[%s4804] ss:$16 sm:%s4805]
    %vm4807 = vcmask 1045508
    %v4808 = vsel %vm4807, %v4806, %v4803
    %s4809 = scalar_lea.vmem [#allocation1], 513
    %s4810 = smov 192
    %v4811 = vld [vmem:[%s4809] ss:$16 sm:%s4810]
    %vm4812 = vcmask 1047558
    %v4813 = vsel %vm4812, %v4811, %v4808
    %4814 = vrot.lane.b32.xlu0 %v4813, 4
    %v4815 = vpop.permute.xlu0 %4814
    %vm4816 = vcmask 64544
    %s4817 = scalar_lea.vmem [#allocation0], 32
    %4818 = vst.msk [vmem:[%s4817] sm:$0xff] %vm4816, %v4815
    %s4819 = scalar_lea.vmem [#allocation1], 129
    %s4820 = smov 3
    %v4821 = vld [vmem:[%s4819] ss:$16 sm:%s4820]
    %s4822 = scalar_lea.vmem [#allocation1], 129
    %s4823 = smov 12
    %v4824 = vld [vmem:[%s4822] ss:$16 sm:%s4823]
    %vm4825 = vcmask 1043458
    %v4826 = vsel %vm4825, %v4824, %v4821
    %s4827 = scalar_lea.vmem [#allocation1], 129
    %s4828 = smov 48
    %v4829 = vld [vmem:[%s4827] ss:$16 sm:%s4828]
    %vm4830 = vcmask 1045508
    %v4831 = vsel %vm4830, %v4829, %v4826
    %s4832 = scalar_lea.vmem [#allocation1], 129
    %s4833 = smov 192
    %v4834 = vld [vmem:[%s4832] ss:$16 sm:%s4833]
    %vm4835 = vcmask 1047558
    %v4836 = vsel %vm4835, %v4834, %v4831
    %4837 = vrot.lane.b32.xlu0 %v4836, 4
    %v4838 = vpop.permute.xlu0 %4837
    %vm4839 = vcmask 64544
    %s4840 = scalar_lea.vmem [#allocation0], 8
    %4841 = vst.msk [vmem:[%s4840] sm:$0xff] %vm4839, %v4838
    %s4842 = scalar_lea.vmem [#allocation1], 641
    %s4843 = smov 3
    %v4844 = vld [vmem:[%s4842] ss:$16 sm:%s4843]
    %s4845 = scalar_lea.vmem [#allocation1], 641
    %s4846 = smov 12
    %v4847 = vld [vmem:[%s4845] ss:$16 sm:%s4846]
    %vm4848 = vcmask 1043458
    %v4849 = vsel %vm4848, %v4847, %v4844
    %s4850 = scalar_lea.vmem [#allocation1], 641
    %s4851 = smov 48
    %v4852 = vld [vmem:[%s4850] ss:$16 sm:%s4851]
    %vm4853 = vcmask 1045508
    %v4854 = vsel %vm4853, %v4852, %v4849
    %s4855 = scalar_lea.vmem [#allocation1], 641
    %s4856 = smov 192
    %v4857 = vld [vmem:[%s4855] ss:$16 sm:%s4856]
    %vm4858 = vcmask 1047558
    %v4859 = vsel %vm4858, %v4857, %v4854
    %4860 = vrot.lane.b32.xlu0 %v4859, 4
    %v4861 = vpop.permute.xlu0 %4860
    %vm4862 = vcmask 64544
    %s4863 = scalar_lea.vmem [#allocation0], 40
    %4864 = vst.msk [vmem:[%s4863] sm:$0xff] %vm4862, %v4861
    %s4865 = scalar_lea.vmem [#allocation1], 257
    %s4866 = smov 3
    %v4867 = vld [vmem:[%s4865] ss:$16 sm:%s4866]
    %s4868 = scalar_lea.vmem [#allocation1], 257
    %s4869 = smov 12
    %v4870 = vld [vmem:[%s4868] ss:$16 sm:%s4869]
    %vm4871 = vcmask 1043458
    %v4872 = vsel %vm4871, %v4870, %v4867
    %s4873 = scalar_lea.vmem [#allocation1], 257
    %s4874 = smov 48
    %v4875 = vld [vmem:[%s4873] ss:$16 sm:%s4874]
    %vm4876 = vcmask 1045508
    %v4877 = vsel %vm4876, %v4875, %v4872
    %s4878 = scalar_lea.vmem [#allocation1], 257
    %s4879 = smov 192
    %v4880 = vld [vmem:[%s4878] ss:$16 sm:%s4879]
    %vm4881 = vcmask 1047558
    %v4882 = vsel %vm4881, %v4880, %v4877
    %4883 = vrot.lane.b32.xlu0 %v4882, 4
    %v4884 = vpop.permute.xlu0 %4883
    %vm4885 = vcmask 64544
    %s4886 = scalar_lea.vmem [#allocation0], 16
    %4887 = vst.msk [vmem:[%s4886] sm:$0xff] %vm4885, %v4884
    %s4888 = scalar_lea.vmem [#allocation1], 769
    %s4889 = smov 3
    %v4890 = vld [vmem:[%s4888] ss:$16 sm:%s4889]
    %s4891 = scalar_lea.vmem [#allocation1], 769
    %s4892 = smov 12
    %v4893 = vld [vmem:[%s4891] ss:$16 sm:%s4892]
    %vm4894 = vcmask 1043458
    %v4895 = vsel %vm4894, %v4893, %v4890
    %s4896 = scalar_lea.vmem [#allocation1], 769
    %s4897 = smov 48
    %v4898 = vld [vmem:[%s4896] ss:$16 sm:%s4897]
    %vm4899 = vcmask 1045508
    %v4900 = vsel %vm4899, %v4898, %v4895
    %s4901 = scalar_lea.vmem [#allocation1], 769
    %s4902 = smov 192
    %v4903 = vld [vmem:[%s4901] ss:$16 sm:%s4902]
    %vm4904 = vcmask 1047558
    %v4905 = vsel %vm4904, %v4903, %v4900
    %4906 = vrot.lane.b32.xlu0 %v4905, 4
    %v4907 = vpop.permute.xlu0 %4906
    %vm4908 = vcmask 64544
    %s4909 = scalar_lea.vmem [#allocation0], 48
    %4910 = vst.msk [vmem:[%s4909] sm:$0xff] %vm4908, %v4907
    %s4911 = scalar_lea.vmem [#allocation1], 385
    %s4912 = smov 3
    %v4913 = vld [vmem:[%s4911] ss:$16 sm:%s4912]
    %s4914 = scalar_lea.vmem [#allocation1], 385
    %s4915 = smov 12
    %v4916 = vld [vmem:[%s4914] ss:$16 sm:%s4915]
    %vm4917 = vcmask 1043458
    %v4918 = vsel %vm4917, %v4916, %v4913
    %s4919 = scalar_lea.vmem [#allocation1], 385
    %s4920 = smov 48
    %v4921 = vld [vmem:[%s4919] ss:$16 sm:%s4920]
    %vm4922 = vcmask 1045508
    %v4923 = vsel %vm4922, %v4921, %v4918
    %s4924 = scalar_lea.vmem [#allocation1], 385
    %s4925 = smov 192
    %v4926 = vld [vmem:[%s4924] ss:$16 sm:%s4925]
    %vm4927 = vcmask 1047558
    %v4928 = vsel %vm4927, %v4926, %v4923
    %4929 = vrot.lane.b32.xlu0 %v4928, 4
    %v4930 = vpop.permute.xlu0 %4929
    %vm4931 = vcmask 64544
    %s4932 = scalar_lea.vmem [#allocation0], 24
    %4933 = vst.msk [vmem:[%s4932] sm:$0xff] %vm4931, %v4930
    %s4934 = scalar_lea.vmem [#allocation1], 897
    %s4935 = smov 3
    %v4936 = vld [vmem:[%s4934] ss:$16 sm:%s4935]
    %s4937 = scalar_lea.vmem [#allocation1], 897
    %s4938 = smov 12
    %v4939 = vld [vmem:[%s4937] ss:$16 sm:%s4938]
    %vm4940 = vcmask 1043458
    %v4941 = vsel %vm4940, %v4939, %v4936
    %s4942 = scalar_lea.vmem [#allocation1], 897
    %s4943 = smov 48
    %v4944 = vld [vmem:[%s4942] ss:$16 sm:%s4943]
    %vm4945 = vcmask 1045508
    %v4946 = vsel %vm4945, %v4944, %v4941
    %s4947 = scalar_lea.vmem [#allocation1], 897
    %s4948 = smov 192
    %v4949 = vld [vmem:[%s4947] ss:$16 sm:%s4948]
    %vm4950 = vcmask 1047558
    %v4951 = vsel %vm4950, %v4949, %v4946
    %4952 = vrot.lane.b32.xlu0 %v4951, 4
    %v4953 = vpop.permute.xlu0 %4952
    %vm4954 = vcmask 64544
    %s4955 = scalar_lea.vmem [#allocation0], 56
    %4956 = vst.msk [vmem:[%s4955] sm:$0xff] %vm4954, %v4953
    %s4958 = smul.u32 4, 2
    %s4959 = sshllo.u32 0, %s4958
    %s4960 = sshrl.u32 %s4958, 1
    %v4961 = vld [vmem:[#allocation0] sm:%s4959]
    %v4962 = vpack.c.bf16 0.0, %v4961
    %s4963 = sshllo.u32 0, %s4960
    %4964 = vst [vmem:[%s1] sm:%s4963] %v4962
    %s4965 = scalar_lea.vmem [#allocation0], 8
    %v4966 = vld [vmem:[%s4965] sm:%s4959]
    %v4967 = vpack.c.bf16 0.0, %v4966
    %s4968 = sshllo.u32 0, %s4960
    %s4969 = scalar_lea.vmem %s1, 4
    %4970 = vst [vmem:[%s4969] sm:%s4968] %v4967
    %s4971 = scalar_lea.vmem [#allocation0], 16
    %v4972 = vld [vmem:[%s4971] sm:%s4959]
    %v4973 = vpack.c.bf16 0.0, %v4972
    %s4974 = sshllo.u32 0, %s4960
    %s4975 = smul.addr 4, 2
    %s4976 = scalar_lea.vmem %s1, %s4975
    %4977 = vst [vmem:[%s4976] sm:%s4974] %v4973
    %s4978 = scalar_lea.vmem [#allocation0], 24
    %v4979 = vld [vmem:[%s4978] sm:%s4959]
    %v4980 = vpack.c.bf16 0.0, %v4979
    %s4981 = sshllo.u32 0, %s4960
    %s4982 = smul.addr 4, 3
    %s4983 = scalar_lea.vmem %s1, %s4982
    %4984 = vst [vmem:[%s4983] sm:%s4981] %v4980
    %s4985 = scalar_lea.vmem [#allocation0], 32
    %v4986 = vld [vmem:[%s4985] sm:%s4959]
    %v4987 = vpack.c.bf16 0.0, %v4986
    %s4988 = sshllo.u32 0, %s4960
    %s4989 = smul.addr 4, 4
    %s4990 = scalar_lea.vmem %s1, %s4989
    %4991 = vst [vmem:[%s4990] sm:%s4988] %v4987
    %s4992 = scalar_lea.vmem [#allocation0], 40
    %v4993 = vld [vmem:[%s4992] sm:%s4959]
    %v4994 = vpack.c.bf16 0.0, %v4993
    %s4995 = sshllo.u32 0, %s4960
    %s4996 = smul.addr 4, 5
    %s4997 = scalar_lea.vmem %s1, %s4996
    %4998 = vst [vmem:[%s4997] sm:%s4995] %v4994
    %s4999 = scalar_lea.vmem [#allocation0], 48
    %v5000 = vld [vmem:[%s4999] sm:%s4959]
    %v5001 = vpack.c.bf16 0.0, %v5000
    %s5002 = sshllo.u32 0, %s4960
    %s5003 = smul.addr 4, 6
    %s5004 = scalar_lea.vmem %s1, %s5003
    %5005 = vst [vmem:[%s5004] sm:%s5002] %v5001
    %s5006 = scalar_lea.vmem [#allocation0], 56
    %v5007 = vld [vmem:[%s5006] sm:%s4959]
    %v5008 = vpack.c.bf16 0.0, %v5007
    %s5009 = sshllo.u32 0, %s4960
    %s5010 = smul.addr 4, 7
    %s5011 = scalar_lea.vmem %s1, %s5010
    %5012 = vst [vmem:[%s5011] sm:%s5009] %v5008

// kernel: tile.28
$region0: #{tile.28}
  #allocation0 [shape = 's32[1]{0}', space=sflag, size = 0x4, scoped, tag = 'scoped memory for tile.28']
  %s0 = inlined_call_operand.vmem [shape: f32[4], index: 0, kind: input, shape index: {}]
  %s1 = inlined_call_operand.vmem [shape: f32[16,4], index: 1, kind: output, shape index: {}]
  // Predicated region
  $region2: #{tile.28} parent=0 // pred_check
    _
  $region3: #{tile.28} parent=0 // pred_check_branch
    %3 = sbr.rel (0) target = $region5
  $region4: #{tile.28} parent=0 // pred_region
    _
  $region5: #{tile.28} parent=0 // pred_fallthru
    _
  %v4 = vld [vmem:[%s0] ss:$0 sm:$0xff]
  %5 = vst [vmem:[%s1] sm:$0xff] %v4
  %s6 = scalar_lea.vmem %s1, 8
  %7 = vst [vmem:[%s6] sm:$0xff] %v4

// kernel: tile.29
$region0: #{tile.29}
  %s0 = inlined_call_operand.vmem [shape: f32[16,4], index: 0, kind: input, shape index: {}]
  %s1 = inlined_call_operand.vmem [shape: f32[1,64], index: 1, kind: output, shape index: {}]
  $region1: #{tile.29} parent=0
    #allocation0 [shape = 'u8[4096]{0}', space=vmem, size = 0x1000, scoped, tag = 'scoped mem for output reshape']
    %v2 = vld [vmem:[%s0] sm:$0x1]
    %vm3 = vcmask 31744
    %4 = vst.msk [vmem:[#allocation0] sm:$0x1] %vm3, %v2
    %s5 = scalar_lea.vmem %s0, 15
    %v6 = vld [vmem:[%s5] sm:$0x1]
    %7 = vrot.lane.b32.xlu0 %v6, 60
    %v8 = vpop.permute.xlu0 %7
    %vm9 = vcmask 523744
    %10 = vst.msk [vmem:[#allocation0] sm:$0x1] %vm9, %v8
    %s11 = scalar_lea.vmem %s0, 14
    %v12 = vld [vmem:[%s11] sm:$0x1]
    %13 = vrot.lane.b32.xlu0 %v12, 56
    %v14 = vpop.permute.xlu0 %13
    %vm15 = vcmask 490944
    %16 = vst.msk [vmem:[#allocation0] sm:$0x1] %vm15, %v14
    %s17 = scalar_lea.vmem %s0, 13
    %v18 = vld [vmem:[%s17] sm:$0x1]
    %19 = vrot.lane.b32.xlu0 %v18, 52
    %v20 = vpop.permute.xlu0 %19
    %vm21 = vcmask 458144
    %22 = vst.msk [vmem:[#allocation0] sm:$0x1] %vm21, %v20
    %s23 = scalar_lea.vmem %s0, 12
    %v24 = vld [vmem:[%s23] sm:$0x1]
    %25 = vrot.lane.b32.xlu0 %v24, 48
    %v26 = vpop.permute.xlu0 %25
    %vm27 = vcmask 425344
    %28 = vst.msk [vmem:[#allocation0] sm:$0x1] %vm27, %v26
    %s29 = scalar_lea.vmem %s0, 11
    %v30 = vld [vmem:[%s29] sm:$0x1]
    %31 = vrot.lane.b32.xlu0 %v30, 44
    %v32 = vpop.permute.xlu0 %31
    %vm33 = vcmask 392544
    %34 = vst.msk [vmem:[#allocation0] sm:$0x1] %vm33, %v32
    %s35 = scalar_lea.vmem %s0, 10
    %v36 = vld [vmem:[%s35] sm:$0x1]
    %37 = vrot.lane.b32.xlu0 %v36, 40
    %v38 = vpop.permute.xlu0 %37
    %vm39 = vcmask 359744
    %40 = vst.msk [vmem:[#allocation0] sm:$0x1] %vm39, %v38
    %s41 = scalar_lea.vmem %s0, 9
    %v42 = vld [vmem:[%s41] sm:$0x1]
    %43 = vrot.lane.b32.xlu0 %v42, 36
    %v44 = vpop.permute.xlu0 %43
    %vm45 = vcmask 326944
    %46 = vst.msk [vmem:[#allocation0] sm:$0x1] %vm45, %v44
    %s47 = scalar_lea.vmem %s0, 8
    %v48 = vld [vmem:[%s47] sm:$0x1]
    %49 = vrot.lane.b32.xlu0 %v48, 32
    %v50 = vpop.permute.xlu0 %49
    %vm51 = vcmask 294144
    %52 = vst.msk [vmem:[#allocation0] sm:$0x1] %vm51, %v50
    %s53 = scalar_lea.vmem %s0, 7
    %v54 = vld [vmem:[%s53] sm:$0x1]
    %55 = vrot.lane.b32.xlu0 %v54, 28
    %v56 = vpop.permute.xlu0 %55
    %vm57 = vcmask 261344
    %58 = vst.msk [vmem:[#allocation0] sm:$0x1] %vm57, %v56
    %s59 = scalar_lea.vmem %s0, 6
    %v60 = vld [vmem:[%s59] sm:$0x1]
    %61 = vrot.lane.b32.xlu0 %v60, 24
    %v62 = vpop.permute.xlu0 %61
    %vm63 = vcmask 228544
    %64 = vst.msk [vmem:[#allocation0] sm:$0x1] %vm63, %v62
    %s65 = scalar_lea.vmem %s0, 5
    %v66 = vld [vmem:[%s65] sm:$0x1]
    %67 = vrot.lane.b32.xlu0 %v66, 20
    %v68 = vpop.permute.xlu0 %67
    %vm69 = vcmask 195744
    %70 = vst.msk [vmem:[#allocation0] sm:$0x1] %vm69, %v68
    %s71 = scalar_lea.vmem %s0, 4
    %v72 = vld [vmem:[%s71] sm:$0x1]
    %73 = vrot.lane.b32.xlu0 %v72, 16
    %v74 = vpop.permute.xlu0 %73
    %vm75 = vcmask 162944
    %76 = vst.msk [vmem:[#allocation0] sm:$0x1] %vm75, %v74
    %s77 = scalar_lea.vmem %s0, 3
    %v78 = vld [vmem:[%s77] sm:$0x1]
    %79 = vrot.lane.b32.xlu0 %v78, 12
    %v80 = vpop.permute.xlu0 %79
    %vm81 = vcmask 130144
    %82 = vst.msk [vmem:[#allocation0] sm:$0x1] %vm81, %v80
    %s83 = scalar_lea.vmem %s0, 2
    %v84 = vld [vmem:[%s83] sm:$0x1]
    %85 = vrot.lane.b32.xlu0 %v84, 8
    %v86 = vpop.permute.xlu0 %85
    %vm87 = vcmask 97344
    %88 = vst.msk [vmem:[#allocation0] sm:$0x1] %vm87, %v86
    %s89 = scalar_lea.vmem %s0, 1
    %v90 = vld [vmem:[%s89] sm:$0x1]
    %91 = vrot.lane.b32.xlu0 %v90, 4
    %v92 = vpop.permute.xlu0 %91
    %vm93 = vcmask 64544
    %94 = vst.msk [vmem:[#allocation0] sm:$0x1] %vm93, %v92
    %s96 = sshllo.u32 0, 1
    %v98 = vld [vmem:[#allocation0] sm:%s96]
    %s99 = sshllo.u32 0, 1
    %100 = vst [vmem:[%s1] sm:%s99] %v98

// kernel: residual_block.2
$region0: #{residual_block.2}
  #allocation0 [shape = 'u32[]', space=smem, size = 0x4, offset = 0x4, fixed_abs, tag = 'smem constant byte address 0x4 - core index']
  #allocation1 [shape = 'u32[144,128]{1,0:T(1,128)}', space=vmem, size = 0x12000, scoped, tag = 'internal scratch']
  %s0 = inlined_call_operand.vmem [shape: f32[2,16,64], index: 0, kind: input, shape index: {}]
  %s1 = inlined_call_operand.vmem [shape: f32[1,64], index: 1, kind: input, shape index: {}]
  %s2 = inlined_call_operand.vmem [shape: f32[1,64], index: 2, kind: input, shape index: {}]
  %s3 = inlined_call_operand.vmem [shape: bf16[64,64], index: 3, kind: input, shape index: {}]
  %s4 = inlined_call_operand.vmem [shape: bf16[64,64], index: 4, kind: input, shape index: {}]
  %s5 = inlined_call_operand.vmem [shape: bf16[64,64], index: 5, kind: input, shape index: {}]
  %s6 = inlined_call_operand.vmem [shape: bf16[2,16,64], index: 6, kind: output, shape index: {0}]
  %s7 = inlined_call_operand.vmem [shape: f32[1,1,64], index: 7, kind: output, shape index: {1}]
  %s8 = inlined_call_operand.vmem [shape: f32[1,1,64], index: 8, kind: output, shape index: {2}]
  %9 = xla_tuple %s6, %s7, %s8
  %s10 = sld [smem:[#allocation0]]
  $region50: #{residual_block.2} parent=0
    _
  %s12 = ssub.s32 1, %s10
  %s13 = scalar_select 0, %s12, %s10
  // Predicated region
  $region2: #{residual_block.2} parent=0 // pred_check
    _
  $region3: #{residual_block.2} parent=0 // pred_check_branch
    %15 = sbr.rel (0) target = $region5
  $region4: #{residual_block.2} parent=0 // pred_region
    _
  $region5: #{residual_block.2} parent=0 // pred_fallthru
    _
  // Predicated region
  $region6: #{residual_block.2} parent=0 // pred_check
    _
  $region7: #{residual_block.2} parent=0 // pred_check_branch
    %17 = sbr.rel (0) target = $region9
  $region8: #{residual_block.2} parent=0 // pred_region
    _
  $region9: #{residual_block.2} parent=0 // pred_fallthru
    _
  // Predicated region
  $region10: #{residual_block.2} parent=0 // pred_check
    _
  $region11: #{residual_block.2} parent=0 // pred_check_branch
    %19 = sbr.rel (0) target = $region13
  $region12: #{residual_block.2} parent=0 // pred_region
    _
  $region13: #{residual_block.2} parent=0 // pred_fallthru
    _
  // Predicated region
  $region14: #{residual_block.2} parent=0 // pred_check
    _
  $region15: #{residual_block.2} parent=0 // pred_check_branch
    %21 = sbr.rel (0) target = $region17
  $region16: #{residual_block.2} parent=0 // pred_region
    _
  $region17: #{residual_block.2} parent=0 // pred_fallthru
    _
  // Predicated region
  $region18: #{residual_block.2} parent=0 // pred_check
    _
  $region19: #{residual_block.2} parent=0 // pred_check_branch
    %23 = sbr.rel (0) target = $region21
  $region20: #{residual_block.2} parent=0 // pred_region
    _
  $region21: #{residual_block.2} parent=0 // pred_fallthru
    _
  // Predicated region
  $region22: #{residual_block.2} parent=0 // pred_check
    _
  $region23: #{residual_block.2} parent=0 // pred_check_branch
    %25 = sbr.rel (0) target = $region25
  $region24: #{residual_block.2} parent=0 // pred_region
    _
  $region25: #{residual_block.2} parent=0 // pred_fallthru
    _
  %v27 = vld [vmem:[%s0] sm:$0xff]
  %v28 = vld [vmem:[%s0 + $0x8] sm:$0xff]
  %v29 = vld [vmem:[%s0 + $0x10] sm:$0xff]
  %v30 = vld [vmem:[%s0 + $0x18] sm:$0xff]
  %v31 = vld [vmem:[%s1] sm:$0x1]
  %v33 = vlaneseq
  %v34 = vshrl.u32 %v33, 7
  %v35 = vsub.s32 0, %v34
  %v36 = vrot.slane %v31, %v35
  %v38 = vmul.f32 %v27, %v36
  %v39 = vmul.f32 %v28, %v36
  %v40 = vmul.f32 %v29, %v36
  %v41 = vmul.f32 %v30, %v36
  %v42 = vld [vmem:[%s2] sm:$0x1]
  %v44 = vlaneseq
  %v45 = vshrl.u32 %v44, 7
  %v46 = vsub.s32 0, %v45
  %v47 = vrot.slane %v42, %v46
  %v49 = vadd.f32 %v38, %v47
  %v50 = vadd.f32 %v39, %v47
  %v51 = vadd.f32 %v40, %v47
  %v52 = vadd.f32 %v41, %v47
  %v53 = vmax.f32 %v49, 0.0
  %v54 = vmax.f32 %v50, 0.0
  %v55 = vmax.f32 %v51, 0.0
  %v56 = vmax.f32 %v52, 0.0
  %v57 = vlaneseq
  %v58 = vshrl.u32 %v57, 7
  %v59 = vadd.s32 %v58, 8
  %v60 = vadd.s32 %v58, 16
  %v61 = vadd.s32 %v58, 24
  %vm62 = vcmp.lt.s32.totalorder %v58, 0
  %v63 = vsub.s32 0, %v58
  %v64 = vsel %vm62, %v63, %v58
  %v65 = vshrl.u32 %v64, 4
  %v66 = vand.u32 %v64, 15
  %v67 = vsub.s32 0, %v66
  %v68 = vsel %vm62, %v67, %v66
  %vm69 = vcmp.lt.s32.totalorder %v59, 0
  %v70 = vsub.s32 0, %v59
  %v71 = vsel %vm69, %v70, %v59
  %v72 = vshrl.u32 %v71, 4
  %v73 = vand.u32 %v71, 15
  %v74 = vsub.s32 0, %v73
  %v75 = vsel %vm69, %v74, %v73
  %vm76 = vcmp.lt.s32.totalorder %v60, 0
  %v77 = vsub.s32 0, %v60
  %v78 = vsel %vm76, %v77, %v60
  %v79 = vshrl.u32 %v78, 4
  %v80 = vand.u32 %v78, 15
  %v81 = vsub.s32 0, %v80
  %v82 = vsel %vm76, %v81, %v80
  %vm83 = vcmp.lt.s32.totalorder %v61, 0
  %v84 = vsub.s32 0, %v61
  %v85 = vsel %vm83, %v84, %v61
  %v86 = vshrl.u32 %v85, 4
  %v87 = vand.u32 %v85, 15
  %v88 = vsub.s32 0, %v87
  %v89 = vsel %vm83, %v88, %v87
  %vm90 = vcmp.ne.s32.totalorder %v68, 0
  %vm91 = vcmp.ne.s32.totalorder %v75, 0
  %vm92 = vcmp.ne.s32.totalorder %v82, 0
  %vm93 = vcmp.ne.s32.totalorder %v89, 0
  %vm94 = vcmp.lt.s32.totalorder %v68, 0
  %vm95 = vcmp.lt.s32.totalorder %v75, 0
  %vm96 = vcmp.lt.s32.totalorder %v82, 0
  %vm97 = vcmp.lt.s32.totalorder %v89, 0
  %vm98 = vmand %vm94, %vm90
  %vm99 = vmand %vm95, %vm91
  %vm100 = vmand %vm96, %vm92
  %vm101 = vmand %vm97, %vm93
  %v102 = vadd.s32 %v68, 16
  %v103 = vadd.s32 %v75, 16
  %v104 = vadd.s32 %v82, 16
  %v105 = vadd.s32 %v89, 16
  %v106 = vsel %vm98, %v102, %v68
  %v107 = vsel %vm99, %v103, %v75
  %v108 = vsel %vm100, %v104, %v82
  %v109 = vsel %vm101, %v105, %v89
  %vm110 = vcmp.eq.s32.totalorder %v106, 0
  %vm111 = vcmp.eq.s32.totalorder %v107, 0
  %vm112 = vcmp.eq.s32.totalorder %v108, 0
  %vm113 = vcmp.eq.s32.totalorder %v109, 0
  %v114 = vrot.slane %v53, 7
  %v115 = vrot.slane %v54, 7
  %v116 = vrot.slane %v55, 7
  %v117 = vrot.slane %v56, 7
  %vm118 = vcmp.lt.s32.totalorder %v58, 1
  %v119 = vsel %vm118, %v116, %v117
  %v120 = vsel %vm118, %v115, %v116
  %v121 = vsel %vm118, %v114, %v115
  %v122 = vsel %vm118, %v117, %v114
  %v123 = vsel %vm110, 1, 0
  %v124 = vsel %vm111, 1, 0
  %v125 = vsel %vm112, 1, 0
  %v126 = vsel %vm113, 1, 0
  %vm127 = vcmp.eq.s32.totalorder %v123, 1
  %vm128 = vcmp.eq.s32.totalorder %v124, 1
  %vm129 = vcmp.eq.s32.totalorder %v125, 1
  %vm130 = vcmp.eq.s32.totalorder %v126, 1
  %v131 = vsel %vm127, 0.0, %v122
  %v132 = vsel %vm128, 0.0, %v121
  %v133 = vsel %vm129, 0.0, %v120
  %v134 = vsel %vm130, 0.0, %v119
  %vm135 = vcmp.eq.s32.totalorder %v106, 15
  %vm136 = vcmp.eq.s32.totalorder %v107, 15
  %vm137 = vcmp.eq.s32.totalorder %v108, 15
  %vm138 = vcmp.eq.s32.totalorder %v109, 15
  %v139 = vrot.slane %v53, 1
  %v140 = vrot.slane %v54, 1
  %v141 = vrot.slane %v55, 1
  %v142 = vrot.slane %v56, 1
  %vm143 = vcmp.lt.s32.totalorder %v58, 7
  %v144 = vsel %vm143, %v141, %v142
  %v145 = vsel %vm143, %v140, %v141
  %v146 = vsel %vm143, %v139, %v140
  %v147 = vsel %vm143, %v142, %v139
  %v148 = vsel %vm135, 1, 0
  %v149 = vsel %vm136, 1, 0
  %v150 = vsel %vm137, 1, 0
  %v151 = vsel %vm138, 1, 0
  %vm152 = vcmp.eq.s32.totalorder %v148, 1
  %vm153 = vcmp.eq.s32.totalorder %v149, 1
  %vm154 = vcmp.eq.s32.totalorder %v150, 1
  %vm155 = vcmp.eq.s32.totalorder %v151, 1
  %v156 = vsel %vm152, 0.0, %v146
  %v157 = vsel %vm153, 0.0, %v145
  %v158 = vsel %vm154, 0.0, %v144
  %v159 = vsel %vm155, 0.0, %v147
  %v160 = vpack.c.bf16 %v54, %v53
  %v161 = vpack.c.bf16 %v56, %v55
  %v162 = vld [vmem:[%s4] sm:$0xf]
  %v163 = vld [vmem:[%s4 + $0x4] sm:$0xf]
  %v164 = vld [vmem:[%s4 + $0x8] sm:$0xf]
  %v165 = vld [vmem:[%s4 + $0xc] sm:$0xf]
  %v166 = vld [vmem:[%s4 + $0x10] sm:$0xf]
  %v167 = vld [vmem:[%s4 + $0x14] sm:$0xf]
  %v168 = vld [vmem:[%s4 + $0x18] sm:$0xf]
  %v169 = vld [vmem:[%s4 + $0x1c] sm:$0xf]
  %v170 = vpack.c.bf16 %v132, %v131
  %v171 = vpack.c.bf16 %v134, %v133
  %v172 = vld [vmem:[%s3] sm:$0xf]
  %v173 = vld [vmem:[%s3 + $0x4] sm:$0xf]
  %v174 = vld [vmem:[%s3 + $0x8] sm:$0xf]
  %v175 = vld [vmem:[%s3 + $0xc] sm:$0xf]
  %v176 = vld [vmem:[%s3 + $0x10] sm:$0xf]
  %v177 = vld [vmem:[%s3 + $0x14] sm:$0xf]
  %v178 = vld [vmem:[%s3 + $0x18] sm:$0xf]
  %v179 = vld [vmem:[%s3 + $0x1c] sm:$0xf]
  %v188 = vunpack.c.l.b16 %v172
  %v189 = vunpack.c.l.b16 %v173
  %v190 = vunpack.c.l.b16 %v174
  %v191 = vunpack.c.l.b16 %v175
  %v192 = vunpack.c.l.b16 %v176
  %v193 = vunpack.c.l.b16 %v177
  %v194 = vunpack.c.l.b16 %v178
  %v195 = vunpack.c.l.b16 %v179
  %v196 = vpack.c.b16 %v189, %v188
  %v197 = vpack.c.b16 %v191, %v190
  %v198 = vpack.c.b16 %v193, %v192
  %v199 = vpack.c.b16 %v195, %v194
  %vm204 = vcmask 523264
  %v206 = vsel %vm204, %v170, 0
  %v209 = vsel %vm204, %v171, 0
  %211 = vmatprep.subr.bf16.mxu0 0
  %212 = vmatpush1.bf16.msra.mxu0 %v196
  %213 = vmatprep.subr.bf16.mxu0 0
  %214 = vmatpush1.bf16.msra.mxu0 %v197
  %215 = vmatprep.subr.bf16.mxu0 0
  %216 = vmatpush1.bf16.msra.mxu0 %v198
  %217 = vmatprep.subr.bf16.mxu0 0
  %218 = vmatpush1.bf16.msra.mxu0 %v199
  %219 = vmatprep.subr.bf16.mxu0 0
  %220 = vmatpush1.bf16.msra.mxu0 0
  %221 = vmatprep.subr.bf16.mxu0 0
  %222 = vmatpush1.bf16.msra.mxu0 0
  %223 = vmatprep.subr.bf16.mxu0 0
  %224 = vmatpush1.bf16.msra.mxu0 0
  %225 = vmatprep.subr.bf16.mxu0 0
  %226 = vmatpush1.bf16.msra.mxu0 0
  %227 = vmatprep.subr.bf16.mxu0 0
  %228 = vmatpush1.bf16.msra.mxu0 0
  %229 = vmatprep.subr.bf16.mxu0 0
  %230 = vmatpush1.bf16.msra.mxu0 0
  %231 = vmatprep.subr.bf16.mxu0 0
  %232 = vmatpush1.bf16.msra.mxu0 0
  %233 = vmatprep.subr.bf16.mxu0 0
  %234 = vmatpush1.bf16.msra.mxu0 0
  %235 = vmatprep.subr.bf16.mxu0 0
  %236 = vmatpush1.bf16.msra.mxu0 0
  %237 = vmatprep.subr.bf16.mxu0 0
  %238 = vmatpush1.bf16.msra.mxu0 0
  %239 = vmatprep.subr.bf16.mxu0 0
  %240 = vmatpush1.bf16.msra.mxu0 0
  %241 = vmatprep.subr.bf16.mxu0 0
  %242 = vmatpush1.bf16.msra.mxu0 0
  %243 = vmatprep.mubr.bf16.mxu0 0
  %244 = vmatmul.mubr.bf16.gmra.mrb[0].mxu0 %v206
  %v245 = vpop.f32.mrb[0].mxu0
  %v246 = vadd.f32 0.0, %v245
  %v247 = vpop.f32.mrb[0].mxu0
  %v248 = vpop.f32.mrb[0].mxu0
  %v249 = vadd.f32 0.0, %v248
  %v250 = vpop.f32.mrb[0].mxu0
  %251 = vmatprep.mubr.bf16.mxu0 0
  %252 = vmatmul.mubr.bf16.gmra.mrb[0].mxu0 %v209
  %v253 = vpop.f32.mrb[0].mxu0
  %v254 = vadd.f32 0.0, %v253
  %v255 = vpop.f32.mrb[0].mxu0
  %v256 = vpop.f32.mrb[0].mxu0
  %v257 = vadd.f32 0.0, %v256
  %v258 = vpop.f32.mrb[0].mxu0
  %259 = vdwg.mxu0
  %v268 = vunpack.c.l.b16 %v162
  %v269 = vunpack.c.l.b16 %v163
  %v270 = vunpack.c.l.b16 %v164
  %v271 = vunpack.c.l.b16 %v165
  %v272 = vunpack.c.l.b16 %v166
  %v273 = vunpack.c.l.b16 %v167
  %v274 = vunpack.c.l.b16 %v168
  %v275 = vunpack.c.l.b16 %v169
  %v276 = vpack.c.b16 %v269, %v268
  %v277 = vpack.c.b16 %v271, %v270
  %v278 = vpack.c.b16 %v273, %v272
  %v279 = vpack.c.b16 %v275, %v274
  %v285 = vsel %vm204, %v160, 0
  %v288 = vsel %vm204, %v161, 0
  %290 = vmatprep.subr.bf16.mxu0 0
  %291 = vmatpush1.bf16.msra.mxu0 %v276
  %292 = vmatprep.subr.bf16.mxu0 0
  %293 = vmatpush1.bf16.msra.mxu0 %v277
  %294 = vmatprep.subr.bf16.mxu0 0
  %295 = vmatpush1.bf16.msra.mxu0 %v278
  %296 = vmatprep.subr.bf16.mxu0 0
  %297 = vmatpush1.bf16.msra.mxu0 %v279
  %298 = vmatprep.subr.bf16.mxu0 0
  %299 = vmatpush1.bf16.msra.mxu0 0
  %300 = vmatprep.subr.bf16.mxu0 0
  %301 = vmatpush1.bf16.msra.mxu0 0
  %302 = vmatprep.subr.bf16.mxu0 0
  %303 = vmatpush1.bf16.msra.mxu0 0
  %304 = vmatprep.subr.bf16.mxu0 0
  %305 = vmatpush1.bf16.msra.mxu0 0
  %306 = vmatprep.subr.bf16.mxu0 0
  %307 = vmatpush1.bf16.msra.mxu0 0
  %308 = vmatprep.subr.bf16.mxu0 0
  %309 = vmatpush1.bf16.msra.mxu0 0
  %310 = vmatprep.subr.bf16.mxu0 0
  %311 = vmatpush1.bf16.msra.mxu0 0
  %312 = vmatprep.subr.bf16.mxu0 0
  %313 = vmatpush1.bf16.msra.mxu0 0
  %314 = vmatprep.subr.bf16.mxu0 0
  %315 = vmatpush1.bf16.msra.mxu0 0
  %316 = vmatprep.subr.bf16.mxu0 0
  %317 = vmatpush1.bf16.msra.mxu0 0
  %318 = vmatprep.subr.bf16.mxu0 0
  %319 = vmatpush1.bf16.msra.mxu0 0
  %320 = vmatprep.subr.bf16.mxu0 0
  %321 = vmatpush1.bf16.msra.mxu0 0
  %322 = vmatprep.mubr.bf16.mxu0 0
  %323 = vmatmul.mubr.bf16.gmra.mrb[0].mxu0 %v285
  %v324 = vpop.f32.mrb[0].mxu0
  %v325 = vadd.f32 %v246, %v324
  %v326 = vpop.f32.mrb[0].mxu0
  %v327 = vpop.f32.mrb[0].mxu0
  %v328 = vadd.f32 %v249, %v327
  %v329 = vpop.f32.mrb[0].mxu0
  %330 = vmatprep.mubr.bf16.mxu0 0
  %331 = vmatmul.mubr.bf16.gmra.mrb[0].mxu0 %v288
  %v332 = vpop.f32.mrb[0].mxu0
  %v333 = vadd.f32 %v254, %v332
  %v334 = vpop.f32.mrb[0].mxu0
  %v335 = vpop.f32.mrb[0].mxu0
  %v336 = vadd.f32 %v257, %v335
  %v337 = vpop.f32.mrb[0].mxu0
  %338 = vdwg.mxu0
  %v339 = vpack.c.bf16 %v157, %v156
  %v340 = vpack.c.bf16 %v159, %v158
  %v341 = vld [vmem:[%s5] sm:$0xf]
  %v342 = vld [vmem:[%s5 + $0x4] sm:$0xf]
  %v343 = vld [vmem:[%s5 + $0x8] sm:$0xf]
  %v344 = vld [vmem:[%s5 + $0xc] sm:$0xf]
  %v345 = vld [vmem:[%s5 + $0x10] sm:$0xf]
  %v346 = vld [vmem:[%s5 + $0x14] sm:$0xf]
  %v347 = vld [vmem:[%s5 + $0x18] sm:$0xf]
  %v348 = vld [vmem:[%s5 + $0x1c] sm:$0xf]
  %v357 = vunpack.c.l.b16 %v341
  %v358 = vunpack.c.l.b16 %v342
  %v359 = vunpack.c.l.b16 %v343
  %v360 = vunpack.c.l.b16 %v344
  %v361 = vunpack.c.l.b16 %v345
  %v362 = vunpack.c.l.b16 %v346
  %v363 = vunpack.c.l.b16 %v347
  %v364 = vunpack.c.l.b16 %v348
  %v365 = vpack.c.b16 %v358, %v357
  %v366 = vpack.c.b16 %v360, %v359
  %v367 = vpack.c.b16 %v362, %v361
  %v368 = vpack.c.b16 %v364, %v363
  %v374 = vsel %vm204, %v339, 0
  %v377 = vsel %vm204, %v340, 0
  %379 = vmatprep.subr.bf16.mxu0 0
  %380 = vmatpush1.bf16.msra.mxu0 %v365
  %381 = vmatprep.subr.bf16.mxu0 0
  %382 = vmatpush1.bf16.msra.mxu0 %v366
  %383 = vmatprep.subr.bf16.mxu0 0
  %384 = vmatpush1.bf16.msra.mxu0 %v367
  %385 = vmatprep.subr.bf16.mxu0 0
  %386 = vmatpush1.bf16.msra.mxu0 %v368
  %387 = vmatprep.subr.bf16.mxu0 0
  %388 = vmatpush1.bf16.msra.mxu0 0
  %389 = vmatprep.subr.bf16.mxu0 0
  %390 = vmatpush1.bf16.msra.mxu0 0
  %391 = vmatprep.subr.bf16.mxu0 0
  %392 = vmatpush1.bf16.msra.mxu0 0
  %393 = vmatprep.subr.bf16.mxu0 0
  %394 = vmatpush1.bf16.msra.mxu0 0
  %395 = vmatprep.subr.bf16.mxu0 0
  %396 = vmatpush1.bf16.msra.mxu0 0
  %397 = vmatprep.subr.bf16.mxu0 0
  %398 = vmatpush1.bf16.msra.mxu0 0
  %399 = vmatprep.subr.bf16.mxu0 0
  %400 = vmatpush1.bf16.msra.mxu0 0
  %401 = vmatprep.subr.bf16.mxu0 0
  %402 = vmatpush1.bf16.msra.mxu0 0
  %403 = vmatprep.subr.bf16.mxu0 0
  %404 = vmatpush1.bf16.msra.mxu0 0
  %405 = vmatprep.subr.bf16.mxu0 0
  %406 = vmatpush1.bf16.msra.mxu0 0
  %407 = vmatprep.subr.bf16.mxu0 0
  %408 = vmatpush1.bf16.msra.mxu0 0
  %409 = vmatprep.subr.bf16.mxu0 0
  %410 = vmatpush1.bf16.msra.mxu0 0
  %411 = vmatprep.mubr.bf16.mxu0 0
  %412 = vmatmul.mubr.bf16.gmra.mrb[0].mxu0 %v374
  %v413 = vpop.f32.mrb[0].mxu0
  %v414 = vadd.f32 0.0, %v413
  %v415 = vpop.f32.mrb[0].mxu0
  %v416 = vpop.f32.mrb[0].mxu0
  %v417 = vadd.f32 0.0, %v416
  %v418 = vpop.f32.mrb[0].mxu0
  %419 = vmatprep.mubr.bf16.mxu0 0
  %420 = vmatmul.mubr.bf16.gmra.mrb[0].mxu0 %v377
  %v421 = vpop.f32.mrb[0].mxu0
  %v422 = vadd.f32 0.0, %v421
  %v423 = vpop.f32.mrb[0].mxu0
  %v424 = vpop.f32.mrb[0].mxu0
  %v425 = vadd.f32 0.0, %v424
  %v426 = vpop.f32.mrb[0].mxu0
  %427 = vdwg.mxu0
  %v428 = vadd.f32 %v325, %v414
  %v429 = vadd.f32 %v328, %v417
  %v430 = vadd.f32 %v333, %v422
  %v431 = vadd.f32 %v336, %v425
  %v432 = vpack.c.bf16 %v429, %v428
  %v433 = vpack.c.bf16 %v431, %v430
  %v436 = vunpack.c.l.b16 %v432
  %v437 = vunpack.c.h.b16 %v432
  %v438 = vunpack.c.l.b16 %v433
  %v439 = vunpack.c.h.b16 %v433
  %v440 = vpack.c.b16 %v436, %v436
  %v441 = vpack.c.b16 %v437, %v437
  %v442 = vpack.c.b16 %v438, %v438
  %v443 = vpack.c.b16 %v439, %v439
  %vm448 = vcmask 519168
  %449 = vst.msk [vmem:[%s6] sm:$0xf] %vm448, %v440
  %450 = vst.msk [vmem:[%s6 + $0x4] sm:$0xf] %vm448, %v441
  %451 = vst.msk [vmem:[%s6 + $0x8] sm:$0xf] %vm448, %v442
  %452 = vst.msk [vmem:[%s6 + $0xc] sm:$0xf] %vm448, %v443
  %v453 = vsel %vm204, %v428, 0.0
  %v454 = vsel %vm204, %v429, 0.0
  %v455 = vadd.f32 %v453, %v454
  %v456 = vsel %vm204, %v430, 0.0
  %v457 = vadd.f32 %v455, %v456
  %v458 = vsel %vm204, %v431, 0.0
  %v459 = vadd.f32 %v457, %v458
  %v460 = vrot.slane %v459, 4
  %v461 = vadd.f32 %v459, %v460
  %v462 = vrot.slane %v461, 2
  %v463 = vadd.f32 %v461, %v462
  %v464 = vrot.slane %v463, 1
  %v465 = vadd.f32 %v463, %v464
  %vm466 = vcmask 516096
  %467 = vst.msk [vmem:[%s7] sm:$0x1] %vm466, %v465
  %v468 = vmul.f32 %v428, %v428
  %v469 = vmul.f32 %v429, %v429
  %v470 = vmul.f32 %v430, %v430
  %v471 = vmul.f32 %v431, %v431
  %v472 = vsel %vm204, %v468, 0.0
  %v473 = vsel %vm204, %v469, 0.0
  %v474 = vadd.f32 %v472, %v473
  %v475 = vsel %vm204, %v470, 0.0
  %v476 = vadd.f32 %v474, %v475
  %v477 = vsel %vm204, %v471, 0.0
  %v478 = vadd.f32 %v476, %v477
  %v479 = vrot.slane %v478, 4
  %v480 = vadd.f32 %v478, %v479
  %v481 = vrot.slane %v480, 2
  %v482 = vadd.f32 %v480, %v481
  %v483 = vrot.slane %v482, 1
  %v484 = vadd.f32 %v482, %v483
  %485 = vst.msk [vmem:[%s8] sm:$0x1] %vm466, %v484
  // Predicated region
  $region26: #{residual_block.2} parent=0 // pred_check
    _
  $region27: #{residual_block.2} parent=0 // pred_check_branch
    %487 = sbr.rel (0) target = $region29
  $region28: #{residual_block.2} parent=0 // pred_region
    _
  $region29: #{residual_block.2} parent=0 // pred_fallthru
    _
  // Predicated region
  $region30: #{residual_block.2} parent=0 // pred_check
    _
  $region31: #{residual_block.2} parent=0 // pred_check_branch
    %489 = sbr.rel (0) target = $region33
  $region32: #{residual_block.2} parent=0 // pred_region
    _
  $region33: #{residual_block.2} parent=0 // pred_fallthru
    _
  // Predicated region
  $region34: #{residual_block.2} parent=0 // pred_check
    _
  $region35: #{residual_block.2} parent=0 // pred_check_branch
    %491 = sbr.rel (0) target = $region37
  $region36: #{residual_block.2} parent=0 // pred_region
    _
  $region37: #{residual_block.2} parent=0 // pred_fallthru
    _
  // Predicated region
  $region38: #{residual_block.2} parent=0 // pred_check
    _
  $region39: #{residual_block.2} parent=0 // pred_check_branch
    %493 = sbr.rel (0) target = $region41
  $region40: #{residual_block.2} parent=0 // pred_region
    _
  $region41: #{residual_block.2} parent=0 // pred_fallthru
    _
  // Predicated region
  $region42: #{residual_block.2} parent=0 // pred_check
    _
  $region43: #{residual_block.2} parent=0 // pred_check_branch
    %495 = sbr.rel (0) target = $region45
  $region44: #{residual_block.2} parent=0 // pred_region
    _
  $region45: #{residual_block.2} parent=0 // pred_fallthru
    _
  // Predicated region
  $region46: #{residual_block.2} parent=0 // pred_check
    _
  $region47: #{residual_block.2} parent=0 // pred_check_branch
    %497 = sbr.rel (0) target = $region49
  $region48: #{residual_block.2} parent=0 // pred_region
    _
  $region49: #{residual_block.2} parent=0 // pred_fallthru
    _

// kernel: residual_block.3
$region0: #{residual_block.3}
  #allocation0 [shape = 'u32[]', space=smem, size = 0x4, offset = 0x4, fixed_abs, tag = 'smem constant byte address 0x4 - core index']
  #allocation1 [shape = 'u32[144,128]{1,0:T(1,128)}', space=vmem, size = 0x12000, scoped, tag = 'internal scratch']
  %s0 = inlined_call_operand.vmem [shape: bf16[2,16,64], index: 0, kind: input, shape index: {}]
  %s1 = inlined_call_operand.vmem [shape: f32[2,16,64], index: 1, kind: input, shape index: {}]
  %s2 = inlined_call_operand.vmem [shape: f32[1,64], index: 2, kind: input, shape index: {}]
  %s3 = inlined_call_operand.vmem [shape: f32[1,64], index: 3, kind: input, shape index: {}]
  %s4 = inlined_call_operand.vmem [shape: bf16[64,64], index: 4, kind: input, shape index: {}]
  %s5 = inlined_call_operand.vmem [shape: bf16[64,64], index: 5, kind: input, shape index: {}]
  %s6 = inlined_call_operand.vmem [shape: bf16[64,64], index: 6, kind: input, shape index: {}]
  %s7 = inlined_call_operand.vmem [shape: f32[1,64], index: 7, kind: input, shape index: {}]
  %s8 = inlined_call_operand.vmem [shape: f32[2,16,64], index: 8, kind: output, shape index: {}]
  %s9 = sld [smem:[#allocation0]]
  $region42: #{residual_block.3} parent=0
    _
  %s11 = ssub.s32 1, %s9
  %s12 = scalar_select 0, %s11, %s9
  // Predicated region
  $region2: #{residual_block.3} parent=0 // pred_check
    _
  $region3: #{residual_block.3} parent=0 // pred_check_branch
    %14 = sbr.rel (0) target = $region5
  $region4: #{residual_block.3} parent=0 // pred_region
    _
  $region5: #{residual_block.3} parent=0 // pred_fallthru
    _
  // Predicated region
  $region6: #{residual_block.3} parent=0 // pred_check
    _
  $region7: #{residual_block.3} parent=0 // pred_check_branch
    %16 = sbr.rel (0) target = $region9
  $region8: #{residual_block.3} parent=0 // pred_region
    _
  $region9: #{residual_block.3} parent=0 // pred_fallthru
    _
  // Predicated region
  $region10: #{residual_block.3} parent=0 // pred_check
    _
  $region11: #{residual_block.3} parent=0 // pred_check_branch
    %18 = sbr.rel (0) target = $region13
  $region12: #{residual_block.3} parent=0 // pred_region
    _
  $region13: #{residual_block.3} parent=0 // pred_fallthru
    _
  // Predicated region
  $region14: #{residual_block.3} parent=0 // pred_check
    _
  $region15: #{residual_block.3} parent=0 // pred_check_branch
    %20 = sbr.rel (0) target = $region17
  $region16: #{residual_block.3} parent=0 // pred_region
    _
  $region17: #{residual_block.3} parent=0 // pred_fallthru
    _
  // Predicated region
  $region18: #{residual_block.3} parent=0 // pred_check
    _
  $region19: #{residual_block.3} parent=0 // pred_check_branch
    %22 = sbr.rel (0) target = $region21
  $region20: #{residual_block.3} parent=0 // pred_region
    _
  $region21: #{residual_block.3} parent=0 // pred_fallthru
    _
  // Predicated region
  $region22: #{residual_block.3} parent=0 // pred_check
    _
  $region23: #{residual_block.3} parent=0 // pred_check_branch
    %24 = sbr.rel (0) target = $region25
  $region24: #{residual_block.3} parent=0 // pred_region
    _
  $region25: #{residual_block.3} parent=0 // pred_fallthru
    _
  // Predicated region
  $region26: #{residual_block.3} parent=0 // pred_check
    _
  $region27: #{residual_block.3} parent=0 // pred_check_branch
    %26 = sbr.rel (0) target = $region29
  $region28: #{residual_block.3} parent=0 // pred_region
    _
  $region29: #{residual_block.3} parent=0 // pred_fallthru
    _
  // Predicated region
  $region30: #{residual_block.3} parent=0 // pred_check
    _
  $region31: #{residual_block.3} parent=0 // pred_check_branch
    %28 = sbr.rel (0) target = $region33
  $region32: #{residual_block.3} parent=0 // pred_region
    _
  $region33: #{residual_block.3} parent=0 // pred_fallthru
    _
  %v30 = vld [vmem:[%s0] sm:$0xf]
  %v31 = vld [vmem:[%s0 + $0x4] sm:$0xf]
  %v32 = vld [vmem:[%s0 + $0x8] sm:$0xf]
  %v33 = vld [vmem:[%s0 + $0xc] sm:$0xf]
  %v34 = vunpack.c.l.bf16 %v30
  %v35 = vunpack.c.l.bf16 %v31
  %v36 = vunpack.c.l.bf16 %v32
  %v37 = vunpack.c.l.bf16 %v33
  %v38 = vld [vmem:[%s2] sm:$0x1]
  %v40 = vlaneseq
  %v41 = vshrl.u32 %v40, 7
  %v42 = vsub.s32 0, %v41
  %v43 = vrot.slane %v38, %v42
  %v45 = vmul.f32 %v34, %v43
  %v46 = vmul.f32 %v35, %v43
  %v47 = vmul.f32 %v36, %v43
  %v48 = vmul.f32 %v37, %v43
  %v49 = vld [vmem:[%s3] sm:$0x1]
  %v51 = vlaneseq
  %v52 = vshrl.u32 %v51, 7
  %v53 = vsub.s32 0, %v52
  %v54 = vrot.slane %v49, %v53
  %v56 = vadd.f32 %v45, %v54
  %v57 = vadd.f32 %v46, %v54
  %v58 = vadd.f32 %v47, %v54
  %v59 = vadd.f32 %v48, %v54
  %v60 = vmax.f32 %v56, 0.0
  %v61 = vmax.f32 %v57, 0.0
  %v62 = vmax.f32 %v58, 0.0
  %v63 = vmax.f32 %v59, 0.0
  %v64 = vlaneseq
  %v65 = vshrl.u32 %v64, 7
  %v66 = vadd.s32 %v65, 8
  %v67 = vadd.s32 %v65, 16
  %v68 = vadd.s32 %v65, 24
  %vm69 = vcmp.lt.s32.totalorder %v65, 0
  %v70 = vsub.s32 0, %v65
  %v71 = vsel %vm69, %v70, %v65
  %v72 = vshrl.u32 %v71, 4
  %v73 = vand.u32 %v71, 15
  %v74 = vsub.s32 0, %v73
  %v75 = vsel %vm69, %v74, %v73
  %vm76 = vcmp.lt.s32.totalorder %v66, 0
  %v77 = vsub.s32 0, %v66
  %v78 = vsel %vm76, %v77, %v66
  %v79 = vshrl.u32 %v78, 4
  %v80 = vand.u32 %v78, 15
  %v81 = vsub.s32 0, %v80
  %v82 = vsel %vm76, %v81, %v80
  %vm83 = vcmp.lt.s32.totalorder %v67, 0
  %v84 = vsub.s32 0, %v67
  %v85 = vsel %vm83, %v84, %v67
  %v86 = vshrl.u32 %v85, 4
  %v87 = vand.u32 %v85, 15
  %v88 = vsub.s32 0, %v87
  %v89 = vsel %vm83, %v88, %v87
  %vm90 = vcmp.lt.s32.totalorder %v68, 0
  %v91 = vsub.s32 0, %v68
  %v92 = vsel %vm90, %v91, %v68
  %v93 = vshrl.u32 %v92, 4
  %v94 = vand.u32 %v92, 15
  %v95 = vsub.s32 0, %v94
  %v96 = vsel %vm90, %v95, %v94
  %vm97 = vcmp.ne.s32.totalorder %v75, 0
  %vm98 = vcmp.ne.s32.totalorder %v82, 0
  %vm99 = vcmp.ne.s32.totalorder %v89, 0
  %vm100 = vcmp.ne.s32.totalorder %v96, 0
  %vm101 = vcmp.lt.s32.totalorder %v75, 0
  %vm102 = vcmp.lt.s32.totalorder %v82, 0
  %vm103 = vcmp.lt.s32.totalorder %v89, 0
  %vm104 = vcmp.lt.s32.totalorder %v96, 0
  %vm105 = vmand %vm101, %vm97
  %vm106 = vmand %vm102, %vm98
  %vm107 = vmand %vm103, %vm99
  %vm108 = vmand %vm104, %vm100
  %v109 = vadd.s32 %v75, 16
  %v110 = vadd.s32 %v82, 16
  %v111 = vadd.s32 %v89, 16
  %v112 = vadd.s32 %v96, 16
  %v113 = vsel %vm105, %v109, %v75
  %v114 = vsel %vm106, %v110, %v82
  %v115 = vsel %vm107, %v111, %v89
  %v116 = vsel %vm108, %v112, %v96
  %vm117 = vcmp.eq.s32.totalorder %v113, 0
  %vm118 = vcmp.eq.s32.totalorder %v114, 0
  %vm119 = vcmp.eq.s32.totalorder %v115, 0
  %vm120 = vcmp.eq.s32.totalorder %v116, 0
  %v121 = vrot.slane %v60, 7
  %v122 = vrot.slane %v61, 7
  %v123 = vrot.slane %v62, 7
  %v124 = vrot.slane %v63, 7
  %vm125 = vcmp.lt.s32.totalorder %v65, 1
  %v126 = vsel %vm125, %v123, %v124
  %v127 = vsel %vm125, %v122, %v123
  %v128 = vsel %vm125, %v121, %v122
  %v129 = vsel %vm125, %v124, %v121
  %v130 = vsel %vm117, 1, 0
  %v131 = vsel %vm118, 1, 0
  %v132 = vsel %vm119, 1, 0
  %v133 = vsel %vm120, 1, 0
  %vm134 = vcmp.eq.s32.totalorder %v130, 1
  %vm135 = vcmp.eq.s32.totalorder %v131, 1
  %vm136 = vcmp.eq.s32.totalorder %v132, 1
  %vm137 = vcmp.eq.s32.totalorder %v133, 1
  %v138 = vsel %vm134, 0.0, %v129
  %v139 = vsel %vm135, 0.0, %v128
  %v140 = vsel %vm136, 0.0, %v127
  %v141 = vsel %vm137, 0.0, %v126
  %vm142 = vcmp.eq.s32.totalorder %v113, 15
  %vm143 = vcmp.eq.s32.totalorder %v114, 15
  %vm144 = vcmp.eq.s32.totalorder %v115, 15
  %vm145 = vcmp.eq.s32.totalorder %v116, 15
  %v146 = vrot.slane %v60, 1
  %v147 = vrot.slane %v61, 1
  %v148 = vrot.slane %v62, 1
  %v149 = vrot.slane %v63, 1
  %vm150 = vcmp.lt.s32.totalorder %v65, 7
  %v151 = vsel %vm150, %v148, %v149
  %v152 = vsel %vm150, %v147, %v148
  %v153 = vsel %vm150, %v146, %v147
  %v154 = vsel %vm150, %v149, %v146
  %v155 = vsel %vm142, 1, 0
  %v156 = vsel %vm143, 1, 0
  %v157 = vsel %vm144, 1, 0
  %v158 = vsel %vm145, 1, 0
  %vm159 = vcmp.eq.s32.totalorder %v155, 1
  %vm160 = vcmp.eq.s32.totalorder %v156, 1
  %vm161 = vcmp.eq.s32.totalorder %v157, 1
  %vm162 = vcmp.eq.s32.totalorder %v158, 1
  %v163 = vsel %vm159, 0.0, %v153
  %v164 = vsel %vm160, 0.0, %v152
  %v165 = vsel %vm161, 0.0, %v151
  %v166 = vsel %vm162, 0.0, %v154
  %v167 = vpack.c.bf16 %v61, %v60
  %v168 = vpack.c.bf16 %v63, %v62
  %v169 = vld [vmem:[%s5] sm:$0xf]
  %v170 = vld [vmem:[%s5 + $0x4] sm:$0xf]
  %v171 = vld [vmem:[%s5 + $0x8] sm:$0xf]
  %v172 = vld [vmem:[%s5 + $0xc] sm:$0xf]
  %v173 = vld [vmem:[%s5 + $0x10] sm:$0xf]
  %v174 = vld [vmem:[%s5 + $0x14] sm:$0xf]
  %v175 = vld [vmem:[%s5 + $0x18] sm:$0xf]
  %v176 = vld [vmem:[%s5 + $0x1c] sm:$0xf]
  %v177 = vpack.c.bf16 %v139, %v138
  %v178 = vpack.c.bf16 %v141, %v140
  %v179 = vld [vmem:[%s4] sm:$0xf]
  %v180 = vld [vmem:[%s4 + $0x4] sm:$0xf]
  %v181 = vld [vmem:[%s4 + $0x8] sm:$0xf]
  %v182 = vld [vmem:[%s4 + $0xc] sm:$0xf]
  %v183 = vld [vmem:[%s4 + $0x10] sm:$0xf]
  %v184 = vld [vmem:[%s4 + $0x14] sm:$0xf]
  %v185 = vld [vmem:[%s4 + $0x18] sm:$0xf]
  %v186 = vld [vmem:[%s4 + $0x1c] sm:$0xf]
  %v195 = vunpack.c.l.b16 %v179
  %v196 = vunpack.c.l.b16 %v180
  %v197 = vunpack.c.l.b16 %v181
  %v198 = vunpack.c.l.b16 %v182
  %v199 = vunpack.c.l.b16 %v183
  %v200 = vunpack.c.l.b16 %v184
  %v201 = vunpack.c.l.b16 %v185
  %v202 = vunpack.c.l.b16 %v186
  %v203 = vpack.c.b16 %v196, %v195
  %v204 = vpack.c.b16 %v198, %v197
  %v205 = vpack.c.b16 %v200, %v199
  %v206 = vpack.c.b16 %v202, %v201
  %vm211 = vcmask 523264
  %v213 = vsel %vm211, %v177, 0
  %v216 = vsel %vm211, %v178, 0
  %218 = vmatprep.subr.bf16.mxu0 0
  %219 = vmatpush1.bf16.msra.mxu0 %v203
  %220 = vmatprep.subr.bf16.mxu0 0
  %221 = vmatpush1.bf16.msra.mxu0 %v204
  %222 = vmatprep.subr.bf16.mxu0 0
  %223 = vmatpush1.bf16.msra.mxu0 %v205
  %224 = vmatprep.subr.bf16.mxu0 0
  %225 = vmatpush1.bf16.msra.mxu0 %v206
  %226 = vmatprep.subr.bf16.mxu0 0
  %227 = vmatpush1.bf16.msra.mxu0 0
  %228 = vmatprep.subr.bf16.mxu0 0
  %229 = vmatpush1.bf16.msra.mxu0 0
  %230 = vmatprep.subr.bf16.mxu0 0
  %231 = vmatpush1.bf16.msra.mxu0 0
  %232 = vmatprep.subr.bf16.mxu0 0
  %233 = vmatpush1.bf16.msra.mxu0 0
  %234 = vmatprep.subr.bf16.mxu0 0
  %235 = vmatpush1.bf16.msra.mxu0 0
  %236 = vmatprep.subr.bf16.mxu0 0
  %237 = vmatpush1.bf16.msra.mxu0 0
  %238 = vmatprep.subr.bf16.mxu0 0
  %239 = vmatpush1.bf16.msra.mxu0 0
  %240 = vmatprep.subr.bf16.mxu0 0
  %241 = vmatpush1.bf16.msra.mxu0 0
  %242 = vmatprep.subr.bf16.mxu0 0
  %243 = vmatpush1.bf16.msra.mxu0 0
  %244 = vmatprep.subr.bf16.mxu0 0
  %245 = vmatpush1.bf16.msra.mxu0 0
  %246 = vmatprep.subr.bf16.mxu0 0
  %247 = vmatpush1.bf16.msra.mxu0 0
  %248 = vmatprep.subr.bf16.mxu0 0
  %249 = vmatpush1.bf16.msra.mxu0 0
  %250 = vmatprep.mubr.bf16.mxu0 0
  %251 = vmatmul.mubr.bf16.gmra.mrb[0].mxu0 %v213
  %v252 = vpop.f32.mrb[0].mxu0
  %v253 = vadd.f32 0.0, %v252
  %v254 = vpop.f32.mrb[0].mxu0
  %v255 = vpop.f32.mrb[0].mxu0
  %v256 = vadd.f32 0.0, %v255
  %v257 = vpop.f32.mrb[0].mxu0
  %258 = vmatprep.mubr.bf16.mxu0 0
  %259 = vmatmul.mubr.bf16.gmra.mrb[0].mxu0 %v216
  %v260 = vpop.f32.mrb[0].mxu0
  %v261 = vadd.f32 0.0, %v260
  %v262 = vpop.f32.mrb[0].mxu0
  %v263 = vpop.f32.mrb[0].mxu0
  %v264 = vadd.f32 0.0, %v263
  %v265 = vpop.f32.mrb[0].mxu0
  %266 = vdwg.mxu0
  %v275 = vunpack.c.l.b16 %v169
  %v276 = vunpack.c.l.b16 %v170
  %v277 = vunpack.c.l.b16 %v171
  %v278 = vunpack.c.l.b16 %v172
  %v279 = vunpack.c.l.b16 %v173
  %v280 = vunpack.c.l.b16 %v174
  %v281 = vunpack.c.l.b16 %v175
  %v282 = vunpack.c.l.b16 %v176
  %v283 = vpack.c.b16 %v276, %v275
  %v284 = vpack.c.b16 %v278, %v277
  %v285 = vpack.c.b16 %v280, %v279
  %v286 = vpack.c.b16 %v282, %v281
  %v292 = vsel %vm211, %v167, 0
  %v295 = vsel %vm211, %v168, 0
  %297 = vmatprep.subr.bf16.mxu0 0
  %298 = vmatpush1.bf16.msra.mxu0 %v283
  %299 = vmatprep.subr.bf16.mxu0 0
  %300 = vmatpush1.bf16.msra.mxu0 %v284
  %301 = vmatprep.subr.bf16.mxu0 0
  %302 = vmatpush1.bf16.msra.mxu0 %v285
  %303 = vmatprep.subr.bf16.mxu0 0
  %304 = vmatpush1.bf16.msra.mxu0 %v286
  %305 = vmatprep.subr.bf16.mxu0 0
  %306 = vmatpush1.bf16.msra.mxu0 0
  %307 = vmatprep.subr.bf16.mxu0 0
  %308 = vmatpush1.bf16.msra.mxu0 0
  %309 = vmatprep.subr.bf16.mxu0 0
  %310 = vmatpush1.bf16.msra.mxu0 0
  %311 = vmatprep.subr.bf16.mxu0 0
  %312 = vmatpush1.bf16.msra.mxu0 0
  %313 = vmatprep.subr.bf16.mxu0 0
  %314 = vmatpush1.bf16.msra.mxu0 0
  %315 = vmatprep.subr.bf16.mxu0 0
  %316 = vmatpush1.bf16.msra.mxu0 0
  %317 = vmatprep.subr.bf16.mxu0 0
  %318 = vmatpush1.bf16.msra.mxu0 0
  %319 = vmatprep.subr.bf16.mxu0 0
  %320 = vmatpush1.bf16.msra.mxu0 0
  %321 = vmatprep.subr.bf16.mxu0 0
  %322 = vmatpush1.bf16.msra.mxu0 0
  %323 = vmatprep.subr.bf16.mxu0 0
  %324 = vmatpush1.bf16.msra.mxu0 0
  %325 = vmatprep.subr.bf16.mxu0 0
  %326 = vmatpush1.bf16.msra.mxu0 0
  %327 = vmatprep.subr.bf16.mxu0 0
  %328 = vmatpush1.bf16.msra.mxu0 0
  %329 = vmatprep.mubr.bf16.mxu0 0
  %330 = vmatmul.mubr.bf16.gmra.mrb[0].mxu0 %v292
  %v331 = vpop.f32.mrb[0].mxu0
  %v332 = vadd.f32 %v253, %v331
  %v333 = vpop.f32.mrb[0].mxu0
  %v334 = vpop.f32.mrb[0].mxu0
  %v335 = vadd.f32 %v256, %v334
  %v336 = vpop.f32.mrb[0].mxu0
  %337 = vmatprep.mubr.bf16.mxu0 0
  %338 = vmatmul.mubr.bf16.gmra.mrb[0].mxu0 %v295
  %v339 = vpop.f32.mrb[0].mxu0
  %v340 = vadd.f32 %v261, %v339
  %v341 = vpop.f32.mrb[0].mxu0
  %v342 = vpop.f32.mrb[0].mxu0
  %v343 = vadd.f32 %v264, %v342
  %v344 = vpop.f32.mrb[0].mxu0
  %345 = vdwg.mxu0
  %v346 = vpack.c.bf16 %v164, %v163
  %v347 = vpack.c.bf16 %v166, %v165
  %v348 = vld [vmem:[%s6] sm:$0xf]
  %v349 = vld [vmem:[%s6 + $0x4] sm:$0xf]
  %v350 = vld [vmem:[%s6 + $0x8] sm:$0xf]
  %v351 = vld [vmem:[%s6 + $0xc] sm:$0xf]
  %v352 = vld [vmem:[%s6 + $0x10] sm:$0xf]
  %v353 = vld [vmem:[%s6 + $0x14] sm:$0xf]
  %v354 = vld [vmem:[%s6 + $0x18] sm:$0xf]
  %v355 = vld [vmem:[%s6 + $0x1c] sm:$0xf]
  %v364 = vunpack.c.l.b16 %v348
  %v365 = vunpack.c.l.b16 %v349
  %v366 = vunpack.c.l.b16 %v350
  %v367 = vunpack.c.l.b16 %v351
  %v368 = vunpack.c.l.b16 %v352
  %v369 = vunpack.c.l.b16 %v353
  %v370 = vunpack.c.l.b16 %v354
  %v371 = vunpack.c.l.b16 %v355
  %v372 = vpack.c.b16 %v365, %v364
  %v373 = vpack.c.b16 %v367, %v366
  %v374 = vpack.c.b16 %v369, %v368
  %v375 = vpack.c.b16 %v371, %v370
  %v381 = vsel %vm211, %v346, 0
  %v384 = vsel %vm211, %v347, 0
  %386 = vmatprep.subr.bf16.mxu0 0
  %387 = vmatpush1.bf16.msra.mxu0 %v372
  %388 = vmatprep.subr.bf16.mxu0 0
  %389 = vmatpush1.bf16.msra.mxu0 %v373
  %390 = vmatprep.subr.bf16.mxu0 0
  %391 = vmatpush1.bf16.msra.mxu0 %v374
  %392 = vmatprep.subr.bf16.mxu0 0
  %393 = vmatpush1.bf16.msra.mxu0 %v375
  %394 = vmatprep.subr.bf16.mxu0 0
  %395 = vmatpush1.bf16.msra.mxu0 0
  %396 = vmatprep.subr.bf16.mxu0 0
  %397 = vmatpush1.bf16.msra.mxu0 0
  %398 = vmatprep.subr.bf16.mxu0 0
  %399 = vmatpush1.bf16.msra.mxu0 0
  %400 = vmatprep.subr.bf16.mxu0 0
  %401 = vmatpush1.bf16.msra.mxu0 0
  %402 = vmatprep.subr.bf16.mxu0 0
  %403 = vmatpush1.bf16.msra.mxu0 0
  %404 = vmatprep.subr.bf16.mxu0 0
  %405 = vmatpush1.bf16.msra.mxu0 0
  %406 = vmatprep.subr.bf16.mxu0 0
  %407 = vmatpush1.bf16.msra.mxu0 0
  %408 = vmatprep.subr.bf16.mxu0 0
  %409 = vmatpush1.bf16.msra.mxu0 0
  %410 = vmatprep.subr.bf16.mxu0 0
  %411 = vmatpush1.bf16.msra.mxu0 0
  %412 = vmatprep.subr.bf16.mxu0 0
  %413 = vmatpush1.bf16.msra.mxu0 0
  %414 = vmatprep.subr.bf16.mxu0 0
  %415 = vmatpush1.bf16.msra.mxu0 0
  %416 = vmatprep.subr.bf16.mxu0 0
  %417 = vmatpush1.bf16.msra.mxu0 0
  %418 = vmatprep.mubr.bf16.mxu0 0
  %419 = vmatmul.mubr.bf16.gmra.mrb[0].mxu0 %v381
  %v420 = vpop.f32.mrb[0].mxu0
  %v421 = vadd.f32 0.0, %v420
  %v422 = vpop.f32.mrb[0].mxu0
  %v423 = vpop.f32.mrb[0].mxu0
  %v424 = vadd.f32 0.0, %v423
  %v425 = vpop.f32.mrb[0].mxu0
  %426 = vmatprep.mubr.bf16.mxu0 0
  %427 = vmatmul.mubr.bf16.gmra.mrb[0].mxu0 %v384
  %v428 = vpop.f32.mrb[0].mxu0
  %v429 = vadd.f32 0.0, %v428
  %v430 = vpop.f32.mrb[0].mxu0
  %v431 = vpop.f32.mrb[0].mxu0
  %v432 = vadd.f32 0.0, %v431
  %v433 = vpop.f32.mrb[0].mxu0
  %434 = vdwg.mxu0
  %v435 = vadd.f32 %v332, %v421
  %v436 = vadd.f32 %v335, %v424
  %v437 = vadd.f32 %v340, %v429
  %v438 = vadd.f32 %v343, %v432
  %v439 = vld [vmem:[%s7] sm:$0x1]
  %v441 = vlaneseq
  %v442 = vshrl.u32 %v441, 7
  %v443 = vsub.s32 0, %v442
  %v444 = vrot.slane %v439, %v443
  %v446 = vadd.f32 %v435, %v444
  %v447 = vadd.f32 %v436, %v444
  %v448 = vadd.f32 %v437, %v444
  %v449 = vadd.f32 %v438, %v444
  %v450 = vld [vmem:[%s1] sm:$0xff]
  %v451 = vld [vmem:[%s1 + $0x8] sm:$0xff]
  %v452 = vld [vmem:[%s1 + $0x10] sm:$0xff]
  %v453 = vld [vmem:[%s1 + $0x18] sm:$0xff]
  %v454 = vadd.f32 %v446, %v450
  %v455 = vadd.f32 %v447, %v451
  %v456 = vadd.f32 %v448, %v452
  %v457 = vadd.f32 %v449, %v453
  %458 = vst.msk [vmem:[%s8] sm:$0xff] %vm211, %v454
  %459 = vst.msk [vmem:[%s8 + $0x8] sm:$0xff] %vm211, %v455
  %460 = vst.msk [vmem:[%s8 + $0x10] sm:$0xff] %vm211, %v456
  %461 = vst.msk [vmem:[%s8 + $0x18] sm:$0xff] %vm211, %v457
  // Predicated region
  $region34: #{residual_block.3} parent=0 // pred_check
    _
  $region35: #{residual_block.3} parent=0 // pred_check_branch
    %463 = sbr.rel (0) target = $region37
  $region36: #{residual_block.3} parent=0 // pred_region
    _
  $region37: #{residual_block.3} parent=0 // pred_fallthru
    _
  // Predicated region
  $region38: #{residual_block.3} parent=0 // pred_check
    _
  $region39: #{residual_block.3} parent=0 // pred_check_branch
    %465 = sbr.rel (0) target = $region41
  $region40: #{residual_block.3} parent=0 // pred_region
    _
  $region41: #{residual_block.3} parent=0 // pred_fallthru
    _

</llo_original>
